<compile_context>
chip_gen: v7x
topology: tpu7x:2x2x1
jax: 0.10.0
libtpu: 0.0.40
codegen_flags: <defaults>
</compile_context>

<pallas_src>
import math

import jax
import jax.numpy as jnp
from jax.experimental import pallas as pl
from jax.experimental.pallas import tpu as pltpu


ENCODER_SIZE = [64, 256, 64]
LATENT_SIZE = 2
INPUT_SIZE = 32      # raw_data is empty in the reference script; pick a small feature dim
BATCH = 512          # demo batch

_SUBLANE = 8


def _round_up(x, m):
    return (x + m - 1) // m * m


def _default_num_tiles():
    """How many batch tiles to cut: one per TensorCore reachable by this call."""
    try:
        kind = jax.devices()[0].device_kind.lower()
    except Exception:
        return 1
    if "v7" in kind:                      # 2 TensorCores per chip
        return 2
    if "v4" in kind or "v5p" in kind:     # megacore: 2 TCs behind one device
        return 2
    return 1                              # v5e / v6e: single TC -> single grid step


def _layer_dims(input_size, encoder_size, latent_size):
    enc = [input_size] + list(encoder_size) + [latent_size]
    dec = [latent_size] + list(encoder_size)[::-1] + [input_size]
    return enc, dec


def init_params(key, input_size=INPUT_SIZE, encoder_size=ENCODER_SIZE,
                latent_size=LATENT_SIZE):
    """PyTorch nn.Linear-style init; weights stored [in, out] so the kernel does h @ W."""
    enc, dec = _layer_dims(input_size, encoder_size, latent_size)
    dims = list(zip(enc[:-1], enc[1:])) + list(zip(dec[:-1], dec[1:]))
    params = []
    for fan_in, fan_out in dims:
        key, kw, kb = jax.random.split(key, 3)
        bound = 1.0 / math.sqrt(fan_in)
        w = jax.random.uniform(kw, (fan_in, fan_out), jnp.float32, -bound, bound)
        b = jax.random.uniform(kb, (fan_out,), jnp.float32, -bound, bound)
        params.append((w, b))
    return params


def _make_ae_kernel(layer_dims, compute_dtype):
    """layer_dims: tuple of (fan_in, fan_out) per layer. Tanh after every layer
    except the last. Matmuls run on the MXU with f32 accumulation."""
    n_layers = len(layer_dims)

    def kernel(x_ref, *refs):
        *w_refs, b_ref, o_ref = refs
        h = x_ref[...]
        for li in range(n_layers):
            _, fan_out = layer_dims[li]
            lhs = h.astype(compute_dtype)
            h = jnp.dot(lhs, w_refs[li][...],
                        preferred_element_type=jnp.float32)
            h = h + b_ref[li:li + 1, :fan_out]          # f32 bias add post-accum
            if li < n_layers - 1:
                h = jnp.tanh(h)
        o_ref[...] = h.astype(o_ref.dtype)

    return kernel


def torch_ae_forward(x, params, *, block_batch=None, compute_dtype=jnp.bfloat16,
                     interpret=False):
    """Fused autoencoder forward.

    block_batch: rows per grid step. Default (None) = whole batch on single-TC
                 chips, half the batch on dual-TC chips (v7x / megacore).
    compute_dtype: MXU operand dtype. bf16 (default) = single-pass matmuls;
                 jnp.float32 = full-fidelity multi-pass f32 matmuls.
    """
    batch, in_features = x.shape
    n_layers = len(params)
    out_features = params[-1][0].shape[1]

    # ---- pack parameters (runs under jit; folded into the call) ----
    layer_dims = [(w.shape[0], w.shape[1]) for w, _ in params]
    weights = [w.astype(compute_dtype) for w, _ in params]   # pre-cast: halves weight DMA for bf16
    max_out = max(fo for _, fo in layer_dims)
    bias_slab = jnp.zeros((n_layers, max_out), jnp.float32)
    for li, (_, b) in enumerate(params):
        bias_slab = bias_slab.at[li, :b.shape[0]].set(b.astype(jnp.float32))

    # ---- batch tiling ----
    if block_batch is None:
        tm = _round_up(pl.cdiv(batch, _default_num_tiles()), _SUBLANE)
    else:
        tm = min(block_batch, _round_up(batch, _SUBLANE))
    padded_batch = _round_up(batch, tm)
    if padded_batch != batch:
        x = jnp.pad(x, ((0, padded_batch - batch), (0, 0)))
    grid = (padded_batch // tm,)

    kernel = _make_ae_kernel(tuple(layer_dims), compute_dtype)

    def resident(shape):                 # weights/bias slab: DMA once, stay in VMEM
        return pl.BlockSpec(shape, lambda i: (0, 0))

    in_specs = (
        [pl.BlockSpec((tm, in_features), lambda i: (i, 0))]
        + [resident(w.shape) for w in weights]
        + [resident(bias_slab.shape)]
    )
    out_specs = pl.BlockSpec((tm, out_features), lambda i: (i, 0))

    # Advisory cost estimate so XLA can overlap this tiny call with neighbors.
    flops = 2 * padded_batch * sum(fi * fo for fi, fo in layer_dims)
    transcendentals = padded_batch * sum(fo for _, fo in layer_dims[:-1])
    bytes_accessed = (
        padded_batch * in_features * x.dtype.itemsize
        + padded_batch * out_features * x.dtype.itemsize
        + sum(w.size * w.dtype.itemsize for w in weights)
        + bias_slab.size * bias_slab.dtype.itemsize
    )

    out = pl.pallas_call(
        kernel,
        grid=grid,
        in_specs=in_specs,
        out_specs=out_specs,
        out_shape=jax.ShapeDtypeStruct((padded_batch, out_features), x.dtype),
        compiler_params=pltpu.CompilerParams(
            dimension_semantics=("parallel",)),      # batch tiles independent
        cost_estimate=pl.CostEstimate(flops=int(flops),
                                      transcendentals=int(transcendentals),
                                      bytes_accessed=int(bytes_accessed)),
        interpret=interpret,
    )(x, *weights, bias_slab)

    if padded_batch != batch:
        out = out[:batch]
    return out


def reference_forward(x, params):
    """Pure-JAX reference (mirrors torch_AE.forward) at true f32 precision."""
    h = x
    for i, (w, b) in enumerate(params):
        h = jnp.dot(h, w, precision=jax.lax.Precision.HIGHEST) + b
        if i < len(params) - 1:
            h = jnp.tanh(h)
    return h


if __name__ == "__main__":
    key = jax.random.PRNGKey(0)
    key, kx = jax.random.split(key)

    params = init_params(key)
    x = jax.random.normal(kx, (BATCH, INPUT_SIZE), jnp.float32)

    fwd = jax.jit(torch_ae_forward)
    out = jax.block_until_ready(fwd(x, params))

    ref = reference_forward(x, params)
    assert out.shape == (BATCH, INPUT_SIZE), out.shape
    # Default path uses bf16 MXU operands with f32 accumulation; tolerance is
    # decoupled from the true-f32 reference accordingly.
    err = float(jnp.max(jnp.abs(out - ref)))
    assert err < 2e-2, f"kernel mismatch vs reference, max abs err {err}"

    # TODO(synk): torch_AE_Dataset is host-side data plumbing; no kernel equivalent needed.
    print("KERNEL_OK")
</pallas_src>

<mosaic_0001>
module attributes {stable_mosaic.version = 11 : i64} {
  func.func @kernel(%arg0: i32, %arg1: memref<512x32xf32, #tpu.memory_space<vmem>>, %arg2: memref<32x64xbf16, #tpu.memory_space<vmem>>, %arg3: memref<64x256xbf16, #tpu.memory_space<vmem>>, %arg4: memref<256x64xbf16, #tpu.memory_space<vmem>>, %arg5: memref<64x2xbf16, #tpu.memory_space<vmem>>, %arg6: memref<2x64xbf16, #tpu.memory_space<vmem>>, %arg7: memref<64x256xbf16, #tpu.memory_space<vmem>>, %arg8: memref<256x64xbf16, #tpu.memory_space<vmem>>, %arg9: memref<64x32xbf16, #tpu.memory_space<vmem>>, %arg10: memref<8x256xf32, #tpu.memory_space<vmem>>, %arg11: memref<512x32xf32, #tpu.memory_space<vmem>>) attributes {dimension_semantics = [#tpu.dimension_semantics<parallel>], iteration_bounds = array<i64: 1>, scalar_prefetch = 0 : i64, scratch_operands = 0 : i64, tpu.core_type = #tpu.core_type<tc>, window_params = [{transform_indices = @transform_0, window_bounds = array<i64: 512, 32>}, {pipeline_mode = #tpu.pipeline_mode<synchronous>, transform_indices = @transform_1, window_bounds = array<i64: 32, 64>}, {pipeline_mode = #tpu.pipeline_mode<synchronous>, transform_indices = @transform_2, window_bounds = array<i64: 64, 256>}, {pipeline_mode = #tpu.pipeline_mode<synchronous>, transform_indices = @transform_3, window_bounds = array<i64: 256, 64>}, {pipeline_mode = #tpu.pipeline_mode<synchronous>, transform_indices = @transform_4, window_bounds = array<i64: 64, 2>}, {pipeline_mode = #tpu.pipeline_mode<synchronous>, transform_indices = @transform_5, window_bounds = array<i64: 2, 64>}, {pipeline_mode = #tpu.pipeline_mode<synchronous>, transform_indices = @transform_6, window_bounds = array<i64: 64, 256>}, {pipeline_mode = #tpu.pipeline_mode<synchronous>, transform_indices = @transform_7, window_bounds = array<i64: 256, 64>}, {pipeline_mode = #tpu.pipeline_mode<synchronous>, transform_indices = @transform_8, window_bounds = array<i64: 64, 32>}, {pipeline_mode = #tpu.pipeline_mode<synchronous>, transform_indices = @transform_9, window_bounds = array<i64: 8, 256>}, {transform_indices = @transform_10, window_bounds = array<i64: 512, 32>}]} {
    %c0 = arith.constant 0 : index
    %c0_0 = arith.constant 0 : index
    %0 = vector.load %arg1[%c0, %c0_0] : memref<512x32xf32, #tpu.memory_space<vmem>>, vector<512x32xf32>
    %1 = arith.truncf %0 : vector<512x32xf32> to vector<512x32xbf16>
    %c0_1 = arith.constant 0 : index
    %c0_2 = arith.constant 0 : index
    %2 = vector.load %arg2[%c0_1, %c0_2] : memref<32x64xbf16, #tpu.memory_space<vmem>>, vector<32x64xbf16>
    %cst = arith.constant dense<0.000000e+00> : vector<512x64xf32>
    %3 = tpu.matmul %1, %2, %cst {dimension_numbers = #tpu.dot_dimension_numbers<[1], [0], [0], [1], [0, 0, 1, 1], [], []>} : vector<512x32xbf16>, vector<32x64xbf16>, vector<512x64xf32> -> vector<512x64xf32>
    %c0_3 = arith.constant 0 : index
    %c0_4 = arith.constant 0 : index
    %4 = vector.load %arg10[%c0_3, %c0_4] : memref<8x256xf32, #tpu.memory_space<vmem>>, vector<1x64xf32>
    %5 = vector.broadcast %4 : vector<1x64xf32> to vector<512x64xf32>
    %6 = arith.addf %3, %5 : vector<512x64xf32>
    %7 = math.tanh %6 : vector<512x64xf32>
    %8 = arith.truncf %7 : vector<512x64xf32> to vector<512x64xbf16>
    %c0_5 = arith.constant 0 : index
    %c0_6 = arith.constant 0 : index
    %9 = vector.load %arg3[%c0_5, %c0_6] : memref<64x256xbf16, #tpu.memory_space<vmem>>, vector<64x256xbf16>
    %cst_7 = arith.constant dense<0.000000e+00> : vector<512x256xf32>
    %10 = tpu.matmul %8, %9, %cst_7 {dimension_numbers = #tpu.dot_dimension_numbers<[1], [0], [0], [1], [0, 0, 1, 1], [], []>} : vector<512x64xbf16>, vector<64x256xbf16>, vector<512x256xf32> -> vector<512x256xf32>
    %c1 = arith.constant 1 : index
    %c0_8 = arith.constant 0 : index
    %11 = vector.load %arg10[%c1, %c0_8] : memref<8x256xf32, #tpu.memory_space<vmem>>, vector<1x256xf32>
    %12 = vector.broadcast %11 : vector<1x256xf32> to vector<512x256xf32>
    %13 = arith.addf %10, %12 : vector<512x256xf32>
    %14 = math.tanh %13 : vector<512x256xf32>
    %15 = arith.truncf %14 : vector<512x256xf32> to vector<512x256xbf16>
    %c0_9 = arith.constant 0 : index
    %c0_10 = arith.constant 0 : index
    %16 = vector.load %arg4[%c0_9, %c0_10] : memref<256x64xbf16, #tpu.memory_space<vmem>>, vector<256x64xbf16>
    %cst_11 = arith.constant dense<0.000000e+00> : vector<512x64xf32>
    %17 = tpu.matmul %15, %16, %cst_11 {dimension_numbers = #tpu.dot_dimension_numbers<[1], [0], [0], [1], [0, 0, 1, 1], [], []>} : vector<512x256xbf16>, vector<256x64xbf16>, vector<512x64xf32> -> vector<512x64xf32>
    %c2 = arith.constant 2 : index
    %c0_12 = arith.constant 0 : index
    %18 = vector.load %arg10[%c2, %c0_12] : memref<8x256xf32, #tpu.memory_space<vmem>>, vector<1x64xf32>
    %19 = vector.broadcast %18 : vector<1x64xf32> to vector<512x64xf32>
    %20 = arith.addf %17, %19 : vector<512x64xf32>
    %21 = math.tanh %20 : vector<512x64xf32>
    %22 = arith.truncf %21 : vector<512x64xf32> to vector<512x64xbf16>
    %c0_13 = arith.constant 0 : index
    %c0_14 = arith.constant 0 : index
    %23 = vector.load %arg5[%c0_13, %c0_14] : memref<64x2xbf16, #tpu.memory_space<vmem>>, vector<64x2xbf16>
    %cst_15 = arith.constant dense<0.000000e+00> : vector<512x2xf32>
    %24 = tpu.matmul %22, %23, %cst_15 {dimension_numbers = #tpu.dot_dimension_numbers<[1], [0], [0], [1], [0, 0, 1, 1], [], []>} : vector<512x64xbf16>, vector<64x2xbf16>, vector<512x2xf32> -> vector<512x2xf32>
    %c3 = arith.constant 3 : index
    %c0_16 = arith.constant 0 : index
    %25 = vector.load %arg10[%c3, %c0_16] : memref<8x256xf32, #tpu.memory_space<vmem>>, vector<1x2xf32>
    %26 = vector.broadcast %25 : vector<1x2xf32> to vector<512x2xf32>
    %27 = arith.addf %24, %26 : vector<512x2xf32>
    %28 = math.tanh %27 : vector<512x2xf32>
    %29 = arith.truncf %28 : vector<512x2xf32> to vector<512x2xbf16>
    %c0_17 = arith.constant 0 : index
    %c0_18 = arith.constant 0 : index
    %30 = vector.load %arg6[%c0_17, %c0_18] : memref<2x64xbf16, #tpu.memory_space<vmem>>, vector<2x64xbf16>
    %cst_19 = arith.constant dense<0.000000e+00> : vector<512x64xf32>
    %31 = tpu.matmul %29, %30, %cst_19 {dimension_numbers = #tpu.dot_dimension_numbers<[1], [0], [0], [1], [0, 0, 1, 1], [], []>} : vector<512x2xbf16>, vector<2x64xbf16>, vector<512x64xf32> -> vector<512x64xf32>
    %c4 = arith.constant 4 : index
    %c0_20 = arith.constant 0 : index
    %32 = vector.load %arg10[%c4, %c0_20] : memref<8x256xf32, #tpu.memory_space<vmem>>, vector<1x64xf32>
    %33 = vector.broadcast %32 : vector<1x64xf32> to vector<512x64xf32>
    %34 = arith.addf %31, %33 : vector<512x64xf32>
    %35 = math.tanh %34 : vector<512x64xf32>
    %36 = arith.truncf %35 : vector<512x64xf32> to vector<512x64xbf16>
    %c0_21 = arith.constant 0 : index
    %c0_22 = arith.constant 0 : index
    %37 = vector.load %arg7[%c0_21, %c0_22] : memref<64x256xbf16, #tpu.memory_space<vmem>>, vector<64x256xbf16>
    %cst_23 = arith.constant dense<0.000000e+00> : vector<512x256xf32>
    %38 = tpu.matmul %36, %37, %cst_23 {dimension_numbers = #tpu.dot_dimension_numbers<[1], [0], [0], [1], [0, 0, 1, 1], [], []>} : vector<512x64xbf16>, vector<64x256xbf16>, vector<512x256xf32> -> vector<512x256xf32>
    %c5 = arith.constant 5 : index
    %c0_24 = arith.constant 0 : index
    %39 = vector.load %arg10[%c5, %c0_24] : memref<8x256xf32, #tpu.memory_space<vmem>>, vector<1x256xf32>
    %40 = vector.broadcast %39 : vector<1x256xf32> to vector<512x256xf32>
    %41 = arith.addf %38, %40 : vector<512x256xf32>
    %42 = math.tanh %41 : vector<512x256xf32>
    %43 = arith.truncf %42 : vector<512x256xf32> to vector<512x256xbf16>
    %c0_25 = arith.constant 0 : index
    %c0_26 = arith.constant 0 : index
    %44 = vector.load %arg8[%c0_25, %c0_26] : memref<256x64xbf16, #tpu.memory_space<vmem>>, vector<256x64xbf16>
    %cst_27 = arith.constant dense<0.000000e+00> : vector<512x64xf32>
    %45 = tpu.matmul %43, %44, %cst_27 {dimension_numbers = #tpu.dot_dimension_numbers<[1], [0], [0], [1], [0, 0, 1, 1], [], []>} : vector<512x256xbf16>, vector<256x64xbf16>, vector<512x64xf32> -> vector<512x64xf32>
    %c6 = arith.constant 6 : index
    %c0_28 = arith.constant 0 : index
    %46 = vector.load %arg10[%c6, %c0_28] : memref<8x256xf32, #tpu.memory_space<vmem>>, vector<1x64xf32>
    %47 = vector.broadcast %46 : vector<1x64xf32> to vector<512x64xf32>
    %48 = arith.addf %45, %47 : vector<512x64xf32>
    %49 = math.tanh %48 : vector<512x64xf32>
    %50 = arith.truncf %49 : vector<512x64xf32> to vector<512x64xbf16>
    %c0_29 = arith.constant 0 : index
    %c0_30 = arith.constant 0 : index
    %51 = vector.load %arg9[%c0_29, %c0_30] : memref<64x32xbf16, #tpu.memory_space<vmem>>, vector<64x32xbf16>
    %cst_31 = arith.constant dense<0.000000e+00> : vector<512x32xf32>
    %52 = tpu.matmul %50, %51, %cst_31 {dimension_numbers = #tpu.dot_dimension_numbers<[1], [0], [0], [1], [0, 0, 1, 1], [], []>} : vector<512x64xbf16>, vector<64x32xbf16>, vector<512x32xf32> -> vector<512x32xf32>
    %c7 = arith.constant 7 : index
    %c0_32 = arith.constant 0 : index
    %53 = vector.load %arg10[%c7, %c0_32] : memref<8x256xf32, #tpu.memory_space<vmem>>, vector<1x32xf32>
    %54 = vector.broadcast %53 : vector<1x32xf32> to vector<512x32xf32>
    %55 = arith.addf %52, %54 : vector<512x32xf32>
    %c0_33 = arith.constant 0 : index
    %c0_34 = arith.constant 0 : index
    %56 = vector.load %arg11[%c0_33, %c0_34] : memref<512x32xf32, #tpu.memory_space<vmem>>, vector<512x32xf32>
    tpu.vector_store %arg11[%c0_33, %c0_34], %55 {strides = array<i32>} : memref<512x32xf32, #tpu.memory_space<vmem>>, vector<512x32xf32>,
    return
  }
  func.func @transform_0(%arg0: i32) -> (i32, i32) {
    %c0_i32 = arith.constant 0 : i32
    %c0_i32_0 = arith.constant 0 : i32
    return %arg0, %c0_i32 : i32, i32
  }
  func.func @transform_1(%arg0: i32) -> (i32, i32) {
    %c0_i32 = arith.constant 0 : i32
    %c0_i32_0 = arith.constant 0 : i32
    %c0_i32_1 = arith.constant 0 : i32
    return %c0_i32, %c0_i32_0 : i32, i32
  }
  func.func @transform_2(%arg0: i32) -> (i32, i32) {
    %c0_i32 = arith.constant 0 : i32
    %c0_i32_0 = arith.constant 0 : i32
    %c0_i32_1 = arith.constant 0 : i32
    return %c0_i32, %c0_i32_0 : i32, i32
  }
  func.func @transform_3(%arg0: i32) -> (i32, i32) {
    %c0_i32 = arith.constant 0 : i32
    %c0_i32_0 = arith.constant 0 : i32
    %c0_i32_1 = arith.constant 0 : i32
    return %c0_i32, %c0_i32_0 : i32, i32
  }
  func.func @transform_4(%arg0: i32) -> (i32, i32) {
    %c0_i32 = arith.constant 0 : i32
    %c0_i32_0 = arith.constant 0 : i32
    %c0_i32_1 = arith.constant 0 : i32
    return %c0_i32, %c0_i32_0 : i32, i32
  }
  func.func @transform_5(%arg0: i32) -> (i32, i32) {
    %c0_i32 = arith.constant 0 : i32
    %c0_i32_0 = arith.constant 0 : i32
    %c0_i32_1 = arith.constant 0 : i32
    return %c0_i32, %c0_i32_0 : i32, i32
  }
  func.func @transform_6(%arg0: i32) -> (i32, i32) {
    %c0_i32 = arith.constant 0 : i32
    %c0_i32_0 = arith.constant 0 : i32
    %c0_i32_1 = arith.constant 0 : i32
    return %c0_i32, %c0_i32_0 : i32, i32
  }
  func.func @transform_7(%arg0: i32) -> (i32, i32) {
    %c0_i32 = arith.constant 0 : i32
    %c0_i32_0 = arith.constant 0 : i32
    %c0_i32_1 = arith.constant 0 : i32
    return %c0_i32, %c0_i32_0 : i32, i32
  }
  func.func @transform_8(%arg0: i32) -> (i32, i32) {
    %c0_i32 = arith.constant 0 : i32
    %c0_i32_0 = arith.constant 0 : i32
    %c0_i32_1 = arith.constant 0 : i32
    return %c0_i32, %c0_i32_0 : i32, i32
  }
  func.func @transform_9(%arg0: i32) -> (i32, i32) {
    %c0_i32 = arith.constant 0 : i32
    %c0_i32_0 = arith.constant 0 : i32
    %c0_i32_1 = arith.constant 0 : i32
    return %c0_i32, %c0_i32_0 : i32, i32
  }
  func.func @transform_10(%arg0: i32) -> (i32, i32) {
    %c0_i32 = arith.constant 0 : i32
    %c0_i32_0 = arith.constant 0 : i32
    return %arg0, %c0_i32 : i32, i32
  }
}

</mosaic_0001>

<llo_original>
// kernel: torch_ae_forward.1
$region0: #{torch_ae_forward.1}
  #allocation0 [shape = 'u32[]', space=smem, size = 0x4, offset = 0x4, fixed_abs, tag = 'smem constant byte address 0x4 - core index']
  #allocation1 [shape = 'u32[144,128]{1,0:T(1,128)}', space=vmem, size = 0x12000, scoped, tag = 'internal scratch']
  %s0 = inlined_call_operand.vmem [shape: f32[512,32], index: 0, kind: input, shape index: {}]
  %s1 = inlined_call_operand.vmem [shape: bf16[32,64], index: 1, kind: input, shape index: {}]
  %s2 = inlined_call_operand.vmem [shape: bf16[64,256], index: 2, kind: input, shape index: {}]
  %s3 = inlined_call_operand.vmem [shape: bf16[256,64], index: 3, kind: input, shape index: {}]
  %s4 = inlined_call_operand.vmem [shape: bf16[64,2], index: 4, kind: input, shape index: {}]
  %s5 = inlined_call_operand.vmem [shape: bf16[2,64], index: 5, kind: input, shape index: {}]
  %s6 = inlined_call_operand.vmem [shape: bf16[64,256], index: 6, kind: input, shape index: {}]
  %s7 = inlined_call_operand.vmem [shape: bf16[256,64], index: 7, kind: input, shape index: {}]
  %s8 = inlined_call_operand.vmem [shape: bf16[64,32], index: 8, kind: input, shape index: {}]
  %s9 = inlined_call_operand.vmem [shape: f32[8,256], index: 9, kind: input, shape index: {}]
  %s10 = inlined_call_operand.vmem [shape: f32[512,32], index: 10, kind: output, shape index: {}]
  %s11 = sld [smem:[#allocation0]]
  $region50: #{torch_ae_forward.1} parent=0
    _
  %s13 = ssub.s32 1, %s11
  %s14 = scalar_select 0, %s13, %s11
  // Predicated region
  $region2: #{torch_ae_forward.1} parent=0 // pred_check
    _
  $region3: #{torch_ae_forward.1} parent=0 // pred_check_branch
    %16 = sbr.rel (0) target = $region5
  $region4: #{torch_ae_forward.1} parent=0 // pred_region
    _
  $region5: #{torch_ae_forward.1} parent=0 // pred_fallthru
    _
  // Predicated region
  $region6: #{torch_ae_forward.1} parent=0 // pred_check
    _
  $region7: #{torch_ae_forward.1} parent=0 // pred_check_branch
    %18 = sbr.rel (0) target = $region9
  $region8: #{torch_ae_forward.1} parent=0 // pred_region
    _
  $region9: #{torch_ae_forward.1} parent=0 // pred_fallthru
    _
  // Predicated region
  $region10: #{torch_ae_forward.1} parent=0 // pred_check
    _
  $region11: #{torch_ae_forward.1} parent=0 // pred_check_branch
    %20 = sbr.rel (0) target = $region13
  $region12: #{torch_ae_forward.1} parent=0 // pred_region
    _
  $region13: #{torch_ae_forward.1} parent=0 // pred_fallthru
    _
  // Predicated region
  $region14: #{torch_ae_forward.1} parent=0 // pred_check
    _
  $region15: #{torch_ae_forward.1} parent=0 // pred_check_branch
    %22 = sbr.rel (0) target = $region17
  $region16: #{torch_ae_forward.1} parent=0 // pred_region
    _
  $region17: #{torch_ae_forward.1} parent=0 // pred_fallthru
    _
  // Predicated region
  $region18: #{torch_ae_forward.1} parent=0 // pred_check
    _
  $region19: #{torch_ae_forward.1} parent=0 // pred_check_branch
    %24 = sbr.rel (0) target = $region21
  $region20: #{torch_ae_forward.1} parent=0 // pred_region
    _
  $region21: #{torch_ae_forward.1} parent=0 // pred_fallthru
    _
  // Predicated region
  $region22: #{torch_ae_forward.1} parent=0 // pred_check
    _
  $region23: #{torch_ae_forward.1} parent=0 // pred_check_branch
    %26 = sbr.rel (0) target = $region25
  $region24: #{torch_ae_forward.1} parent=0 // pred_region
    _
  $region25: #{torch_ae_forward.1} parent=0 // pred_fallthru
    _
  // Predicated region
  $region26: #{torch_ae_forward.1} parent=0 // pred_check
    _
  $region27: #{torch_ae_forward.1} parent=0 // pred_check_branch
    %28 = sbr.rel (0) target = $region29
  $region28: #{torch_ae_forward.1} parent=0 // pred_region
    _
  $region29: #{torch_ae_forward.1} parent=0 // pred_fallthru
    _
  // Predicated region
  $region30: #{torch_ae_forward.1} parent=0 // pred_check
    _
  $region31: #{torch_ae_forward.1} parent=0 // pred_check_branch
    %30 = sbr.rel (0) target = $region33
  $region32: #{torch_ae_forward.1} parent=0 // pred_region
    _
  $region33: #{torch_ae_forward.1} parent=0 // pred_fallthru
    _
  // Predicated region
  $region34: #{torch_ae_forward.1} parent=0 // pred_check
    _
  $region35: #{torch_ae_forward.1} parent=0 // pred_check_branch
    %32 = sbr.rel (0) target = $region37
  $region36: #{torch_ae_forward.1} parent=0 // pred_region
    _
  $region37: #{torch_ae_forward.1} parent=0 // pred_fallthru
    _
  // Predicated region
  $region38: #{torch_ae_forward.1} parent=0 // pred_check
    _
  $region39: #{torch_ae_forward.1} parent=0 // pred_check_branch
    %34 = sbr.rel (0) target = $region41
  $region40: #{torch_ae_forward.1} parent=0 // pred_region
    _
  $region41: #{torch_ae_forward.1} parent=0 // pred_fallthru
    _
  %v36 = vld [vmem:[%s0] sm:$0xff]
  %v37 = vld [vmem:[%s0 + $0x8] sm:$0xff]
  %v38 = vld [vmem:[%s0 + $0x10] sm:$0xff]
  %v39 = vld [vmem:[%s0 + $0x18] sm:$0xff]
  %v40 = vld [vmem:[%s0 + $0x20] sm:$0xff]
  %v41 = vld [vmem:[%s0 + $0x28] sm:$0xff]
  %v42 = vld [vmem:[%s0 + $0x30] sm:$0xff]
  %v43 = vld [vmem:[%s0 + $0x38] sm:$0xff]
  %v44 = vld [vmem:[%s0 + $0x40] sm:$0xff]
  %v45 = vld [vmem:[%s0 + $0x48] sm:$0xff]
  %v46 = vld [vmem:[%s0 + $0x50] sm:$0xff]
  %v47 = vld [vmem:[%s0 + $0x58] sm:$0xff]
  %v48 = vld [vmem:[%s0 + $0x60] sm:$0xff]
  %v49 = vld [vmem:[%s0 + $0x68] sm:$0xff]
  %v50 = vld [vmem:[%s0 + $0x70] sm:$0xff]
  %v51 = vld [vmem:[%s0 + $0x78] sm:$0xff]
  %v52 = vld [vmem:[%s0 + $0x80] sm:$0xff]
  %v53 = vld [vmem:[%s0 + $0x88] sm:$0xff]
  %v54 = vld [vmem:[%s0 + $0x90] sm:$0xff]
  %v55 = vld [vmem:[%s0 + $0x98] sm:$0xff]
  %v56 = vld [vmem:[%s0 + $0xa0] sm:$0xff]
  %v57 = vld [vmem:[%s0 + $0xa8] sm:$0xff]
  %v58 = vld [vmem:[%s0 + $0xb0] sm:$0xff]
  %v59 = vld [vmem:[%s0 + $0xb8] sm:$0xff]
  %v60 = vld [vmem:[%s0 + $0xc0] sm:$0xff]
  %v61 = vld [vmem:[%s0 + $0xc8] sm:$0xff]
  %v62 = vld [vmem:[%s0 + $0xd0] sm:$0xff]
  %v63 = vld [vmem:[%s0 + $0xd8] sm:$0xff]
  %v64 = vld [vmem:[%s0 + $0xe0] sm:$0xff]
  %v65 = vld [vmem:[%s0 + $0xe8] sm:$0xff]
  %v66 = vld [vmem:[%s0 + $0xf0] sm:$0xff]
  %v67 = vld [vmem:[%s0 + $0xf8] sm:$0xff]
  %v68 = vld [vmem:[%s0 + $0x100] sm:$0xff]
  %v69 = vld [vmem:[%s0 + $0x108] sm:$0xff]
  %v70 = vld [vmem:[%s0 + $0x110] sm:$0xff]
  %v71 = vld [vmem:[%s0 + $0x118] sm:$0xff]
  %v72 = vld [vmem:[%s0 + $0x120] sm:$0xff]
  %v73 = vld [vmem:[%s0 + $0x128] sm:$0xff]
  %v74 = vld [vmem:[%s0 + $0x130] sm:$0xff]
  %v75 = vld [vmem:[%s0 + $0x138] sm:$0xff]
  %v76 = vld [vmem:[%s0 + $0x140] sm:$0xff]
  %v77 = vld [vmem:[%s0 + $0x148] sm:$0xff]
  %v78 = vld [vmem:[%s0 + $0x150] sm:$0xff]
  %v79 = vld [vmem:[%s0 + $0x158] sm:$0xff]
  %v80 = vld [vmem:[%s0 + $0x160] sm:$0xff]
  %v81 = vld [vmem:[%s0 + $0x168] sm:$0xff]
  %v82 = vld [vmem:[%s0 + $0x170] sm:$0xff]
  %v83 = vld [vmem:[%s0 + $0x178] sm:$0xff]
  %v84 = vld [vmem:[%s0 + $0x180] sm:$0xff]
  %v85 = vld [vmem:[%s0 + $0x188] sm:$0xff]
  %v86 = vld [vmem:[%s0 + $0x190] sm:$0xff]
  %v87 = vld [vmem:[%s0 + $0x198] sm:$0xff]
  %v88 = vld [vmem:[%s0 + $0x1a0] sm:$0xff]
  %v89 = vld [vmem:[%s0 + $0x1a8] sm:$0xff]
  %v90 = vld [vmem:[%s0 + $0x1b0] sm:$0xff]
  %v91 = vld [vmem:[%s0 + $0x1b8] sm:$0xff]
  %v92 = vld [vmem:[%s0 + $0x1c0] sm:$0xff]
  %v93 = vld [vmem:[%s0 + $0x1c8] sm:$0xff]
  %v94 = vld [vmem:[%s0 + $0x1d0] sm:$0xff]
  %v95 = vld [vmem:[%s0 + $0x1d8] sm:$0xff]
  %v96 = vld [vmem:[%s0 + $0x1e0] sm:$0xff]
  %v97 = vld [vmem:[%s0 + $0x1e8] sm:$0xff]
  %v98 = vld [vmem:[%s0 + $0x1f0] sm:$0xff]
  %v99 = vld [vmem:[%s0 + $0x1f8] sm:$0xff]
  %v100 = vpack.c.bf16 %v37, %v36
  %v101 = vpack.c.bf16 %v39, %v38
  %v102 = vpack.c.bf16 %v41, %v40
  %v103 = vpack.c.bf16 %v43, %v42
  %v104 = vpack.c.bf16 %v45, %v44
  %v105 = vpack.c.bf16 %v47, %v46
  %v106 = vpack.c.bf16 %v49, %v48
  %v107 = vpack.c.bf16 %v51, %v50
  %v108 = vpack.c.bf16 %v53, %v52
  %v109 = vpack.c.bf16 %v55, %v54
  %v110 = vpack.c.bf16 %v57, %v56
  %v111 = vpack.c.bf16 %v59, %v58
  %v112 = vpack.c.bf16 %v61, %v60
  %v113 = vpack.c.bf16 %v63, %v62
  %v114 = vpack.c.bf16 %v65, %v64
  %v115 = vpack.c.bf16 %v67, %v66
  %v116 = vpack.c.bf16 %v69, %v68
  %v117 = vpack.c.bf16 %v71, %v70
  %v118 = vpack.c.bf16 %v73, %v72
  %v119 = vpack.c.bf16 %v75, %v74
  %v120 = vpack.c.bf16 %v77, %v76
  %v121 = vpack.c.bf16 %v79, %v78
  %v122 = vpack.c.bf16 %v81, %v80
  %v123 = vpack.c.bf16 %v83, %v82
  %v124 = vpack.c.bf16 %v85, %v84
  %v125 = vpack.c.bf16 %v87, %v86
  %v126 = vpack.c.bf16 %v89, %v88
  %v127 = vpack.c.bf16 %v91, %v90
  %v128 = vpack.c.bf16 %v93, %v92
  %v129 = vpack.c.bf16 %v95, %v94
  %v130 = vpack.c.bf16 %v97, %v96
  %v131 = vpack.c.bf16 %v99, %v98
  %v132 = vld [vmem:[%s1] sm:$0xf]
  %v133 = vld [vmem:[%s1 + $0x4] sm:$0xf]
  %v134 = vld [vmem:[%s1 + $0x8] sm:$0xf]
  %v135 = vld [vmem:[%s1 + $0xc] sm:$0xf]
  %v136 = vld [vmem:[%s9] ss:$0 sm:$0xff]
  %v141 = vunpack.c.l.b16 %v132
  %v142 = vunpack.c.l.b16 %v133
  %v143 = vunpack.c.l.b16 %v134
  %v144 = vunpack.c.l.b16 %v135
  %v145 = vpack.c.b16 %v142, %v141
  %v146 = vpack.c.b16 %v144, %v143
  %vm149 = vcmask 261120
  %v151 = vsel %vm149, %v100, 0
  %v154 = vsel %vm149, %v101, 0
  %v157 = vsel %vm149, %v102, 0
  %v160 = vsel %vm149, %v103, 0
  %v163 = vsel %vm149, %v104, 0
  %v166 = vsel %vm149, %v105, 0
  %v169 = vsel %vm149, %v106, 0
  %v172 = vsel %vm149, %v107, 0
  %v175 = vsel %vm149, %v108, 0
  %v178 = vsel %vm149, %v109, 0
  %v181 = vsel %vm149, %v110, 0
  %v184 = vsel %vm149, %v111, 0
  %v187 = vsel %vm149, %v112, 0
  %v190 = vsel %vm149, %v113, 0
  %v193 = vsel %vm149, %v114, 0
  %v196 = vsel %vm149, %v115, 0
  %v199 = vsel %vm149, %v116, 0
  %v202 = vsel %vm149, %v117, 0
  %v205 = vsel %vm149, %v118, 0
  %v208 = vsel %vm149, %v119, 0
  %v211 = vsel %vm149, %v120, 0
  %v214 = vsel %vm149, %v121, 0
  %v217 = vsel %vm149, %v122, 0
  %v220 = vsel %vm149, %v123, 0
  %v223 = vsel %vm149, %v124, 0
  %v226 = vsel %vm149, %v125, 0
  %v229 = vsel %vm149, %v126, 0
  %v232 = vsel %vm149, %v127, 0
  %v235 = vsel %vm149, %v128, 0
  %v238 = vsel %vm149, %v129, 0
  %v241 = vsel %vm149, %v130, 0
  %v244 = vsel %vm149, %v131, 0
  %246 = vmatprep.subr.bf16.mxu0 0
  %247 = vmatpush1.bf16.msra.mxu0 %v145
  %248 = vmatprep.subr.bf16.mxu0 0
  %249 = vmatpush1.bf16.msra.mxu0 %v146
  %250 = vmatprep.subr.bf16.mxu0 0
  %251 = vmatpush1.bf16.msra.mxu0 0
  %252 = vmatprep.subr.bf16.mxu0 0
  %253 = vmatpush1.bf16.msra.mxu0 0
  %254 = vmatprep.subr.bf16.mxu0 0
  %255 = vmatpush1.bf16.msra.mxu0 0
  %256 = vmatprep.subr.bf16.mxu0 0
  %257 = vmatpush1.bf16.msra.mxu0 0
  %258 = vmatprep.subr.bf16.mxu0 0
  %259 = vmatpush1.bf16.msra.mxu0 0
  %260 = vmatprep.subr.bf16.mxu0 0
  %261 = vmatpush1.bf16.msra.mxu0 0
  %262 = vmatprep.subr.bf16.mxu0 0
  %263 = vmatpush1.bf16.msra.mxu0 0
  %264 = vmatprep.subr.bf16.mxu0 0
  %265 = vmatpush1.bf16.msra.mxu0 0
  %266 = vmatprep.subr.bf16.mxu0 0
  %267 = vmatpush1.bf16.msra.mxu0 0
  %268 = vmatprep.subr.bf16.mxu0 0
  %269 = vmatpush1.bf16.msra.mxu0 0
  %270 = vmatprep.subr.bf16.mxu0 0
  %271 = vmatpush1.bf16.msra.mxu0 0
  %272 = vmatprep.subr.bf16.mxu0 0
  %273 = vmatpush1.bf16.msra.mxu0 0
  %274 = vmatprep.subr.bf16.mxu0 0
  %275 = vmatpush1.bf16.msra.mxu0 0
  %276 = vmatprep.subr.bf16.mxu0 0
  %277 = vmatpush1.bf16.msra.mxu0 0
  %278 = vmatprep.mubr.bf16.mxu0 0
  %279 = vmatmul.mubr.bf16.gmra.mrb[0].mxu0 %v151
  %v280 = vpop.f32.mrb[0].mxu0
  %v281 = vadd.f32 %v136, %v280
  %v282 = vpop.f32.mrb[0].mxu0
  %v283 = vpop.f32.mrb[0].mxu0
  %v284 = vadd.f32 %v136, %v283
  %v285 = vpop.f32.mrb[0].mxu0
  %286 = vmatprep.mubr.bf16.mxu0 0
  %287 = vmatmul.mubr.bf16.gmra.mrb[0].mxu0 %v154
  %v288 = vpop.f32.mrb[0].mxu0
  %v289 = vadd.f32 %v136, %v288
  %v290 = vpop.f32.mrb[0].mxu0
  %v291 = vpop.f32.mrb[0].mxu0
  %v292 = vadd.f32 %v136, %v291
  %v293 = vpop.f32.mrb[0].mxu0
  %294 = vmatprep.mubr.bf16.mxu0 0
  %295 = vmatmul.mubr.bf16.gmra.mrb[0].mxu0 %v157
  %v296 = vpop.f32.mrb[0].mxu0
  %v297 = vadd.f32 %v136, %v296
  %v298 = vpop.f32.mrb[0].mxu0
  %v299 = vpop.f32.mrb[0].mxu0
  %v300 = vadd.f32 %v136, %v299
  %v301 = vpop.f32.mrb[0].mxu0
  %302 = vmatprep.mubr.bf16.mxu0 0
  %303 = vmatmul.mubr.bf16.gmra.mrb[0].mxu0 %v160
  %v304 = vpop.f32.mrb[0].mxu0
  %v305 = vadd.f32 %v136, %v304
  %v306 = vpop.f32.mrb[0].mxu0
  %v307 = vpop.f32.mrb[0].mxu0
  %v308 = vadd.f32 %v136, %v307
  %v309 = vpop.f32.mrb[0].mxu0
  %310 = vmatprep.mubr.bf16.mxu0 0
  %311 = vmatmul.mubr.bf16.gmra.mrb[0].mxu0 %v163
  %v312 = vpop.f32.mrb[0].mxu0
  %v313 = vadd.f32 %v136, %v312
  %v314 = vpop.f32.mrb[0].mxu0
  %v315 = vpop.f32.mrb[0].mxu0
  %v316 = vadd.f32 %v136, %v315
  %v317 = vpop.f32.mrb[0].mxu0
  %318 = vmatprep.mubr.bf16.mxu0 0
  %319 = vmatmul.mubr.bf16.gmra.mrb[0].mxu0 %v166
  %v320 = vpop.f32.mrb[0].mxu0
  %v321 = vadd.f32 %v136, %v320
  %v322 = vpop.f32.mrb[0].mxu0
  %v323 = vpop.f32.mrb[0].mxu0
  %v324 = vadd.f32 %v136, %v323
  %v325 = vpop.f32.mrb[0].mxu0
  %326 = vmatprep.mubr.bf16.mxu0 0
  %327 = vmatmul.mubr.bf16.gmra.mrb[0].mxu0 %v169
  %v328 = vpop.f32.mrb[0].mxu0
  %v329 = vadd.f32 %v136, %v328
  %v330 = vpop.f32.mrb[0].mxu0
  %v331 = vpop.f32.mrb[0].mxu0
  %v332 = vadd.f32 %v136, %v331
  %v333 = vpop.f32.mrb[0].mxu0
  %334 = vmatprep.mubr.bf16.mxu0 0
  %335 = vmatmul.mubr.bf16.gmra.mrb[0].mxu0 %v172
  %v336 = vpop.f32.mrb[0].mxu0
  %v337 = vadd.f32 %v136, %v336
  %v338 = vpop.f32.mrb[0].mxu0
  %v339 = vpop.f32.mrb[0].mxu0
  %v340 = vadd.f32 %v136, %v339
  %v341 = vpop.f32.mrb[0].mxu0
  %342 = vmatprep.mubr.bf16.mxu0 0
  %343 = vmatmul.mubr.bf16.gmra.mrb[0].mxu0 %v175
  %v344 = vpop.f32.mrb[0].mxu0
  %v345 = vadd.f32 %v136, %v344
  %v346 = vpop.f32.mrb[0].mxu0
  %v347 = vpop.f32.mrb[0].mxu0
  %v348 = vadd.f32 %v136, %v347
  %v349 = vpop.f32.mrb[0].mxu0
  %350 = vmatprep.mubr.bf16.mxu0 0
  %351 = vmatmul.mubr.bf16.gmra.mrb[0].mxu0 %v178
  %v352 = vpop.f32.mrb[0].mxu0
  %v353 = vadd.f32 %v136, %v352
  %v354 = vpop.f32.mrb[0].mxu0
  %v355 = vpop.f32.mrb[0].mxu0
  %v356 = vadd.f32 %v136, %v355
  %v357 = vpop.f32.mrb[0].mxu0
  %358 = vmatprep.mubr.bf16.mxu0 0
  %359 = vmatmul.mubr.bf16.gmra.mrb[0].mxu0 %v181
  %v360 = vpop.f32.mrb[0].mxu0
  %v361 = vadd.f32 %v136, %v360
  %v362 = vpop.f32.mrb[0].mxu0
  %v363 = vpop.f32.mrb[0].mxu0
  %v364 = vadd.f32 %v136, %v363
  %v365 = vpop.f32.mrb[0].mxu0
  %366 = vmatprep.mubr.bf16.mxu0 0
  %367 = vmatmul.mubr.bf16.gmra.mrb[0].mxu0 %v184
  %v368 = vpop.f32.mrb[0].mxu0
  %v369 = vadd.f32 %v136, %v368
  %v370 = vpop.f32.mrb[0].mxu0
  %v371 = vpop.f32.mrb[0].mxu0
  %v372 = vadd.f32 %v136, %v371
  %v373 = vpop.f32.mrb[0].mxu0
  %374 = vmatprep.mubr.bf16.mxu0 0
  %375 = vmatmul.mubr.bf16.gmra.mrb[0].mxu0 %v187
  %v376 = vpop.f32.mrb[0].mxu0
  %v377 = vadd.f32 %v136, %v376
  %v378 = vpop.f32.mrb[0].mxu0
  %v379 = vpop.f32.mrb[0].mxu0
  %v380 = vadd.f32 %v136, %v379
  %v381 = vpop.f32.mrb[0].mxu0
  %382 = vmatprep.mubr.bf16.mxu0 0
  %383 = vmatmul.mubr.bf16.gmra.mrb[0].mxu0 %v190
  %v384 = vpop.f32.mrb[0].mxu0
  %v385 = vadd.f32 %v136, %v384
  %v386 = vpop.f32.mrb[0].mxu0
  %v387 = vpop.f32.mrb[0].mxu0
  %v388 = vadd.f32 %v136, %v387
  %v389 = vpop.f32.mrb[0].mxu0
  %390 = vmatprep.mubr.bf16.mxu0 0
  %391 = vmatmul.mubr.bf16.gmra.mrb[0].mxu0 %v193
  %v392 = vpop.f32.mrb[0].mxu0
  %v393 = vadd.f32 %v136, %v392
  %v394 = vpop.f32.mrb[0].mxu0
  %v395 = vpop.f32.mrb[0].mxu0
  %v396 = vadd.f32 %v136, %v395
  %v397 = vpop.f32.mrb[0].mxu0
  %398 = vmatprep.mubr.bf16.mxu0 0
  %399 = vmatmul.mubr.bf16.gmra.mrb[0].mxu0 %v196
  %v400 = vpop.f32.mrb[0].mxu0
  %v401 = vadd.f32 %v136, %v400
  %v402 = vpop.f32.mrb[0].mxu0
  %v403 = vpop.f32.mrb[0].mxu0
  %v404 = vadd.f32 %v136, %v403
  %v405 = vpop.f32.mrb[0].mxu0
  %406 = vmatprep.mubr.bf16.mxu0 0
  %407 = vmatmul.mubr.bf16.gmra.mrb[0].mxu0 %v199
  %v408 = vpop.f32.mrb[0].mxu0
  %v409 = vadd.f32 %v136, %v408
  %v410 = vpop.f32.mrb[0].mxu0
  %v411 = vpop.f32.mrb[0].mxu0
  %v412 = vadd.f32 %v136, %v411
  %v413 = vpop.f32.mrb[0].mxu0
  %414 = vmatprep.mubr.bf16.mxu0 0
  %415 = vmatmul.mubr.bf16.gmra.mrb[0].mxu0 %v202
  %v416 = vpop.f32.mrb[0].mxu0
  %v417 = vadd.f32 %v136, %v416
  %v418 = vpop.f32.mrb[0].mxu0
  %v419 = vpop.f32.mrb[0].mxu0
  %v420 = vadd.f32 %v136, %v419
  %v421 = vpop.f32.mrb[0].mxu0
  %422 = vmatprep.mubr.bf16.mxu0 0
  %423 = vmatmul.mubr.bf16.gmra.mrb[0].mxu0 %v205
  %v424 = vpop.f32.mrb[0].mxu0
  %v425 = vadd.f32 %v136, %v424
  %v426 = vpop.f32.mrb[0].mxu0
  %v427 = vpop.f32.mrb[0].mxu0
  %v428 = vadd.f32 %v136, %v427
  %v429 = vpop.f32.mrb[0].mxu0
  %430 = vmatprep.mubr.bf16.mxu0 0
  %431 = vmatmul.mubr.bf16.gmra.mrb[0].mxu0 %v208
  %v432 = vpop.f32.mrb[0].mxu0
  %v433 = vadd.f32 %v136, %v432
  %v434 = vpop.f32.mrb[0].mxu0
  %v435 = vpop.f32.mrb[0].mxu0
  %v436 = vadd.f32 %v136, %v435
  %v437 = vpop.f32.mrb[0].mxu0
  %438 = vmatprep.mubr.bf16.mxu0 0
  %439 = vmatmul.mubr.bf16.gmra.mrb[0].mxu0 %v211
  %v440 = vpop.f32.mrb[0].mxu0
  %v441 = vadd.f32 %v136, %v440
  %v442 = vpop.f32.mrb[0].mxu0
  %v443 = vpop.f32.mrb[0].mxu0
  %v444 = vadd.f32 %v136, %v443
  %v445 = vpop.f32.mrb[0].mxu0
  %446 = vmatprep.mubr.bf16.mxu0 0
  %447 = vmatmul.mubr.bf16.gmra.mrb[0].mxu0 %v214
  %v448 = vpop.f32.mrb[0].mxu0
  %v449 = vadd.f32 %v136, %v448
  %v450 = vpop.f32.mrb[0].mxu0
  %v451 = vpop.f32.mrb[0].mxu0
  %v452 = vadd.f32 %v136, %v451
  %v453 = vpop.f32.mrb[0].mxu0
  %454 = vmatprep.mubr.bf16.mxu0 0
  %455 = vmatmul.mubr.bf16.gmra.mrb[0].mxu0 %v217
  %v456 = vpop.f32.mrb[0].mxu0
  %v457 = vadd.f32 %v136, %v456
  %v458 = vpop.f32.mrb[0].mxu0
  %v459 = vpop.f32.mrb[0].mxu0
  %v460 = vadd.f32 %v136, %v459
  %v461 = vpop.f32.mrb[0].mxu0
  %462 = vmatprep.mubr.bf16.mxu0 0
  %463 = vmatmul.mubr.bf16.gmra.mrb[0].mxu0 %v220
  %v464 = vpop.f32.mrb[0].mxu0
  %v465 = vadd.f32 %v136, %v464
  %v466 = vpop.f32.mrb[0].mxu0
  %v467 = vpop.f32.mrb[0].mxu0
  %v468 = vadd.f32 %v136, %v467
  %v469 = vpop.f32.mrb[0].mxu0
  %470 = vmatprep.mubr.bf16.mxu0 0
  %471 = vmatmul.mubr.bf16.gmra.mrb[0].mxu0 %v223
  %v472 = vpop.f32.mrb[0].mxu0
  %v473 = vadd.f32 %v136, %v472
  %v474 = vpop.f32.mrb[0].mxu0
  %v475 = vpop.f32.mrb[0].mxu0
  %v476 = vadd.f32 %v136, %v475
  %v477 = vpop.f32.mrb[0].mxu0
  %478 = vmatprep.mubr.bf16.mxu0 0
  %479 = vmatmul.mubr.bf16.gmra.mrb[0].mxu0 %v226
  %v480 = vpop.f32.mrb[0].mxu0
  %v481 = vadd.f32 %v136, %v480
  %v482 = vpop.f32.mrb[0].mxu0
  %v483 = vpop.f32.mrb[0].mxu0
  %v484 = vadd.f32 %v136, %v483
  %v485 = vpop.f32.mrb[0].mxu0
  %486 = vmatprep.mubr.bf16.mxu0 0
  %487 = vmatmul.mubr.bf16.gmra.mrb[0].mxu0 %v229
  %v488 = vpop.f32.mrb[0].mxu0
  %v489 = vadd.f32 %v136, %v488
  %v490 = vpop.f32.mrb[0].mxu0
  %v491 = vpop.f32.mrb[0].mxu0
  %v492 = vadd.f32 %v136, %v491
  %v493 = vpop.f32.mrb[0].mxu0
  %494 = vmatprep.mubr.bf16.mxu0 0
  %495 = vmatmul.mubr.bf16.gmra.mrb[0].mxu0 %v232
  %v496 = vpop.f32.mrb[0].mxu0
  %v497 = vadd.f32 %v136, %v496
  %v498 = vpop.f32.mrb[0].mxu0
  %v499 = vpop.f32.mrb[0].mxu0
  %v500 = vadd.f32 %v136, %v499
  %v501 = vpop.f32.mrb[0].mxu0
  %502 = vmatprep.mubr.bf16.mxu0 0
  %503 = vmatmul.mubr.bf16.gmra.mrb[0].mxu0 %v235
  %v504 = vpop.f32.mrb[0].mxu0
  %v505 = vadd.f32 %v136, %v504
  %v506 = vpop.f32.mrb[0].mxu0
  %v507 = vpop.f32.mrb[0].mxu0
  %v508 = vadd.f32 %v136, %v507
  %v509 = vpop.f32.mrb[0].mxu0
  %510 = vmatprep.mubr.bf16.mxu0 0
  %511 = vmatmul.mubr.bf16.gmra.mrb[0].mxu0 %v238
  %v512 = vpop.f32.mrb[0].mxu0
  %v513 = vadd.f32 %v136, %v512
  %v514 = vpop.f32.mrb[0].mxu0
  %v515 = vpop.f32.mrb[0].mxu0
  %v516 = vadd.f32 %v136, %v515
  %v517 = vpop.f32.mrb[0].mxu0
  %518 = vmatprep.mubr.bf16.mxu0 0
  %519 = vmatmul.mubr.bf16.gmra.mrb[0].mxu0 %v241
  %v520 = vpop.f32.mrb[0].mxu0
  %v521 = vadd.f32 %v136, %v520
  %v522 = vpop.f32.mrb[0].mxu0
  %v523 = vpop.f32.mrb[0].mxu0
  %v524 = vadd.f32 %v136, %v523
  %v525 = vpop.f32.mrb[0].mxu0
  %526 = vmatprep.mubr.bf16.mxu0 0
  %527 = vmatmul.mubr.bf16.gmra.mrb[0].mxu0 %v244
  %v528 = vpop.f32.mrb[0].mxu0
  %v529 = vadd.f32 %v136, %v528
  %v530 = vpop.f32.mrb[0].mxu0
  %v531 = vpop.f32.mrb[0].mxu0
  %v532 = vadd.f32 %v136, %v531
  %v533 = vpop.f32.mrb[0].mxu0
  %534 = vdwg.mxu0
  %v535 = vtanh.pop %v281
  %v536 = vtanh.pop %v284
  %v537 = vtanh.pop %v289
  %v538 = vtanh.pop %v292
  %v539 = vtanh.pop %v297
  %v540 = vtanh.pop %v300
  %v541 = vtanh.pop %v305
  %v542 = vtanh.pop %v308
  %v543 = vtanh.pop %v313
  %v544 = vtanh.pop %v316
  %v545 = vtanh.pop %v321
  %v546 = vtanh.pop %v324
  %v547 = vtanh.pop %v329
  %v548 = vtanh.pop %v332
  %v549 = vtanh.pop %v337
  %v550 = vtanh.pop %v340
  %v551 = vtanh.pop %v345
  %v552 = vtanh.pop %v348
  %v553 = vtanh.pop %v353
  %v554 = vtanh.pop %v356
  %v555 = vtanh.pop %v361
  %v556 = vtanh.pop %v364
  %v557 = vtanh.pop %v369
  %v558 = vtanh.pop %v372
  %v559 = vtanh.pop %v377
  %v560 = vtanh.pop %v380
  %v561 = vtanh.pop %v385
  %v562 = vtanh.pop %v388
  %v563 = vtanh.pop %v393
  %v564 = vtanh.pop %v396
  %v565 = vtanh.pop %v401
  %v566 = vtanh.pop %v404
  %v567 = vtanh.pop %v409
  %v568 = vtanh.pop %v412
  %v569 = vtanh.pop %v417
  %v570 = vtanh.pop %v420
  %v571 = vtanh.pop %v425
  %v572 = vtanh.pop %v428
  %v573 = vtanh.pop %v433
  %v574 = vtanh.pop %v436
  %v575 = vtanh.pop %v441
  %v576 = vtanh.pop %v444
  %v577 = vtanh.pop %v449
  %v578 = vtanh.pop %v452
  %v579 = vtanh.pop %v457
  %v580 = vtanh.pop %v460
  %v581 = vtanh.pop %v465
  %v582 = vtanh.pop %v468
  %v583 = vtanh.pop %v473
  %v584 = vtanh.pop %v476
  %v585 = vtanh.pop %v481
  %v586 = vtanh.pop %v484
  %v587 = vtanh.pop %v489
  %v588 = vtanh.pop %v492
  %v589 = vtanh.pop %v497
  %v590 = vtanh.pop %v500
  %v591 = vtanh.pop %v505
  %v592 = vtanh.pop %v508
  %v593 = vtanh.pop %v513
  %v594 = vtanh.pop %v516
  %v595 = vtanh.pop %v521
  %v596 = vtanh.pop %v524
  %v597 = vtanh.pop %v529
  %v598 = vtanh.pop %v532
  %v599 = vpack.c.bf16 %v536, %v535
  %v600 = vpack.c.bf16 %v538, %v537
  %v601 = vpack.c.bf16 %v540, %v539
  %v602 = vpack.c.bf16 %v542, %v541
  %v603 = vpack.c.bf16 %v544, %v543
  %v604 = vpack.c.bf16 %v546, %v545
  %v605 = vpack.c.bf16 %v548, %v547
  %v606 = vpack.c.bf16 %v550, %v549
  %v607 = vpack.c.bf16 %v552, %v551
  %v608 = vpack.c.bf16 %v554, %v553
  %v609 = vpack.c.bf16 %v556, %v555
  %v610 = vpack.c.bf16 %v558, %v557
  %v611 = vpack.c.bf16 %v560, %v559
  %v612 = vpack.c.bf16 %v562, %v561
  %v613 = vpack.c.bf16 %v564, %v563
  %v614 = vpack.c.bf16 %v566, %v565
  %v615 = vpack.c.bf16 %v568, %v567
  %v616 = vpack.c.bf16 %v570, %v569
  %v617 = vpack.c.bf16 %v572, %v571
  %v618 = vpack.c.bf16 %v574, %v573
  %v619 = vpack.c.bf16 %v576, %v575
  %v620 = vpack.c.bf16 %v578, %v577
  %v621 = vpack.c.bf16 %v580, %v579
  %v622 = vpack.c.bf16 %v582, %v581
  %v623 = vpack.c.bf16 %v584, %v583
  %v624 = vpack.c.bf16 %v586, %v585
  %v625 = vpack.c.bf16 %v588, %v587
  %v626 = vpack.c.bf16 %v590, %v589
  %v627 = vpack.c.bf16 %v592, %v591
  %v628 = vpack.c.bf16 %v594, %v593
  %v629 = vpack.c.bf16 %v596, %v595
  %v630 = vpack.c.bf16 %v598, %v597
  %v631 = vld [vmem:[%s2] sm:$0xff]
  %v632 = vld [vmem:[%s2 + $0x8] sm:$0xff]
  %v633 = vld [vmem:[%s2 + $0x10] sm:$0xff]
  %v634 = vld [vmem:[%s2 + $0x18] sm:$0xff]
  %v635 = vld [vmem:[%s2 + $0x20] sm:$0xff]
  %v636 = vld [vmem:[%s2 + $0x28] sm:$0xff]
  %v637 = vld [vmem:[%s2 + $0x30] sm:$0xff]
  %v638 = vld [vmem:[%s2 + $0x38] sm:$0xff]
  %s639 = scalar_lea.vmem %s9, 1
  %v640 = vld [vmem:[%s639] ss:$8 sm:$0x3]
  %v642 = vlaneseq
  %v643 = vshrl.u32 %v642, 7
  %v644 = vsub.s32 0, %v643
  %v645 = vrot.slane %v640, %v644
  %v646 = vlaneseq
  %v647 = vshrl.u32 %v646, 7
  %v648 = vsub.s32 1, %v647
  %v649 = vrot.slane %v640, %v648
  %v660 = vunpack.c.l.b16 %v631
  %v661 = vunpack.c.h.b16 %v631
  %v662 = vunpack.c.l.b16 %v632
  %v663 = vunpack.c.h.b16 %v632
  %v664 = vunpack.c.l.b16 %v633
  %v665 = vunpack.c.h.b16 %v633
  %v666 = vunpack.c.l.b16 %v634
  %v667 = vunpack.c.h.b16 %v634
  %v668 = vunpack.c.l.b16 %v635
  %v669 = vunpack.c.h.b16 %v635
  %v670 = vunpack.c.l.b16 %v636
  %v671 = vunpack.c.h.b16 %v636
  %v672 = vunpack.c.l.b16 %v637
  %v673 = vunpack.c.h.b16 %v637
  %v674 = vunpack.c.l.b16 %v638
  %v675 = vunpack.c.h.b16 %v638
  %v676 = vpack.c.b16 %v662, %v660
  %v677 = vpack.c.b16 %v663, %v661
  %v678 = vpack.c.b16 %v666, %v664
  %v679 = vpack.c.b16 %v667, %v665
  %v680 = vpack.c.b16 %v670, %v668
  %v681 = vpack.c.b16 %v671, %v669
  %v682 = vpack.c.b16 %v674, %v672
  %v683 = vpack.c.b16 %v675, %v673
  %vm692 = vcmask 523264
  %v694 = vsel %vm692, %v599, 0
  %v697 = vsel %vm692, %v600, 0
  %v700 = vsel %vm692, %v601, 0
  %v703 = vsel %vm692, %v602, 0
  %v706 = vsel %vm692, %v603, 0
  %v709 = vsel %vm692, %v604, 0
  %v712 = vsel %vm692, %v605, 0
  %v715 = vsel %vm692, %v606, 0
  %v718 = vsel %vm692, %v607, 0
  %v721 = vsel %vm692, %v608, 0
  %v724 = vsel %vm692, %v609, 0
  %v727 = vsel %vm692, %v610, 0
  %v730 = vsel %vm692, %v611, 0
  %v733 = vsel %vm692, %v612, 0
  %v736 = vsel %vm692, %v613, 0
  %v739 = vsel %vm692, %v614, 0
  %v742 = vsel %vm692, %v615, 0
  %v745 = vsel %vm692, %v616, 0
  %v748 = vsel %vm692, %v617, 0
  %v751 = vsel %vm692, %v618, 0
  %v754 = vsel %vm692, %v619, 0
  %v757 = vsel %vm692, %v620, 0
  %v760 = vsel %vm692, %v621, 0
  %v763 = vsel %vm692, %v622, 0
  %v766 = vsel %vm692, %v623, 0
  %v769 = vsel %vm692, %v624, 0
  %v772 = vsel %vm692, %v625, 0
  %v775 = vsel %vm692, %v626, 0
  %v778 = vsel %vm692, %v627, 0
  %v781 = vsel %vm692, %v628, 0
  %v784 = vsel %vm692, %v629, 0
  %v787 = vsel %vm692, %v630, 0
  %789 = vmatprep.subr.bf16.mxu0 %v677
  %790 = vmatpush1.bf16.msra.mxu0 %v676
  %791 = vmatprep.subr.bf16.mxu0 %v679
  %792 = vmatpush1.bf16.msra.mxu0 %v678
  %793 = vmatprep.subr.bf16.mxu0 %v681
  %794 = vmatpush1.bf16.msra.mxu0 %v680
  %795 = vmatprep.subr.bf16.mxu0 %v683
  %796 = vmatpush1.bf16.msra.mxu0 %v682
  %797 = vmatprep.subr.bf16.mxu0 0
  %798 = vmatpush1.bf16.msra.mxu0 0
  %799 = vmatprep.subr.bf16.mxu0 0
  %800 = vmatpush1.bf16.msra.mxu0 0
  %801 = vmatprep.subr.bf16.mxu0 0
  %802 = vmatpush1.bf16.msra.mxu0 0
  %803 = vmatprep.subr.bf16.mxu0 0
  %804 = vmatpush1.bf16.msra.mxu0 0
  %805 = vmatprep.subr.bf16.mxu0 0
  %806 = vmatpush1.bf16.msra.mxu0 0
  %807 = vmatprep.subr.bf16.mxu0 0
  %808 = vmatpush1.bf16.msra.mxu0 0
  %809 = vmatprep.subr.bf16.mxu0 0
  %810 = vmatpush1.bf16.msra.mxu0 0
  %811 = vmatprep.subr.bf16.mxu0 0
  %812 = vmatpush1.bf16.msra.mxu0 0
  %813 = vmatprep.subr.bf16.mxu0 0
  %814 = vmatpush1.bf16.msra.mxu0 0
  %815 = vmatprep.subr.bf16.mxu0 0
  %816 = vmatpush1.bf16.msra.mxu0 0
  %817 = vmatprep.subr.bf16.mxu0 0
  %818 = vmatpush1.bf16.msra.mxu0 0
  %819 = vmatprep.subr.bf16.mxu0 0
  %820 = vmatpush1.bf16.msra.mxu0 0
  %821 = vmatprep.mubr.bf16.mxu0 0
  %822 = vmatmul.mubr.bf16.gmra.mrb[0].mxu0 %v694
  %v823 = vpop.f32.mrb[0].mxu0
  %v824 = vadd.f32 %v645, %v823
  %v825 = vpop.f32.mrb[0].mxu0
  %v826 = vadd.f32 %v649, %v825
  %v827 = vpop.f32.mrb[0].mxu0
  %v828 = vadd.f32 %v645, %v827
  %v829 = vpop.f32.mrb[0].mxu0
  %v830 = vadd.f32 %v649, %v829
  %831 = vmatprep.mubr.bf16.mxu0 0
  %832 = vmatmul.mubr.bf16.gmra.mrb[0].mxu0 %v697
  %v833 = vpop.f32.mrb[0].mxu0
  %v834 = vadd.f32 %v645, %v833
  %v835 = vpop.f32.mrb[0].mxu0
  %v836 = vadd.f32 %v649, %v835
  %v837 = vpop.f32.mrb[0].mxu0
  %v838 = vadd.f32 %v645, %v837
  %v839 = vpop.f32.mrb[0].mxu0
  %v840 = vadd.f32 %v649, %v839
  %841 = vmatprep.mubr.bf16.mxu0 0
  %842 = vmatmul.mubr.bf16.gmra.mrb[0].mxu0 %v700
  %v843 = vpop.f32.mrb[0].mxu0
  %v844 = vadd.f32 %v645, %v843
  %v845 = vpop.f32.mrb[0].mxu0
  %v846 = vadd.f32 %v649, %v845
  %v847 = vpop.f32.mrb[0].mxu0
  %v848 = vadd.f32 %v645, %v847
  %v849 = vpop.f32.mrb[0].mxu0
  %v850 = vadd.f32 %v649, %v849
  %851 = vmatprep.mubr.bf16.mxu0 0
  %852 = vmatmul.mubr.bf16.gmra.mrb[0].mxu0 %v703
  %v853 = vpop.f32.mrb[0].mxu0
  %v854 = vadd.f32 %v645, %v853
  %v855 = vpop.f32.mrb[0].mxu0
  %v856 = vadd.f32 %v649, %v855
  %v857 = vpop.f32.mrb[0].mxu0
  %v858 = vadd.f32 %v645, %v857
  %v859 = vpop.f32.mrb[0].mxu0
  %v860 = vadd.f32 %v649, %v859
  %861 = vmatprep.mubr.bf16.mxu0 0
  %862 = vmatmul.mubr.bf16.gmra.mrb[0].mxu0 %v706
  %v863 = vpop.f32.mrb[0].mxu0
  %v864 = vadd.f32 %v645, %v863
  %v865 = vpop.f32.mrb[0].mxu0
  %v866 = vadd.f32 %v649, %v865
  %v867 = vpop.f32.mrb[0].mxu0
  %v868 = vadd.f32 %v645, %v867
  %v869 = vpop.f32.mrb[0].mxu0
  %v870 = vadd.f32 %v649, %v869
  %871 = vmatprep.mubr.bf16.mxu0 0
  %872 = vmatmul.mubr.bf16.gmra.mrb[0].mxu0 %v709
  %v873 = vpop.f32.mrb[0].mxu0
  %v874 = vadd.f32 %v645, %v873
  %v875 = vpop.f32.mrb[0].mxu0
  %v876 = vadd.f32 %v649, %v875
  %v877 = vpop.f32.mrb[0].mxu0
  %v878 = vadd.f32 %v645, %v877
  %v879 = vpop.f32.mrb[0].mxu0
  %v880 = vadd.f32 %v649, %v879
  %881 = vmatprep.mubr.bf16.mxu0 0
  %882 = vmatmul.mubr.bf16.gmra.mrb[0].mxu0 %v712
  %v883 = vpop.f32.mrb[0].mxu0
  %v884 = vadd.f32 %v645, %v883
  %v885 = vpop.f32.mrb[0].mxu0
  %v886 = vadd.f32 %v649, %v885
  %v887 = vpop.f32.mrb[0].mxu0
  %v888 = vadd.f32 %v645, %v887
  %v889 = vpop.f32.mrb[0].mxu0
  %v890 = vadd.f32 %v649, %v889
  %891 = vmatprep.mubr.bf16.mxu0 0
  %892 = vmatmul.mubr.bf16.gmra.mrb[0].mxu0 %v715
  %v893 = vpop.f32.mrb[0].mxu0
  %v894 = vadd.f32 %v645, %v893
  %v895 = vpop.f32.mrb[0].mxu0
  %v896 = vadd.f32 %v649, %v895
  %v897 = vpop.f32.mrb[0].mxu0
  %v898 = vadd.f32 %v645, %v897
  %v899 = vpop.f32.mrb[0].mxu0
  %v900 = vadd.f32 %v649, %v899
  %901 = vmatprep.mubr.bf16.mxu0 0
  %902 = vmatmul.mubr.bf16.gmra.mrb[0].mxu0 %v718
  %v903 = vpop.f32.mrb[0].mxu0
  %v904 = vadd.f32 %v645, %v903
  %v905 = vpop.f32.mrb[0].mxu0
  %v906 = vadd.f32 %v649, %v905
  %v907 = vpop.f32.mrb[0].mxu0
  %v908 = vadd.f32 %v645, %v907
  %v909 = vpop.f32.mrb[0].mxu0
  %v910 = vadd.f32 %v649, %v909
  %911 = vmatprep.mubr.bf16.mxu0 0
  %912 = vmatmul.mubr.bf16.gmra.mrb[0].mxu0 %v721
  %v913 = vpop.f32.mrb[0].mxu0
  %v914 = vadd.f32 %v645, %v913
  %v915 = vpop.f32.mrb[0].mxu0
  %v916 = vadd.f32 %v649, %v915
  %v917 = vpop.f32.mrb[0].mxu0
  %v918 = vadd.f32 %v645, %v917
  %v919 = vpop.f32.mrb[0].mxu0
  %v920 = vadd.f32 %v649, %v919
  %921 = vmatprep.mubr.bf16.mxu0 0
  %922 = vmatmul.mubr.bf16.gmra.mrb[0].mxu0 %v724
  %v923 = vpop.f32.mrb[0].mxu0
  %v924 = vadd.f32 %v645, %v923
  %v925 = vpop.f32.mrb[0].mxu0
  %v926 = vadd.f32 %v649, %v925
  %v927 = vpop.f32.mrb[0].mxu0
  %v928 = vadd.f32 %v645, %v927
  %v929 = vpop.f32.mrb[0].mxu0
  %v930 = vadd.f32 %v649, %v929
  %931 = vmatprep.mubr.bf16.mxu0 0
  %932 = vmatmul.mubr.bf16.gmra.mrb[0].mxu0 %v727
  %v933 = vpop.f32.mrb[0].mxu0
  %v934 = vadd.f32 %v645, %v933
  %v935 = vpop.f32.mrb[0].mxu0
  %v936 = vadd.f32 %v649, %v935
  %v937 = vpop.f32.mrb[0].mxu0
  %v938 = vadd.f32 %v645, %v937
  %v939 = vpop.f32.mrb[0].mxu0
  %v940 = vadd.f32 %v649, %v939
  %941 = vmatprep.mubr.bf16.mxu0 0
  %942 = vmatmul.mubr.bf16.gmra.mrb[0].mxu0 %v730
  %v943 = vpop.f32.mrb[0].mxu0
  %v944 = vadd.f32 %v645, %v943
  %v945 = vpop.f32.mrb[0].mxu0
  %v946 = vadd.f32 %v649, %v945
  %v947 = vpop.f32.mrb[0].mxu0
  %v948 = vadd.f32 %v645, %v947
  %v949 = vpop.f32.mrb[0].mxu0
  %v950 = vadd.f32 %v649, %v949
  %951 = vmatprep.mubr.bf16.mxu0 0
  %952 = vmatmul.mubr.bf16.gmra.mrb[0].mxu0 %v733
  %v953 = vpop.f32.mrb[0].mxu0
  %v954 = vadd.f32 %v645, %v953
  %v955 = vpop.f32.mrb[0].mxu0
  %v956 = vadd.f32 %v649, %v955
  %v957 = vpop.f32.mrb[0].mxu0
  %v958 = vadd.f32 %v645, %v957
  %v959 = vpop.f32.mrb[0].mxu0
  %v960 = vadd.f32 %v649, %v959
  %961 = vmatprep.mubr.bf16.mxu0 0
  %962 = vmatmul.mubr.bf16.gmra.mrb[0].mxu0 %v736
  %v963 = vpop.f32.mrb[0].mxu0
  %v964 = vadd.f32 %v645, %v963
  %v965 = vpop.f32.mrb[0].mxu0
  %v966 = vadd.f32 %v649, %v965
  %v967 = vpop.f32.mrb[0].mxu0
  %v968 = vadd.f32 %v645, %v967
  %v969 = vpop.f32.mrb[0].mxu0
  %v970 = vadd.f32 %v649, %v969
  %971 = vmatprep.mubr.bf16.mxu0 0
  %972 = vmatmul.mubr.bf16.gmra.mrb[0].mxu0 %v739
  %v973 = vpop.f32.mrb[0].mxu0
  %v974 = vadd.f32 %v645, %v973
  %v975 = vpop.f32.mrb[0].mxu0
  %v976 = vadd.f32 %v649, %v975
  %v977 = vpop.f32.mrb[0].mxu0
  %v978 = vadd.f32 %v645, %v977
  %v979 = vpop.f32.mrb[0].mxu0
  %v980 = vadd.f32 %v649, %v979
  %981 = vmatprep.mubr.bf16.mxu0 0
  %982 = vmatmul.mubr.bf16.gmra.mrb[0].mxu0 %v742
  %v983 = vpop.f32.mrb[0].mxu0
  %v984 = vadd.f32 %v645, %v983
  %v985 = vpop.f32.mrb[0].mxu0
  %v986 = vadd.f32 %v649, %v985
  %v987 = vpop.f32.mrb[0].mxu0
  %v988 = vadd.f32 %v645, %v987
  %v989 = vpop.f32.mrb[0].mxu0
  %v990 = vadd.f32 %v649, %v989
  %991 = vmatprep.mubr.bf16.mxu0 0
  %992 = vmatmul.mubr.bf16.gmra.mrb[0].mxu0 %v745
  %v993 = vpop.f32.mrb[0].mxu0
  %v994 = vadd.f32 %v645, %v993
  %v995 = vpop.f32.mrb[0].mxu0
  %v996 = vadd.f32 %v649, %v995
  %v997 = vpop.f32.mrb[0].mxu0
  %v998 = vadd.f32 %v645, %v997
  %v999 = vpop.f32.mrb[0].mxu0
  %v1000 = vadd.f32 %v649, %v999
  %1001 = vmatprep.mubr.bf16.mxu0 0
  %1002 = vmatmul.mubr.bf16.gmra.mrb[0].mxu0 %v748
  %v1003 = vpop.f32.mrb[0].mxu0
  %v1004 = vadd.f32 %v645, %v1003
  %v1005 = vpop.f32.mrb[0].mxu0
  %v1006 = vadd.f32 %v649, %v1005
  %v1007 = vpop.f32.mrb[0].mxu0
  %v1008 = vadd.f32 %v645, %v1007
  %v1009 = vpop.f32.mrb[0].mxu0
  %v1010 = vadd.f32 %v649, %v1009
  %1011 = vmatprep.mubr.bf16.mxu0 0
  %1012 = vmatmul.mubr.bf16.gmra.mrb[0].mxu0 %v751
  %v1013 = vpop.f32.mrb[0].mxu0
  %v1014 = vadd.f32 %v645, %v1013
  %v1015 = vpop.f32.mrb[0].mxu0
  %v1016 = vadd.f32 %v649, %v1015
  %v1017 = vpop.f32.mrb[0].mxu0
  %v1018 = vadd.f32 %v645, %v1017
  %v1019 = vpop.f32.mrb[0].mxu0
  %v1020 = vadd.f32 %v649, %v1019
  %1021 = vmatprep.mubr.bf16.mxu0 0
  %1022 = vmatmul.mubr.bf16.gmra.mrb[0].mxu0 %v754
  %v1023 = vpop.f32.mrb[0].mxu0
  %v1024 = vadd.f32 %v645, %v1023
  %v1025 = vpop.f32.mrb[0].mxu0
  %v1026 = vadd.f32 %v649, %v1025
  %v1027 = vpop.f32.mrb[0].mxu0
  %v1028 = vadd.f32 %v645, %v1027
  %v1029 = vpop.f32.mrb[0].mxu0
  %v1030 = vadd.f32 %v649, %v1029
  %1031 = vmatprep.mubr.bf16.mxu0 0
  %1032 = vmatmul.mubr.bf16.gmra.mrb[0].mxu0 %v757
  %v1033 = vpop.f32.mrb[0].mxu0
  %v1034 = vadd.f32 %v645, %v1033
  %v1035 = vpop.f32.mrb[0].mxu0
  %v1036 = vadd.f32 %v649, %v1035
  %v1037 = vpop.f32.mrb[0].mxu0
  %v1038 = vadd.f32 %v645, %v1037
  %v1039 = vpop.f32.mrb[0].mxu0
  %v1040 = vadd.f32 %v649, %v1039
  %1041 = vmatprep.mubr.bf16.mxu0 0
  %1042 = vmatmul.mubr.bf16.gmra.mrb[0].mxu0 %v760
  %v1043 = vpop.f32.mrb[0].mxu0
  %v1044 = vadd.f32 %v645, %v1043
  %v1045 = vpop.f32.mrb[0].mxu0
  %v1046 = vadd.f32 %v649, %v1045
  %v1047 = vpop.f32.mrb[0].mxu0
  %v1048 = vadd.f32 %v645, %v1047
  %v1049 = vpop.f32.mrb[0].mxu0
  %v1050 = vadd.f32 %v649, %v1049
  %1051 = vmatprep.mubr.bf16.mxu0 0
  %1052 = vmatmul.mubr.bf16.gmra.mrb[0].mxu0 %v763
  %v1053 = vpop.f32.mrb[0].mxu0
  %v1054 = vadd.f32 %v645, %v1053
  %v1055 = vpop.f32.mrb[0].mxu0
  %v1056 = vadd.f32 %v649, %v1055
  %v1057 = vpop.f32.mrb[0].mxu0
  %v1058 = vadd.f32 %v645, %v1057
  %v1059 = vpop.f32.mrb[0].mxu0
  %v1060 = vadd.f32 %v649, %v1059
  %1061 = vmatprep.mubr.bf16.mxu0 0
  %1062 = vmatmul.mubr.bf16.gmra.mrb[0].mxu0 %v766
  %v1063 = vpop.f32.mrb[0].mxu0
  %v1064 = vadd.f32 %v645, %v1063
  %v1065 = vpop.f32.mrb[0].mxu0
  %v1066 = vadd.f32 %v649, %v1065
  %v1067 = vpop.f32.mrb[0].mxu0
  %v1068 = vadd.f32 %v645, %v1067
  %v1069 = vpop.f32.mrb[0].mxu0
  %v1070 = vadd.f32 %v649, %v1069
  %1071 = vmatprep.mubr.bf16.mxu0 0
  %1072 = vmatmul.mubr.bf16.gmra.mrb[0].mxu0 %v769
  %v1073 = vpop.f32.mrb[0].mxu0
  %v1074 = vadd.f32 %v645, %v1073
  %v1075 = vpop.f32.mrb[0].mxu0
  %v1076 = vadd.f32 %v649, %v1075
  %v1077 = vpop.f32.mrb[0].mxu0
  %v1078 = vadd.f32 %v645, %v1077
  %v1079 = vpop.f32.mrb[0].mxu0
  %v1080 = vadd.f32 %v649, %v1079
  %1081 = vmatprep.mubr.bf16.mxu0 0
  %1082 = vmatmul.mubr.bf16.gmra.mrb[0].mxu0 %v772
  %v1083 = vpop.f32.mrb[0].mxu0
  %v1084 = vadd.f32 %v645, %v1083
  %v1085 = vpop.f32.mrb[0].mxu0
  %v1086 = vadd.f32 %v649, %v1085
  %v1087 = vpop.f32.mrb[0].mxu0
  %v1088 = vadd.f32 %v645, %v1087
  %v1089 = vpop.f32.mrb[0].mxu0
  %v1090 = vadd.f32 %v649, %v1089
  %1091 = vmatprep.mubr.bf16.mxu0 0
  %1092 = vmatmul.mubr.bf16.gmra.mrb[0].mxu0 %v775
  %v1093 = vpop.f32.mrb[0].mxu0
  %v1094 = vadd.f32 %v645, %v1093
  %v1095 = vpop.f32.mrb[0].mxu0
  %v1096 = vadd.f32 %v649, %v1095
  %v1097 = vpop.f32.mrb[0].mxu0
  %v1098 = vadd.f32 %v645, %v1097
  %v1099 = vpop.f32.mrb[0].mxu0
  %v1100 = vadd.f32 %v649, %v1099
  %1101 = vmatprep.mubr.bf16.mxu0 0
  %1102 = vmatmul.mubr.bf16.gmra.mrb[0].mxu0 %v778
  %v1103 = vpop.f32.mrb[0].mxu0
  %v1104 = vadd.f32 %v645, %v1103
  %v1105 = vpop.f32.mrb[0].mxu0
  %v1106 = vadd.f32 %v649, %v1105
  %v1107 = vpop.f32.mrb[0].mxu0
  %v1108 = vadd.f32 %v645, %v1107
  %v1109 = vpop.f32.mrb[0].mxu0
  %v1110 = vadd.f32 %v649, %v1109
  %1111 = vmatprep.mubr.bf16.mxu0 0
  %1112 = vmatmul.mubr.bf16.gmra.mrb[0].mxu0 %v781
  %v1113 = vpop.f32.mrb[0].mxu0
  %v1114 = vadd.f32 %v645, %v1113
  %v1115 = vpop.f32.mrb[0].mxu0
  %v1116 = vadd.f32 %v649, %v1115
  %v1117 = vpop.f32.mrb[0].mxu0
  %v1118 = vadd.f32 %v645, %v1117
  %v1119 = vpop.f32.mrb[0].mxu0
  %v1120 = vadd.f32 %v649, %v1119
  %1121 = vmatprep.mubr.bf16.mxu0 0
  %1122 = vmatmul.mubr.bf16.gmra.mrb[0].mxu0 %v784
  %v1123 = vpop.f32.mrb[0].mxu0
  %v1124 = vadd.f32 %v645, %v1123
  %v1125 = vpop.f32.mrb[0].mxu0
  %v1126 = vadd.f32 %v649, %v1125
  %v1127 = vpop.f32.mrb[0].mxu0
  %v1128 = vadd.f32 %v645, %v1127
  %v1129 = vpop.f32.mrb[0].mxu0
  %v1130 = vadd.f32 %v649, %v1129
  %1131 = vmatprep.mubr.bf16.mxu0 0
  %1132 = vmatmul.mubr.bf16.gmra.mrb[0].mxu0 %v787
  %v1133 = vpop.f32.mrb[0].mxu0
  %v1134 = vadd.f32 %v645, %v1133
  %v1135 = vpop.f32.mrb[0].mxu0
  %v1136 = vadd.f32 %v649, %v1135
  %v1137 = vpop.f32.mrb[0].mxu0
  %v1138 = vadd.f32 %v645, %v1137
  %v1139 = vpop.f32.mrb[0].mxu0
  %v1140 = vadd.f32 %v649, %v1139
  %1141 = vdwg.mxu0
  %v1142 = vtanh.pop %v824
  %v1143 = vtanh.pop %v826
  %v1144 = vtanh.pop %v828
  %v1145 = vtanh.pop %v830
  %v1146 = vtanh.pop %v834
  %v1147 = vtanh.pop %v836
  %v1148 = vtanh.pop %v838
  %v1149 = vtanh.pop %v840
  %v1150 = vtanh.pop %v844
  %v1151 = vtanh.pop %v846
  %v1152 = vtanh.pop %v848
  %v1153 = vtanh.pop %v850
  %v1154 = vtanh.pop %v854
  %v1155 = vtanh.pop %v856
  %v1156 = vtanh.pop %v858
  %v1157 = vtanh.pop %v860
  %v1158 = vtanh.pop %v864
  %v1159 = vtanh.pop %v866
  %v1160 = vtanh.pop %v868
  %v1161 = vtanh.pop %v870
  %v1162 = vtanh.pop %v874
  %v1163 = vtanh.pop %v876
  %v1164 = vtanh.pop %v878
  %v1165 = vtanh.pop %v880
  %v1166 = vtanh.pop %v884
  %v1167 = vtanh.pop %v886
  %v1168 = vtanh.pop %v888
  %v1169 = vtanh.pop %v890
  %v1170 = vtanh.pop %v894
  %v1171 = vtanh.pop %v896
  %v1172 = vtanh.pop %v898
  %v1173 = vtanh.pop %v900
  %v1174 = vtanh.pop %v904
  %v1175 = vtanh.pop %v906
  %v1176 = vtanh.pop %v908
  %v1177 = vtanh.pop %v910
  %v1178 = vtanh.pop %v914
  %v1179 = vtanh.pop %v916
  %v1180 = vtanh.pop %v918
  %v1181 = vtanh.pop %v920
  %v1182 = vtanh.pop %v924
  %v1183 = vtanh.pop %v926
  %v1184 = vtanh.pop %v928
  %v1185 = vtanh.pop %v930
  %v1186 = vtanh.pop %v934
  %v1187 = vtanh.pop %v936
  %v1188 = vtanh.pop %v938
  %v1189 = vtanh.pop %v940
  %v1190 = vtanh.pop %v944
  %v1191 = vtanh.pop %v946
  %v1192 = vtanh.pop %v948
  %v1193 = vtanh.pop %v950
  %v1194 = vtanh.pop %v954
  %v1195 = vtanh.pop %v956
  %v1196 = vtanh.pop %v958
  %v1197 = vtanh.pop %v960
  %v1198 = vtanh.pop %v964
  %v1199 = vtanh.pop %v966
  %v1200 = vtanh.pop %v968
  %v1201 = vtanh.pop %v970
  %v1202 = vtanh.pop %v974
  %v1203 = vtanh.pop %v976
  %v1204 = vtanh.pop %v978
  %v1205 = vtanh.pop %v980
  %v1206 = vtanh.pop %v984
  %v1207 = vtanh.pop %v986
  %v1208 = vtanh.pop %v988
  %v1209 = vtanh.pop %v990
  %v1210 = vtanh.pop %v994
  %v1211 = vtanh.pop %v996
  %v1212 = vtanh.pop %v998
  %v1213 = vtanh.pop %v1000
  %v1214 = vtanh.pop %v1004
  %v1215 = vtanh.pop %v1006
  %v1216 = vtanh.pop %v1008
  %v1217 = vtanh.pop %v1010
  %v1218 = vtanh.pop %v1014
  %v1219 = vtanh.pop %v1016
  %v1220 = vtanh.pop %v1018
  %v1221 = vtanh.pop %v1020
  %v1222 = vtanh.pop %v1024
  %v1223 = vtanh.pop %v1026
  %v1224 = vtanh.pop %v1028
  %v1225 = vtanh.pop %v1030
  %v1226 = vtanh.pop %v1034
  %v1227 = vtanh.pop %v1036
  %v1228 = vtanh.pop %v1038
  %v1229 = vtanh.pop %v1040
  %v1230 = vtanh.pop %v1044
  %v1231 = vtanh.pop %v1046
  %v1232 = vtanh.pop %v1048
  %v1233 = vtanh.pop %v1050
  %v1234 = vtanh.pop %v1054
  %v1235 = vtanh.pop %v1056
  %v1236 = vtanh.pop %v1058
  %v1237 = vtanh.pop %v1060
  %v1238 = vtanh.pop %v1064
  %v1239 = vtanh.pop %v1066
  %v1240 = vtanh.pop %v1068
  %v1241 = vtanh.pop %v1070
  %v1242 = vtanh.pop %v1074
  %v1243 = vtanh.pop %v1076
  %v1244 = vtanh.pop %v1078
  %v1245 = vtanh.pop %v1080
  %v1246 = vtanh.pop %v1084
  %v1247 = vtanh.pop %v1086
  %v1248 = vtanh.pop %v1088
  %v1249 = vtanh.pop %v1090
  %v1250 = vtanh.pop %v1094
  %v1251 = vtanh.pop %v1096
  %v1252 = vtanh.pop %v1098
  %v1253 = vtanh.pop %v1100
  %v1254 = vtanh.pop %v1104
  %v1255 = vtanh.pop %v1106
  %v1256 = vtanh.pop %v1108
  %v1257 = vtanh.pop %v1110
  %v1258 = vtanh.pop %v1114
  %v1259 = vtanh.pop %v1116
  %v1260 = vtanh.pop %v1118
  %v1261 = vtanh.pop %v1120
  %v1262 = vtanh.pop %v1124
  %v1263 = vtanh.pop %v1126
  %v1264 = vtanh.pop %v1128
  %v1265 = vtanh.pop %v1130
  %v1266 = vtanh.pop %v1134
  %v1267 = vtanh.pop %v1136
  %v1268 = vtanh.pop %v1138
  %v1269 = vtanh.pop %v1140
  %v1270 = vpack.c.bf16 %v1144, %v1142
  %v1271 = vpack.c.bf16 %v1145, %v1143
  %v1272 = vpack.c.bf16 %v1148, %v1146
  %v1273 = vpack.c.bf16 %v1149, %v1147
  %v1274 = vpack.c.bf16 %v1152, %v1150
  %v1275 = vpack.c.bf16 %v1153, %v1151
  %v1276 = vpack.c.bf16 %v1156, %v1154
  %v1277 = vpack.c.bf16 %v1157, %v1155
  %v1278 = vpack.c.bf16 %v1160, %v1158
  %v1279 = vpack.c.bf16 %v1161, %v1159
  %v1280 = vpack.c.bf16 %v1164, %v1162
  %v1281 = vpack.c.bf16 %v1165, %v1163
  %v1282 = vpack.c.bf16 %v1168, %v1166
  %v1283 = vpack.c.bf16 %v1169, %v1167
  %v1284 = vpack.c.bf16 %v1172, %v1170
  %v1285 = vpack.c.bf16 %v1173, %v1171
  %v1286 = vpack.c.bf16 %v1176, %v1174
  %v1287 = vpack.c.bf16 %v1177, %v1175
  %v1288 = vpack.c.bf16 %v1180, %v1178
  %v1289 = vpack.c.bf16 %v1181, %v1179
  %v1290 = vpack.c.bf16 %v1184, %v1182
  %v1291 = vpack.c.bf16 %v1185, %v1183
  %v1292 = vpack.c.bf16 %v1188, %v1186
  %v1293 = vpack.c.bf16 %v1189, %v1187
  %v1294 = vpack.c.bf16 %v1192, %v1190
  %v1295 = vpack.c.bf16 %v1193, %v1191
  %v1296 = vpack.c.bf16 %v1196, %v1194
  %v1297 = vpack.c.bf16 %v1197, %v1195
  %v1298 = vpack.c.bf16 %v1200, %v1198
  %v1299 = vpack.c.bf16 %v1201, %v1199
  %v1300 = vpack.c.bf16 %v1204, %v1202
  %v1301 = vpack.c.bf16 %v1205, %v1203
  %v1302 = vpack.c.bf16 %v1208, %v1206
  %v1303 = vpack.c.bf16 %v1209, %v1207
  %v1304 = vpack.c.bf16 %v1212, %v1210
  %v1305 = vpack.c.bf16 %v1213, %v1211
  %v1306 = vpack.c.bf16 %v1216, %v1214
  %v1307 = vpack.c.bf16 %v1217, %v1215
  %v1308 = vpack.c.bf16 %v1220, %v1218
  %v1309 = vpack.c.bf16 %v1221, %v1219
  %v1310 = vpack.c.bf16 %v1224, %v1222
  %v1311 = vpack.c.bf16 %v1225, %v1223
  %v1312 = vpack.c.bf16 %v1228, %v1226
  %v1313 = vpack.c.bf16 %v1229, %v1227
  %v1314 = vpack.c.bf16 %v1232, %v1230
  %v1315 = vpack.c.bf16 %v1233, %v1231
  %v1316 = vpack.c.bf16 %v1236, %v1234
  %v1317 = vpack.c.bf16 %v1237, %v1235
  %v1318 = vpack.c.bf16 %v1240, %v1238
  %v1319 = vpack.c.bf16 %v1241, %v1239
  %v1320 = vpack.c.bf16 %v1244, %v1242
  %v1321 = vpack.c.bf16 %v1245, %v1243
  %v1322 = vpack.c.bf16 %v1248, %v1246
  %v1323 = vpack.c.bf16 %v1249, %v1247
  %v1324 = vpack.c.bf16 %v1252, %v1250
  %v1325 = vpack.c.bf16 %v1253, %v1251
  %v1326 = vpack.c.bf16 %v1256, %v1254
  %v1327 = vpack.c.bf16 %v1257, %v1255
  %v1328 = vpack.c.bf16 %v1260, %v1258
  %v1329 = vpack.c.bf16 %v1261, %v1259
  %v1330 = vpack.c.bf16 %v1264, %v1262
  %v1331 = vpack.c.bf16 %v1265, %v1263
  %v1332 = vpack.c.bf16 %v1268, %v1266
  %v1333 = vpack.c.bf16 %v1269, %v1267
  %v1334 = vld [vmem:[%s3] sm:$0xf]
  %v1335 = vld [vmem:[%s3 + $0x4] sm:$0xf]
  %v1336 = vld [vmem:[%s3 + $0x8] sm:$0xf]
  %v1337 = vld [vmem:[%s3 + $0xc] sm:$0xf]
  %v1338 = vld [vmem:[%s3 + $0x10] sm:$0xf]
  %v1339 = vld [vmem:[%s3 + $0x14] sm:$0xf]
  %v1340 = vld [vmem:[%s3 + $0x18] sm:$0xf]
  %v1341 = vld [vmem:[%s3 + $0x1c] sm:$0xf]
  %v1342 = vld [vmem:[%s3 + $0x20] sm:$0xf]
  %v1343 = vld [vmem:[%s3 + $0x24] sm:$0xf]
  %v1344 = vld [vmem:[%s3 + $0x28] sm:$0xf]
  %v1345 = vld [vmem:[%s3 + $0x2c] sm:$0xf]
  %v1346 = vld [vmem:[%s3 + $0x30] sm:$0xf]
  %v1347 = vld [vmem:[%s3 + $0x34] sm:$0xf]
  %v1348 = vld [vmem:[%s3 + $0x38] sm:$0xf]
  %v1349 = vld [vmem:[%s3 + $0x3c] sm:$0xf]
  %v1350 = vld [vmem:[%s3 + $0x40] sm:$0xf]
  %v1351 = vld [vmem:[%s3 + $0x44] sm:$0xf]
  %v1352 = vld [vmem:[%s3 + $0x48] sm:$0xf]
  %v1353 = vld [vmem:[%s3 + $0x4c] sm:$0xf]
  %v1354 = vld [vmem:[%s3 + $0x50] sm:$0xf]
  %v1355 = vld [vmem:[%s3 + $0x54] sm:$0xf]
  %v1356 = vld [vmem:[%s3 + $0x58] sm:$0xf]
  %v1357 = vld [vmem:[%s3 + $0x5c] sm:$0xf]
  %v1358 = vld [vmem:[%s3 + $0x60] sm:$0xf]
  %v1359 = vld [vmem:[%s3 + $0x64] sm:$0xf]
  %v1360 = vld [vmem:[%s3 + $0x68] sm:$0xf]
  %v1361 = vld [vmem:[%s3 + $0x6c] sm:$0xf]
  %v1362 = vld [vmem:[%s3 + $0x70] sm:$0xf]
  %v1363 = vld [vmem:[%s3 + $0x74] sm:$0xf]
  %v1364 = vld [vmem:[%s3 + $0x78] sm:$0xf]
  %v1365 = vld [vmem:[%s3 + $0x7c] sm:$0xf]
  %v1366 = vld [vmem:[%s9 + $0x2] ss:$0 sm:$0xff]
  %v1399 = vunpack.c.l.b16 %v1334
  %v1400 = vunpack.c.l.b16 %v1335
  %v1401 = vunpack.c.l.b16 %v1336
  %v1402 = vunpack.c.l.b16 %v1337
  %v1403 = vunpack.c.l.b16 %v1338
  %v1404 = vunpack.c.l.b16 %v1339
  %v1405 = vunpack.c.l.b16 %v1340
  %v1406 = vunpack.c.l.b16 %v1341
  %v1407 = vunpack.c.l.b16 %v1342
  %v1408 = vunpack.c.l.b16 %v1343
  %v1409 = vunpack.c.l.b16 %v1344
  %v1410 = vunpack.c.l.b16 %v1345
  %v1411 = vunpack.c.l.b16 %v1346
  %v1412 = vunpack.c.l.b16 %v1347
  %v1413 = vunpack.c.l.b16 %v1348
  %v1414 = vunpack.c.l.b16 %v1349
  %v1415 = vunpack.c.l.b16 %v1350
  %v1416 = vunpack.c.l.b16 %v1351
  %v1417 = vunpack.c.l.b16 %v1352
  %v1418 = vunpack.c.l.b16 %v1353
  %v1419 = vunpack.c.l.b16 %v1354
  %v1420 = vunpack.c.l.b16 %v1355
  %v1421 = vunpack.c.l.b16 %v1356
  %v1422 = vunpack.c.l.b16 %v1357
  %v1423 = vunpack.c.l.b16 %v1358
  %v1424 = vunpack.c.l.b16 %v1359
  %v1425 = vunpack.c.l.b16 %v1360
  %v1426 = vunpack.c.l.b16 %v1361
  %v1427 = vunpack.c.l.b16 %v1362
  %v1428 = vunpack.c.l.b16 %v1363
  %v1429 = vunpack.c.l.b16 %v1364
  %v1430 = vunpack.c.l.b16 %v1365
  %v1431 = vpack.c.b16 %v1400, %v1399
  %v1432 = vpack.c.b16 %v1402, %v1401
  %v1433 = vpack.c.b16 %v1404, %v1403
  %v1434 = vpack.c.b16 %v1406, %v1405
  %v1435 = vpack.c.b16 %v1408, %v1407
  %v1436 = vpack.c.b16 %v1410, %v1409
  %v1437 = vpack.c.b16 %v1412, %v1411
  %v1438 = vpack.c.b16 %v1414, %v1413
  %v1439 = vpack.c.b16 %v1416, %v1415
  %v1440 = vpack.c.b16 %v1418, %v1417
  %v1441 = vpack.c.b16 %v1420, %v1419
  %v1442 = vpack.c.b16 %v1422, %v1421
  %v1443 = vpack.c.b16 %v1424, %v1423
  %v1444 = vpack.c.b16 %v1426, %v1425
  %v1445 = vpack.c.b16 %v1428, %v1427
  %v1446 = vpack.c.b16 %v1430, %v1429
  %1463 = vmatprep.subr.bf16.mxu0 0
  %1464 = vmatpush1.bf16.msra.mxu0 %v1431
  %1465 = vmatprep.subr.bf16.mxu0 0
  %1466 = vmatpush1.bf16.msra.mxu0 %v1432
  %1467 = vmatprep.subr.bf16.mxu0 0
  %1468 = vmatpush1.bf16.msra.mxu0 %v1433
  %1469 = vmatprep.subr.bf16.mxu0 0
  %1470 = vmatpush1.bf16.msra.mxu0 %v1434
  %1471 = vmatprep.subr.bf16.mxu0 0
  %1472 = vmatpush1.bf16.msra.mxu0 %v1435
  %1473 = vmatprep.subr.bf16.mxu0 0
  %1474 = vmatpush1.bf16.msra.mxu0 %v1436
  %1475 = vmatprep.subr.bf16.mxu0 0
  %1476 = vmatpush1.bf16.msra.mxu0 %v1437
  %1477 = vmatprep.subr.bf16.mxu0 0
  %1478 = vmatpush1.bf16.msra.mxu0 %v1438
  %1479 = vmatprep.subr.bf16.mxu0 0
  %1480 = vmatpush1.bf16.msra.mxu0 %v1439
  %1481 = vmatprep.subr.bf16.mxu0 0
  %1482 = vmatpush1.bf16.msra.mxu0 %v1440
  %1483 = vmatprep.subr.bf16.mxu0 0
  %1484 = vmatpush1.bf16.msra.mxu0 %v1441
  %1485 = vmatprep.subr.bf16.mxu0 0
  %1486 = vmatpush1.bf16.msra.mxu0 %v1442
  %1487 = vmatprep.subr.bf16.mxu0 0
  %1488 = vmatpush1.bf16.msra.mxu0 %v1443
  %1489 = vmatprep.subr.bf16.mxu0 0
  %1490 = vmatpush1.bf16.msra.mxu0 %v1444
  %1491 = vmatprep.subr.bf16.mxu0 0
  %1492 = vmatpush1.bf16.msra.mxu0 %v1445
  %1493 = vmatprep.subr.bf16.mxu0 0
  %1494 = vmatpush1.bf16.msra.mxu0 %v1446
  %1495 = vmatprep.mubr.bf16.mxu0 %v1271
  %1496 = vmatmul.mubr.bf16.gmra.mrb[0].mxu0 %v1270
  %v1497 = vpop.f32.mrb[0].mxu0
  %v1498 = vadd.f32 %v1366, %v1497
  %v1499 = vpop.f32.mrb[0].mxu0
  %v1500 = vpop.f32.mrb[0].mxu0
  %v1501 = vadd.f32 %v1366, %v1500
  %v1502 = vpop.f32.mrb[0].mxu0
  %1503 = vmatprep.mubr.bf16.mxu0 %v1273
  %1504 = vmatmul.mubr.bf16.gmra.mrb[0].mxu0 %v1272
  %v1505 = vpop.f32.mrb[0].mxu0
  %v1506 = vadd.f32 %v1366, %v1505
  %v1507 = vpop.f32.mrb[0].mxu0
  %v1508 = vpop.f32.mrb[0].mxu0
  %v1509 = vadd.f32 %v1366, %v1508
  %v1510 = vpop.f32.mrb[0].mxu0
  %1511 = vmatprep.mubr.bf16.mxu0 %v1275
  %1512 = vmatmul.mubr.bf16.gmra.mrb[0].mxu0 %v1274
  %v1513 = vpop.f32.mrb[0].mxu0
  %v1514 = vadd.f32 %v1366, %v1513
  %v1515 = vpop.f32.mrb[0].mxu0
  %v1516 = vpop.f32.mrb[0].mxu0
  %v1517 = vadd.f32 %v1366, %v1516
  %v1518 = vpop.f32.mrb[0].mxu0
  %1519 = vmatprep.mubr.bf16.mxu0 %v1277
  %1520 = vmatmul.mubr.bf16.gmra.mrb[0].mxu0 %v1276
  %v1521 = vpop.f32.mrb[0].mxu0
  %v1522 = vadd.f32 %v1366, %v1521
  %v1523 = vpop.f32.mrb[0].mxu0
  %v1524 = vpop.f32.mrb[0].mxu0
  %v1525 = vadd.f32 %v1366, %v1524
  %v1526 = vpop.f32.mrb[0].mxu0
  %1527 = vmatprep.mubr.bf16.mxu0 %v1279
  %1528 = vmatmul.mubr.bf16.gmra.mrb[0].mxu0 %v1278
  %v1529 = vpop.f32.mrb[0].mxu0
  %v1530 = vadd.f32 %v1366, %v1529
  %v1531 = vpop.f32.mrb[0].mxu0
  %v1532 = vpop.f32.mrb[0].mxu0
  %v1533 = vadd.f32 %v1366, %v1532
  %v1534 = vpop.f32.mrb[0].mxu0
  %1535 = vmatprep.mubr.bf16.mxu0 %v1281
  %1536 = vmatmul.mubr.bf16.gmra.mrb[0].mxu0 %v1280
  %v1537 = vpop.f32.mrb[0].mxu0
  %v1538 = vadd.f32 %v1366, %v1537
  %v1539 = vpop.f32.mrb[0].mxu0
  %v1540 = vpop.f32.mrb[0].mxu0
  %v1541 = vadd.f32 %v1366, %v1540
  %v1542 = vpop.f32.mrb[0].mxu0
  %1543 = vmatprep.mubr.bf16.mxu0 %v1283
  %1544 = vmatmul.mubr.bf16.gmra.mrb[0].mxu0 %v1282
  %v1545 = vpop.f32.mrb[0].mxu0
  %v1546 = vadd.f32 %v1366, %v1545
  %v1547 = vpop.f32.mrb[0].mxu0
  %v1548 = vpop.f32.mrb[0].mxu0
  %v1549 = vadd.f32 %v1366, %v1548
  %v1550 = vpop.f32.mrb[0].mxu0
  %1551 = vmatprep.mubr.bf16.mxu0 %v1285
  %1552 = vmatmul.mubr.bf16.gmra.mrb[0].mxu0 %v1284
  %v1553 = vpop.f32.mrb[0].mxu0
  %v1554 = vadd.f32 %v1366, %v1553
  %v1555 = vpop.f32.mrb[0].mxu0
  %v1556 = vpop.f32.mrb[0].mxu0
  %v1557 = vadd.f32 %v1366, %v1556
  %v1558 = vpop.f32.mrb[0].mxu0
  %1559 = vmatprep.mubr.bf16.mxu0 %v1287
  %1560 = vmatmul.mubr.bf16.gmra.mrb[0].mxu0 %v1286
  %v1561 = vpop.f32.mrb[0].mxu0
  %v1562 = vadd.f32 %v1366, %v1561
  %v1563 = vpop.f32.mrb[0].mxu0
  %v1564 = vpop.f32.mrb[0].mxu0
  %v1565 = vadd.f32 %v1366, %v1564
  %v1566 = vpop.f32.mrb[0].mxu0
  %1567 = vmatprep.mubr.bf16.mxu0 %v1289
  %1568 = vmatmul.mubr.bf16.gmra.mrb[0].mxu0 %v1288
  %v1569 = vpop.f32.mrb[0].mxu0
  %v1570 = vadd.f32 %v1366, %v1569
  %v1571 = vpop.f32.mrb[0].mxu0
  %v1572 = vpop.f32.mrb[0].mxu0
  %v1573 = vadd.f32 %v1366, %v1572
  %v1574 = vpop.f32.mrb[0].mxu0
  %1575 = vmatprep.mubr.bf16.mxu0 %v1291
  %1576 = vmatmul.mubr.bf16.gmra.mrb[0].mxu0 %v1290
  %v1577 = vpop.f32.mrb[0].mxu0
  %v1578 = vadd.f32 %v1366, %v1577
  %v1579 = vpop.f32.mrb[0].mxu0
  %v1580 = vpop.f32.mrb[0].mxu0
  %v1581 = vadd.f32 %v1366, %v1580
  %v1582 = vpop.f32.mrb[0].mxu0
  %1583 = vmatprep.mubr.bf16.mxu0 %v1293
  %1584 = vmatmul.mubr.bf16.gmra.mrb[0].mxu0 %v1292
  %v1585 = vpop.f32.mrb[0].mxu0
  %v1586 = vadd.f32 %v1366, %v1585
  %v1587 = vpop.f32.mrb[0].mxu0
  %v1588 = vpop.f32.mrb[0].mxu0
  %v1589 = vadd.f32 %v1366, %v1588
  %v1590 = vpop.f32.mrb[0].mxu0
  %1591 = vmatprep.mubr.bf16.mxu0 %v1295
  %1592 = vmatmul.mubr.bf16.gmra.mrb[0].mxu0 %v1294
  %v1593 = vpop.f32.mrb[0].mxu0
  %v1594 = vadd.f32 %v1366, %v1593
  %v1595 = vpop.f32.mrb[0].mxu0
  %v1596 = vpop.f32.mrb[0].mxu0
  %v1597 = vadd.f32 %v1366, %v1596
  %v1598 = vpop.f32.mrb[0].mxu0
  %1599 = vmatprep.mubr.bf16.mxu0 %v1297
  %1600 = vmatmul.mubr.bf16.gmra.mrb[0].mxu0 %v1296
  %v1601 = vpop.f32.mrb[0].mxu0
  %v1602 = vadd.f32 %v1366, %v1601
  %v1603 = vpop.f32.mrb[0].mxu0
  %v1604 = vpop.f32.mrb[0].mxu0
  %v1605 = vadd.f32 %v1366, %v1604
  %v1606 = vpop.f32.mrb[0].mxu0
  %1607 = vmatprep.mubr.bf16.mxu0 %v1299
  %1608 = vmatmul.mubr.bf16.gmra.mrb[0].mxu0 %v1298
  %v1609 = vpop.f32.mrb[0].mxu0
  %v1610 = vadd.f32 %v1366, %v1609
  %v1611 = vpop.f32.mrb[0].mxu0
  %v1612 = vpop.f32.mrb[0].mxu0
  %v1613 = vadd.f32 %v1366, %v1612
  %v1614 = vpop.f32.mrb[0].mxu0
  %1615 = vmatprep.mubr.bf16.mxu0 %v1301
  %1616 = vmatmul.mubr.bf16.gmra.mrb[0].mxu0 %v1300
  %v1617 = vpop.f32.mrb[0].mxu0
  %v1618 = vadd.f32 %v1366, %v1617
  %v1619 = vpop.f32.mrb[0].mxu0
  %v1620 = vpop.f32.mrb[0].mxu0
  %v1621 = vadd.f32 %v1366, %v1620
  %v1622 = vpop.f32.mrb[0].mxu0
  %1623 = vmatprep.mubr.bf16.mxu0 %v1303
  %1624 = vmatmul.mubr.bf16.gmra.mrb[0].mxu0 %v1302
  %v1625 = vpop.f32.mrb[0].mxu0
  %v1626 = vadd.f32 %v1366, %v1625
  %v1627 = vpop.f32.mrb[0].mxu0
  %v1628 = vpop.f32.mrb[0].mxu0
  %v1629 = vadd.f32 %v1366, %v1628
  %v1630 = vpop.f32.mrb[0].mxu0
  %1631 = vmatprep.mubr.bf16.mxu0 %v1305
  %1632 = vmatmul.mubr.bf16.gmra.mrb[0].mxu0 %v1304
  %v1633 = vpop.f32.mrb[0].mxu0
  %v1634 = vadd.f32 %v1366, %v1633
  %v1635 = vpop.f32.mrb[0].mxu0
  %v1636 = vpop.f32.mrb[0].mxu0
  %v1637 = vadd.f32 %v1366, %v1636
  %v1638 = vpop.f32.mrb[0].mxu0
  %1639 = vmatprep.mubr.bf16.mxu0 %v1307
  %1640 = vmatmul.mubr.bf16.gmra.mrb[0].mxu0 %v1306
  %v1641 = vpop.f32.mrb[0].mxu0
  %v1642 = vadd.f32 %v1366, %v1641
  %v1643 = vpop.f32.mrb[0].mxu0
  %v1644 = vpop.f32.mrb[0].mxu0
  %v1645 = vadd.f32 %v1366, %v1644
  %v1646 = vpop.f32.mrb[0].mxu0
  %1647 = vmatprep.mubr.bf16.mxu0 %v1309
  %1648 = vmatmul.mubr.bf16.gmra.mrb[0].mxu0 %v1308
  %v1649 = vpop.f32.mrb[0].mxu0
  %v1650 = vadd.f32 %v1366, %v1649
  %v1651 = vpop.f32.mrb[0].mxu0
  %v1652 = vpop.f32.mrb[0].mxu0
  %v1653 = vadd.f32 %v1366, %v1652
  %v1654 = vpop.f32.mrb[0].mxu0
  %1655 = vmatprep.mubr.bf16.mxu0 %v1311
  %1656 = vmatmul.mubr.bf16.gmra.mrb[0].mxu0 %v1310
  %v1657 = vpop.f32.mrb[0].mxu0
  %v1658 = vadd.f32 %v1366, %v1657
  %v1659 = vpop.f32.mrb[0].mxu0
  %v1660 = vpop.f32.mrb[0].mxu0
  %v1661 = vadd.f32 %v1366, %v1660
  %v1662 = vpop.f32.mrb[0].mxu0
  %1663 = vmatprep.mubr.bf16.mxu0 %v1313
  %1664 = vmatmul.mubr.bf16.gmra.mrb[0].mxu0 %v1312
  %v1665 = vpop.f32.mrb[0].mxu0
  %v1666 = vadd.f32 %v1366, %v1665
  %v1667 = vpop.f32.mrb[0].mxu0
  %v1668 = vpop.f32.mrb[0].mxu0
  %v1669 = vadd.f32 %v1366, %v1668
  %v1670 = vpop.f32.mrb[0].mxu0
  %1671 = vmatprep.mubr.bf16.mxu0 %v1315
  %1672 = vmatmul.mubr.bf16.gmra.mrb[0].mxu0 %v1314
  %v1673 = vpop.f32.mrb[0].mxu0
  %v1674 = vadd.f32 %v1366, %v1673
  %v1675 = vpop.f32.mrb[0].mxu0
  %v1676 = vpop.f32.mrb[0].mxu0
  %v1677 = vadd.f32 %v1366, %v1676
  %v1678 = vpop.f32.mrb[0].mxu0
  %1679 = vmatprep.mubr.bf16.mxu0 %v1317
  %1680 = vmatmul.mubr.bf16.gmra.mrb[0].mxu0 %v1316
  %v1681 = vpop.f32.mrb[0].mxu0
  %v1682 = vadd.f32 %v1366, %v1681
  %v1683 = vpop.f32.mrb[0].mxu0
  %v1684 = vpop.f32.mrb[0].mxu0
  %v1685 = vadd.f32 %v1366, %v1684
  %v1686 = vpop.f32.mrb[0].mxu0
  %1687 = vmatprep.mubr.bf16.mxu0 %v1319
  %1688 = vmatmul.mubr.bf16.gmra.mrb[0].mxu0 %v1318
  %v1689 = vpop.f32.mrb[0].mxu0
  %v1690 = vadd.f32 %v1366, %v1689
  %v1691 = vpop.f32.mrb[0].mxu0
  %v1692 = vpop.f32.mrb[0].mxu0
  %v1693 = vadd.f32 %v1366, %v1692
  %v1694 = vpop.f32.mrb[0].mxu0
  %1695 = vmatprep.mubr.bf16.mxu0 %v1321
  %1696 = vmatmul.mubr.bf16.gmra.mrb[0].mxu0 %v1320
  %v1697 = vpop.f32.mrb[0].mxu0
  %v1698 = vadd.f32 %v1366, %v1697
  %v1699 = vpop.f32.mrb[0].mxu0
  %v1700 = vpop.f32.mrb[0].mxu0
  %v1701 = vadd.f32 %v1366, %v1700
  %v1702 = vpop.f32.mrb[0].mxu0
  %1703 = vmatprep.mubr.bf16.mxu0 %v1323
  %1704 = vmatmul.mubr.bf16.gmra.mrb[0].mxu0 %v1322
  %v1705 = vpop.f32.mrb[0].mxu0
  %v1706 = vadd.f32 %v1366, %v1705
  %v1707 = vpop.f32.mrb[0].mxu0
  %v1708 = vpop.f32.mrb[0].mxu0
  %v1709 = vadd.f32 %v1366, %v1708
  %v1710 = vpop.f32.mrb[0].mxu0
  %1711 = vmatprep.mubr.bf16.mxu0 %v1325
  %1712 = vmatmul.mubr.bf16.gmra.mrb[0].mxu0 %v1324
  %v1713 = vpop.f32.mrb[0].mxu0
  %v1714 = vadd.f32 %v1366, %v1713
  %v1715 = vpop.f32.mrb[0].mxu0
  %v1716 = vpop.f32.mrb[0].mxu0
  %v1717 = vadd.f32 %v1366, %v1716
  %v1718 = vpop.f32.mrb[0].mxu0
  %1719 = vmatprep.mubr.bf16.mxu0 %v1327
  %1720 = vmatmul.mubr.bf16.gmra.mrb[0].mxu0 %v1326
  %v1721 = vpop.f32.mrb[0].mxu0
  %v1722 = vadd.f32 %v1366, %v1721
  %v1723 = vpop.f32.mrb[0].mxu0
  %v1724 = vpop.f32.mrb[0].mxu0
  %v1725 = vadd.f32 %v1366, %v1724
  %v1726 = vpop.f32.mrb[0].mxu0
  %1727 = vmatprep.mubr.bf16.mxu0 %v1329
  %1728 = vmatmul.mubr.bf16.gmra.mrb[0].mxu0 %v1328
  %v1729 = vpop.f32.mrb[0].mxu0
  %v1730 = vadd.f32 %v1366, %v1729
  %v1731 = vpop.f32.mrb[0].mxu0
  %v1732 = vpop.f32.mrb[0].mxu0
  %v1733 = vadd.f32 %v1366, %v1732
  %v1734 = vpop.f32.mrb[0].mxu0
  %1735 = vmatprep.mubr.bf16.mxu0 %v1331
  %1736 = vmatmul.mubr.bf16.gmra.mrb[0].mxu0 %v1330
  %v1737 = vpop.f32.mrb[0].mxu0
  %v1738 = vadd.f32 %v1366, %v1737
  %v1739 = vpop.f32.mrb[0].mxu0
  %v1740 = vpop.f32.mrb[0].mxu0
  %v1741 = vadd.f32 %v1366, %v1740
  %v1742 = vpop.f32.mrb[0].mxu0
  %1743 = vmatprep.mubr.bf16.mxu0 %v1333
  %1744 = vmatmul.mubr.bf16.gmra.mrb[0].mxu0 %v1332
  %v1745 = vpop.f32.mrb[0].mxu0
  %v1746 = vadd.f32 %v1366, %v1745
  %v1747 = vpop.f32.mrb[0].mxu0
  %v1748 = vpop.f32.mrb[0].mxu0
  %v1749 = vadd.f32 %v1366, %v1748
  %v1750 = vpop.f32.mrb[0].mxu0
  %1751 = vdwg.mxu0
  %v1752 = vtanh.pop %v1498
  %v1753 = vtanh.pop %v1501
  %v1754 = vtanh.pop %v1506
  %v1755 = vtanh.pop %v1509
  %v1756 = vtanh.pop %v1514
  %v1757 = vtanh.pop %v1517
  %v1758 = vtanh.pop %v1522
  %v1759 = vtanh.pop %v1525
  %v1760 = vtanh.pop %v1530
  %v1761 = vtanh.pop %v1533
  %v1762 = vtanh.pop %v1538
  %v1763 = vtanh.pop %v1541
  %v1764 = vtanh.pop %v1546
  %v1765 = vtanh.pop %v1549
  %v1766 = vtanh.pop %v1554
  %v1767 = vtanh.pop %v1557
  %v1768 = vtanh.pop %v1562
  %v1769 = vtanh.pop %v1565
  %v1770 = vtanh.pop %v1570
  %v1771 = vtanh.pop %v1573
  %v1772 = vtanh.pop %v1578
  %v1773 = vtanh.pop %v1581
  %v1774 = vtanh.pop %v1586
  %v1775 = vtanh.pop %v1589
  %v1776 = vtanh.pop %v1594
  %v1777 = vtanh.pop %v1597
  %v1778 = vtanh.pop %v1602
  %v1779 = vtanh.pop %v1605
  %v1780 = vtanh.pop %v1610
  %v1781 = vtanh.pop %v1613
  %v1782 = vtanh.pop %v1618
  %v1783 = vtanh.pop %v1621
  %v1784 = vtanh.pop %v1626
  %v1785 = vtanh.pop %v1629
  %v1786 = vtanh.pop %v1634
  %v1787 = vtanh.pop %v1637
  %v1788 = vtanh.pop %v1642
  %v1789 = vtanh.pop %v1645
  %v1790 = vtanh.pop %v1650
  %v1791 = vtanh.pop %v1653
  %v1792 = vtanh.pop %v1658
  %v1793 = vtanh.pop %v1661
  %v1794 = vtanh.pop %v1666
  %v1795 = vtanh.pop %v1669
  %v1796 = vtanh.pop %v1674
  %v1797 = vtanh.pop %v1677
  %v1798 = vtanh.pop %v1682
  %v1799 = vtanh.pop %v1685
  %v1800 = vtanh.pop %v1690
  %v1801 = vtanh.pop %v1693
  %v1802 = vtanh.pop %v1698
  %v1803 = vtanh.pop %v1701
  %v1804 = vtanh.pop %v1706
  %v1805 = vtanh.pop %v1709
  %v1806 = vtanh.pop %v1714
  %v1807 = vtanh.pop %v1717
  %v1808 = vtanh.pop %v1722
  %v1809 = vtanh.pop %v1725
  %v1810 = vtanh.pop %v1730
  %v1811 = vtanh.pop %v1733
  %v1812 = vtanh.pop %v1738
  %v1813 = vtanh.pop %v1741
  %v1814 = vtanh.pop %v1746
  %v1815 = vtanh.pop %v1749
  %v1816 = vpack.c.bf16 %v1753, %v1752
  %v1817 = vpack.c.bf16 %v1755, %v1754
  %v1818 = vpack.c.bf16 %v1757, %v1756
  %v1819 = vpack.c.bf16 %v1759, %v1758
  %v1820 = vpack.c.bf16 %v1761, %v1760
  %v1821 = vpack.c.bf16 %v1763, %v1762
  %v1822 = vpack.c.bf16 %v1765, %v1764
  %v1823 = vpack.c.bf16 %v1767, %v1766
  %v1824 = vpack.c.bf16 %v1769, %v1768
  %v1825 = vpack.c.bf16 %v1771, %v1770
  %v1826 = vpack.c.bf16 %v1773, %v1772
  %v1827 = vpack.c.bf16 %v1775, %v1774
  %v1828 = vpack.c.bf16 %v1777, %v1776
  %v1829 = vpack.c.bf16 %v1779, %v1778
  %v1830 = vpack.c.bf16 %v1781, %v1780
  %v1831 = vpack.c.bf16 %v1783, %v1782
  %v1832 = vpack.c.bf16 %v1785, %v1784
  %v1833 = vpack.c.bf16 %v1787, %v1786
  %v1834 = vpack.c.bf16 %v1789, %v1788
  %v1835 = vpack.c.bf16 %v1791, %v1790
  %v1836 = vpack.c.bf16 %v1793, %v1792
  %v1837 = vpack.c.bf16 %v1795, %v1794
  %v1838 = vpack.c.bf16 %v1797, %v1796
  %v1839 = vpack.c.bf16 %v1799, %v1798
  %v1840 = vpack.c.bf16 %v1801, %v1800
  %v1841 = vpack.c.bf16 %v1803, %v1802
  %v1842 = vpack.c.bf16 %v1805, %v1804
  %v1843 = vpack.c.bf16 %v1807, %v1806
  %v1844 = vpack.c.bf16 %v1809, %v1808
  %v1845 = vpack.c.bf16 %v1811, %v1810
  %v1846 = vpack.c.bf16 %v1813, %v1812
  %v1847 = vpack.c.bf16 %v1815, %v1814
  %v1848 = vld [vmem:[%s4] sm:$0xf]
  %v1849 = vld [vmem:[%s4 + $0x4] sm:$0xf]
  %v1850 = vld [vmem:[%s4 + $0x8] sm:$0xf]
  %v1851 = vld [vmem:[%s4 + $0xc] sm:$0xf]
  %v1852 = vld [vmem:[%s4 + $0x10] sm:$0xf]
  %v1853 = vld [vmem:[%s4 + $0x14] sm:$0xf]
  %v1854 = vld [vmem:[%s4 + $0x18] sm:$0xf]
  %v1855 = vld [vmem:[%s4 + $0x1c] sm:$0xf]
  %v1856 = vld [vmem:[%s9 + $0x3] ss:$0 sm:$0xff]
  %v1865 = vunpack.c.l.b16 %v1848
  %v1866 = vunpack.c.l.b16 %v1849
  %v1867 = vunpack.c.l.b16 %v1850
  %v1868 = vunpack.c.l.b16 %v1851
  %v1869 = vunpack.c.l.b16 %v1852
  %v1870 = vunpack.c.l.b16 %v1853
  %v1871 = vunpack.c.l.b16 %v1854
  %v1872 = vunpack.c.l.b16 %v1855
  %v1873 = vpack.c.b16 %v1866, %v1865
  %v1874 = vpack.c.b16 %v1868, %v1867
  %v1875 = vpack.c.b16 %v1870, %v1869
  %v1876 = vpack.c.b16 %v1872, %v1871
  %v1882 = vsel %vm692, %v1816, 0
  %v1885 = vsel %vm692, %v1817, 0
  %v1888 = vsel %vm692, %v1818, 0
  %v1891 = vsel %vm692, %v1819, 0
  %v1894 = vsel %vm692, %v1820, 0
  %v1897 = vsel %vm692, %v1821, 0
  %v1900 = vsel %vm692, %v1822, 0
  %v1903 = vsel %vm692, %v1823, 0
  %v1906 = vsel %vm692, %v1824, 0
  %v1909 = vsel %vm692, %v1825, 0
  %v1912 = vsel %vm692, %v1826, 0
  %v1915 = vsel %vm692, %v1827, 0
  %v1918 = vsel %vm692, %v1828, 0
  %v1921 = vsel %vm692, %v1829, 0
  %v1924 = vsel %vm692, %v1830, 0
  %v1927 = vsel %vm692, %v1831, 0
  %v1930 = vsel %vm692, %v1832, 0
  %v1933 = vsel %vm692, %v1833, 0
  %v1936 = vsel %vm692, %v1834, 0
  %v1939 = vsel %vm692, %v1835, 0
  %v1942 = vsel %vm692, %v1836, 0
  %v1945 = vsel %vm692, %v1837, 0
  %v1948 = vsel %vm692, %v1838, 0
  %v1951 = vsel %vm692, %v1839, 0
  %v1954 = vsel %vm692, %v1840, 0
  %v1957 = vsel %vm692, %v1841, 0
  %v1960 = vsel %vm692, %v1842, 0
  %v1963 = vsel %vm692, %v1843, 0
  %v1966 = vsel %vm692, %v1844, 0
  %v1969 = vsel %vm692, %v1845, 0
  %v1972 = vsel %vm692, %v1846, 0
  %v1975 = vsel %vm692, %v1847, 0
  %1977 = vmatprep.subr.bf16.mxu0 0
  %1978 = vmatpush1.bf16.msra.mxu0 %v1873
  %1979 = vmatprep.subr.bf16.mxu0 0
  %1980 = vmatpush1.bf16.msra.mxu0 %v1874
  %1981 = vmatprep.subr.bf16.mxu0 0
  %1982 = vmatpush1.bf16.msra.mxu0 %v1875
  %1983 = vmatprep.subr.bf16.mxu0 0
  %1984 = vmatpush1.bf16.msra.mxu0 %v1876
  %1985 = vmatprep.subr.bf16.mxu0 0
  %1986 = vmatpush1.bf16.msra.mxu0 0
  %1987 = vmatprep.subr.bf16.mxu0 0
  %1988 = vmatpush1.bf16.msra.mxu0 0
  %1989 = vmatprep.subr.bf16.mxu0 0
  %1990 = vmatpush1.bf16.msra.mxu0 0
  %1991 = vmatprep.subr.bf16.mxu0 0
  %1992 = vmatpush1.bf16.msra.mxu0 0
  %1993 = vmatprep.subr.bf16.mxu0 0
  %1994 = vmatpush1.bf16.msra.mxu0 0
  %1995 = vmatprep.subr.bf16.mxu0 0
  %1996 = vmatpush1.bf16.msra.mxu0 0
  %1997 = vmatprep.subr.bf16.mxu0 0
  %1998 = vmatpush1.bf16.msra.mxu0 0
  %1999 = vmatprep.subr.bf16.mxu0 0
  %2000 = vmatpush1.bf16.msra.mxu0 0
  %2001 = vmatprep.subr.bf16.mxu0 0
  %2002 = vmatpush1.bf16.msra.mxu0 0
  %2003 = vmatprep.subr.bf16.mxu0 0
  %2004 = vmatpush1.bf16.msra.mxu0 0
  %2005 = vmatprep.subr.bf16.mxu0 0
  %2006 = vmatpush1.bf16.msra.mxu0 0
  %2007 = vmatprep.subr.bf16.mxu0 0
  %2008 = vmatpush1.bf16.msra.mxu0 0
  %2009 = vmatprep.mubr.bf16.mxu0 0
  %2010 = vmatmul.mubr.bf16.gmra.mrb[0].mxu0 %v1882
  %v2011 = vpop.f32.mrb[0].mxu0
  %v2012 = vadd.f32 %v1856, %v2011
  %v2013 = vpop.f32.mrb[0].mxu0
  %v2014 = vpop.f32.mrb[0].mxu0
  %v2015 = vadd.f32 %v1856, %v2014
  %v2016 = vpop.f32.mrb[0].mxu0
  %2017 = vmatprep.mubr.bf16.mxu0 0
  %2018 = vmatmul.mubr.bf16.gmra.mrb[0].mxu0 %v1885
  %v2019 = vpop.f32.mrb[0].mxu0
  %v2020 = vadd.f32 %v1856, %v2019
  %v2021 = vpop.f32.mrb[0].mxu0
  %v2022 = vpop.f32.mrb[0].mxu0
  %v2023 = vadd.f32 %v1856, %v2022
  %v2024 = vpop.f32.mrb[0].mxu0
  %2025 = vmatprep.mubr.bf16.mxu0 0
  %2026 = vmatmul.mubr.bf16.gmra.mrb[0].mxu0 %v1888
  %v2027 = vpop.f32.mrb[0].mxu0
  %v2028 = vadd.f32 %v1856, %v2027
  %v2029 = vpop.f32.mrb[0].mxu0
  %v2030 = vpop.f32.mrb[0].mxu0
  %v2031 = vadd.f32 %v1856, %v2030
  %v2032 = vpop.f32.mrb[0].mxu0
  %2033 = vmatprep.mubr.bf16.mxu0 0
  %2034 = vmatmul.mubr.bf16.gmra.mrb[0].mxu0 %v1891
  %v2035 = vpop.f32.mrb[0].mxu0
  %v2036 = vadd.f32 %v1856, %v2035
  %v2037 = vpop.f32.mrb[0].mxu0
  %v2038 = vpop.f32.mrb[0].mxu0
  %v2039 = vadd.f32 %v1856, %v2038
  %v2040 = vpop.f32.mrb[0].mxu0
  %2041 = vmatprep.mubr.bf16.mxu0 0
  %2042 = vmatmul.mubr.bf16.gmra.mrb[0].mxu0 %v1894
  %v2043 = vpop.f32.mrb[0].mxu0
  %v2044 = vadd.f32 %v1856, %v2043
  %v2045 = vpop.f32.mrb[0].mxu0
  %v2046 = vpop.f32.mrb[0].mxu0
  %v2047 = vadd.f32 %v1856, %v2046
  %v2048 = vpop.f32.mrb[0].mxu0
  %2049 = vmatprep.mubr.bf16.mxu0 0
  %2050 = vmatmul.mubr.bf16.gmra.mrb[0].mxu0 %v1897
  %v2051 = vpop.f32.mrb[0].mxu0
  %v2052 = vadd.f32 %v1856, %v2051
  %v2053 = vpop.f32.mrb[0].mxu0
  %v2054 = vpop.f32.mrb[0].mxu0
  %v2055 = vadd.f32 %v1856, %v2054
  %v2056 = vpop.f32.mrb[0].mxu0
  %2057 = vmatprep.mubr.bf16.mxu0 0
  %2058 = vmatmul.mubr.bf16.gmra.mrb[0].mxu0 %v1900
  %v2059 = vpop.f32.mrb[0].mxu0
  %v2060 = vadd.f32 %v1856, %v2059
  %v2061 = vpop.f32.mrb[0].mxu0
  %v2062 = vpop.f32.mrb[0].mxu0
  %v2063 = vadd.f32 %v1856, %v2062
  %v2064 = vpop.f32.mrb[0].mxu0
  %2065 = vmatprep.mubr.bf16.mxu0 0
  %2066 = vmatmul.mubr.bf16.gmra.mrb[0].mxu0 %v1903
  %v2067 = vpop.f32.mrb[0].mxu0
  %v2068 = vadd.f32 %v1856, %v2067
  %v2069 = vpop.f32.mrb[0].mxu0
  %v2070 = vpop.f32.mrb[0].mxu0
  %v2071 = vadd.f32 %v1856, %v2070
  %v2072 = vpop.f32.mrb[0].mxu0
  %2073 = vmatprep.mubr.bf16.mxu0 0
  %2074 = vmatmul.mubr.bf16.gmra.mrb[0].mxu0 %v1906
  %v2075 = vpop.f32.mrb[0].mxu0
  %v2076 = vadd.f32 %v1856, %v2075
  %v2077 = vpop.f32.mrb[0].mxu0
  %v2078 = vpop.f32.mrb[0].mxu0
  %v2079 = vadd.f32 %v1856, %v2078
  %v2080 = vpop.f32.mrb[0].mxu0
  %2081 = vmatprep.mubr.bf16.mxu0 0
  %2082 = vmatmul.mubr.bf16.gmra.mrb[0].mxu0 %v1909
  %v2083 = vpop.f32.mrb[0].mxu0
  %v2084 = vadd.f32 %v1856, %v2083
  %v2085 = vpop.f32.mrb[0].mxu0
  %v2086 = vpop.f32.mrb[0].mxu0
  %v2087 = vadd.f32 %v1856, %v2086
  %v2088 = vpop.f32.mrb[0].mxu0
  %2089 = vmatprep.mubr.bf16.mxu0 0
  %2090 = vmatmul.mubr.bf16.gmra.mrb[0].mxu0 %v1912
  %v2091 = vpop.f32.mrb[0].mxu0
  %v2092 = vadd.f32 %v1856, %v2091
  %v2093 = vpop.f32.mrb[0].mxu0
  %v2094 = vpop.f32.mrb[0].mxu0
  %v2095 = vadd.f32 %v1856, %v2094
  %v2096 = vpop.f32.mrb[0].mxu0
  %2097 = vmatprep.mubr.bf16.mxu0 0
  %2098 = vmatmul.mubr.bf16.gmra.mrb[0].mxu0 %v1915
  %v2099 = vpop.f32.mrb[0].mxu0
  %v2100 = vadd.f32 %v1856, %v2099
  %v2101 = vpop.f32.mrb[0].mxu0
  %v2102 = vpop.f32.mrb[0].mxu0
  %v2103 = vadd.f32 %v1856, %v2102
  %v2104 = vpop.f32.mrb[0].mxu0
  %2105 = vmatprep.mubr.bf16.mxu0 0
  %2106 = vmatmul.mubr.bf16.gmra.mrb[0].mxu0 %v1918
  %v2107 = vpop.f32.mrb[0].mxu0
  %v2108 = vadd.f32 %v1856, %v2107
  %v2109 = vpop.f32.mrb[0].mxu0
  %v2110 = vpop.f32.mrb[0].mxu0
  %v2111 = vadd.f32 %v1856, %v2110
  %v2112 = vpop.f32.mrb[0].mxu0
  %2113 = vmatprep.mubr.bf16.mxu0 0
  %2114 = vmatmul.mubr.bf16.gmra.mrb[0].mxu0 %v1921
  %v2115 = vpop.f32.mrb[0].mxu0
  %v2116 = vadd.f32 %v1856, %v2115
  %v2117 = vpop.f32.mrb[0].mxu0
  %v2118 = vpop.f32.mrb[0].mxu0
  %v2119 = vadd.f32 %v1856, %v2118
  %v2120 = vpop.f32.mrb[0].mxu0
  %2121 = vmatprep.mubr.bf16.mxu0 0
  %2122 = vmatmul.mubr.bf16.gmra.mrb[0].mxu0 %v1924
  %v2123 = vpop.f32.mrb[0].mxu0
  %v2124 = vadd.f32 %v1856, %v2123
  %v2125 = vpop.f32.mrb[0].mxu0
  %v2126 = vpop.f32.mrb[0].mxu0
  %v2127 = vadd.f32 %v1856, %v2126
  %v2128 = vpop.f32.mrb[0].mxu0
  %2129 = vmatprep.mubr.bf16.mxu0 0
  %2130 = vmatmul.mubr.bf16.gmra.mrb[0].mxu0 %v1927
  %v2131 = vpop.f32.mrb[0].mxu0
  %v2132 = vadd.f32 %v1856, %v2131
  %v2133 = vpop.f32.mrb[0].mxu0
  %v2134 = vpop.f32.mrb[0].mxu0
  %v2135 = vadd.f32 %v1856, %v2134
  %v2136 = vpop.f32.mrb[0].mxu0
  %2137 = vmatprep.mubr.bf16.mxu0 0
  %2138 = vmatmul.mubr.bf16.gmra.mrb[0].mxu0 %v1930
  %v2139 = vpop.f32.mrb[0].mxu0
  %v2140 = vadd.f32 %v1856, %v2139
  %v2141 = vpop.f32.mrb[0].mxu0
  %v2142 = vpop.f32.mrb[0].mxu0
  %v2143 = vadd.f32 %v1856, %v2142
  %v2144 = vpop.f32.mrb[0].mxu0
  %2145 = vmatprep.mubr.bf16.mxu0 0
  %2146 = vmatmul.mubr.bf16.gmra.mrb[0].mxu0 %v1933
  %v2147 = vpop.f32.mrb[0].mxu0
  %v2148 = vadd.f32 %v1856, %v2147
  %v2149 = vpop.f32.mrb[0].mxu0
  %v2150 = vpop.f32.mrb[0].mxu0
  %v2151 = vadd.f32 %v1856, %v2150
  %v2152 = vpop.f32.mrb[0].mxu0
  %2153 = vmatprep.mubr.bf16.mxu0 0
  %2154 = vmatmul.mubr.bf16.gmra.mrb[0].mxu0 %v1936
  %v2155 = vpop.f32.mrb[0].mxu0
  %v2156 = vadd.f32 %v1856, %v2155
  %v2157 = vpop.f32.mrb[0].mxu0
  %v2158 = vpop.f32.mrb[0].mxu0
  %v2159 = vadd.f32 %v1856, %v2158
  %v2160 = vpop.f32.mrb[0].mxu0
  %2161 = vmatprep.mubr.bf16.mxu0 0
  %2162 = vmatmul.mubr.bf16.gmra.mrb[0].mxu0 %v1939
  %v2163 = vpop.f32.mrb[0].mxu0
  %v2164 = vadd.f32 %v1856, %v2163
  %v2165 = vpop.f32.mrb[0].mxu0
  %v2166 = vpop.f32.mrb[0].mxu0
  %v2167 = vadd.f32 %v1856, %v2166
  %v2168 = vpop.f32.mrb[0].mxu0
  %2169 = vmatprep.mubr.bf16.mxu0 0
  %2170 = vmatmul.mubr.bf16.gmra.mrb[0].mxu0 %v1942
  %v2171 = vpop.f32.mrb[0].mxu0
  %v2172 = vadd.f32 %v1856, %v2171
  %v2173 = vpop.f32.mrb[0].mxu0
  %v2174 = vpop.f32.mrb[0].mxu0
  %v2175 = vadd.f32 %v1856, %v2174
  %v2176 = vpop.f32.mrb[0].mxu0
  %2177 = vmatprep.mubr.bf16.mxu0 0
  %2178 = vmatmul.mubr.bf16.gmra.mrb[0].mxu0 %v1945
  %v2179 = vpop.f32.mrb[0].mxu0
  %v2180 = vadd.f32 %v1856, %v2179
  %v2181 = vpop.f32.mrb[0].mxu0
  %v2182 = vpop.f32.mrb[0].mxu0
  %v2183 = vadd.f32 %v1856, %v2182
  %v2184 = vpop.f32.mrb[0].mxu0
  %2185 = vmatprep.mubr.bf16.mxu0 0
  %2186 = vmatmul.mubr.bf16.gmra.mrb[0].mxu0 %v1948
  %v2187 = vpop.f32.mrb[0].mxu0
  %v2188 = vadd.f32 %v1856, %v2187
  %v2189 = vpop.f32.mrb[0].mxu0
  %v2190 = vpop.f32.mrb[0].mxu0
  %v2191 = vadd.f32 %v1856, %v2190
  %v2192 = vpop.f32.mrb[0].mxu0
  %2193 = vmatprep.mubr.bf16.mxu0 0
  %2194 = vmatmul.mubr.bf16.gmra.mrb[0].mxu0 %v1951
  %v2195 = vpop.f32.mrb[0].mxu0
  %v2196 = vadd.f32 %v1856, %v2195
  %v2197 = vpop.f32.mrb[0].mxu0
  %v2198 = vpop.f32.mrb[0].mxu0
  %v2199 = vadd.f32 %v1856, %v2198
  %v2200 = vpop.f32.mrb[0].mxu0
  %2201 = vmatprep.mubr.bf16.mxu0 0
  %2202 = vmatmul.mubr.bf16.gmra.mrb[0].mxu0 %v1954
  %v2203 = vpop.f32.mrb[0].mxu0
  %v2204 = vadd.f32 %v1856, %v2203
  %v2205 = vpop.f32.mrb[0].mxu0
  %v2206 = vpop.f32.mrb[0].mxu0
  %v2207 = vadd.f32 %v1856, %v2206
  %v2208 = vpop.f32.mrb[0].mxu0
  %2209 = vmatprep.mubr.bf16.mxu0 0
  %2210 = vmatmul.mubr.bf16.gmra.mrb[0].mxu0 %v1957
  %v2211 = vpop.f32.mrb[0].mxu0
  %v2212 = vadd.f32 %v1856, %v2211
  %v2213 = vpop.f32.mrb[0].mxu0
  %v2214 = vpop.f32.mrb[0].mxu0
  %v2215 = vadd.f32 %v1856, %v2214
  %v2216 = vpop.f32.mrb[0].mxu0
  %2217 = vmatprep.mubr.bf16.mxu0 0
  %2218 = vmatmul.mubr.bf16.gmra.mrb[0].mxu0 %v1960
  %v2219 = vpop.f32.mrb[0].mxu0
  %v2220 = vadd.f32 %v1856, %v2219
  %v2221 = vpop.f32.mrb[0].mxu0
  %v2222 = vpop.f32.mrb[0].mxu0
  %v2223 = vadd.f32 %v1856, %v2222
  %v2224 = vpop.f32.mrb[0].mxu0
  %2225 = vmatprep.mubr.bf16.mxu0 0
  %2226 = vmatmul.mubr.bf16.gmra.mrb[0].mxu0 %v1963
  %v2227 = vpop.f32.mrb[0].mxu0
  %v2228 = vadd.f32 %v1856, %v2227
  %v2229 = vpop.f32.mrb[0].mxu0
  %v2230 = vpop.f32.mrb[0].mxu0
  %v2231 = vadd.f32 %v1856, %v2230
  %v2232 = vpop.f32.mrb[0].mxu0
  %2233 = vmatprep.mubr.bf16.mxu0 0
  %2234 = vmatmul.mubr.bf16.gmra.mrb[0].mxu0 %v1966
  %v2235 = vpop.f32.mrb[0].mxu0
  %v2236 = vadd.f32 %v1856, %v2235
  %v2237 = vpop.f32.mrb[0].mxu0
  %v2238 = vpop.f32.mrb[0].mxu0
  %v2239 = vadd.f32 %v1856, %v2238
  %v2240 = vpop.f32.mrb[0].mxu0
  %2241 = vmatprep.mubr.bf16.mxu0 0
  %2242 = vmatmul.mubr.bf16.gmra.mrb[0].mxu0 %v1969
  %v2243 = vpop.f32.mrb[0].mxu0
  %v2244 = vadd.f32 %v1856, %v2243
  %v2245 = vpop.f32.mrb[0].mxu0
  %v2246 = vpop.f32.mrb[0].mxu0
  %v2247 = vadd.f32 %v1856, %v2246
  %v2248 = vpop.f32.mrb[0].mxu0
  %2249 = vmatprep.mubr.bf16.mxu0 0
  %2250 = vmatmul.mubr.bf16.gmra.mrb[0].mxu0 %v1972
  %v2251 = vpop.f32.mrb[0].mxu0
  %v2252 = vadd.f32 %v1856, %v2251
  %v2253 = vpop.f32.mrb[0].mxu0
  %v2254 = vpop.f32.mrb[0].mxu0
  %v2255 = vadd.f32 %v1856, %v2254
  %v2256 = vpop.f32.mrb[0].mxu0
  %2257 = vmatprep.mubr.bf16.mxu0 0
  %2258 = vmatmul.mubr.bf16.gmra.mrb[0].mxu0 %v1975
  %v2259 = vpop.f32.mrb[0].mxu0
  %v2260 = vadd.f32 %v1856, %v2259
  %v2261 = vpop.f32.mrb[0].mxu0
  %v2262 = vpop.f32.mrb[0].mxu0
  %v2263 = vadd.f32 %v1856, %v2262
  %v2264 = vpop.f32.mrb[0].mxu0
  %2265 = vdwg.mxu0
  %v2266 = vtanh.pop %v2012
  %v2267 = vtanh.pop %v2015
  %v2268 = vtanh.pop %v2020
  %v2269 = vtanh.pop %v2023
  %v2270 = vtanh.pop %v2028
  %v2271 = vtanh.pop %v2031
  %v2272 = vtanh.pop %v2036
  %v2273 = vtanh.pop %v2039
  %v2274 = vtanh.pop %v2044
  %v2275 = vtanh.pop %v2047
  %v2276 = vtanh.pop %v2052
  %v2277 = vtanh.pop %v2055
  %v2278 = vtanh.pop %v2060
  %v2279 = vtanh.pop %v2063
  %v2280 = vtanh.pop %v2068
  %v2281 = vtanh.pop %v2071
  %v2282 = vtanh.pop %v2076
  %v2283 = vtanh.pop %v2079
  %v2284 = vtanh.pop %v2084
  %v2285 = vtanh.pop %v2087
  %v2286 = vtanh.pop %v2092
  %v2287 = vtanh.pop %v2095
  %v2288 = vtanh.pop %v2100
  %v2289 = vtanh.pop %v2103
  %v2290 = vtanh.pop %v2108
  %v2291 = vtanh.pop %v2111
  %v2292 = vtanh.pop %v2116
  %v2293 = vtanh.pop %v2119
  %v2294 = vtanh.pop %v2124
  %v2295 = vtanh.pop %v2127
  %v2296 = vtanh.pop %v2132
  %v2297 = vtanh.pop %v2135
  %v2298 = vtanh.pop %v2140
  %v2299 = vtanh.pop %v2143
  %v2300 = vtanh.pop %v2148
  %v2301 = vtanh.pop %v2151
  %v2302 = vtanh.pop %v2156
  %v2303 = vtanh.pop %v2159
  %v2304 = vtanh.pop %v2164
  %v2305 = vtanh.pop %v2167
  %v2306 = vtanh.pop %v2172
  %v2307 = vtanh.pop %v2175
  %v2308 = vtanh.pop %v2180
  %v2309 = vtanh.pop %v2183
  %v2310 = vtanh.pop %v2188
  %v2311 = vtanh.pop %v2191
  %v2312 = vtanh.pop %v2196
  %v2313 = vtanh.pop %v2199
  %v2314 = vtanh.pop %v2204
  %v2315 = vtanh.pop %v2207
  %v2316 = vtanh.pop %v2212
  %v2317 = vtanh.pop %v2215
  %v2318 = vtanh.pop %v2220
  %v2319 = vtanh.pop %v2223
  %v2320 = vtanh.pop %v2228
  %v2321 = vtanh.pop %v2231
  %v2322 = vtanh.pop %v2236
  %v2323 = vtanh.pop %v2239
  %v2324 = vtanh.pop %v2244
  %v2325 = vtanh.pop %v2247
  %v2326 = vtanh.pop %v2252
  %v2327 = vtanh.pop %v2255
  %v2328 = vtanh.pop %v2260
  %v2329 = vtanh.pop %v2263
  %v2330 = vpack.c.bf16 %v2267, %v2266
  %v2331 = vpack.c.bf16 %v2269, %v2268
  %v2332 = vpack.c.bf16 %v2271, %v2270
  %v2333 = vpack.c.bf16 %v2273, %v2272
  %v2334 = vpack.c.bf16 %v2275, %v2274
  %v2335 = vpack.c.bf16 %v2277, %v2276
  %v2336 = vpack.c.bf16 %v2279, %v2278
  %v2337 = vpack.c.bf16 %v2281, %v2280
  %v2338 = vpack.c.bf16 %v2283, %v2282
  %v2339 = vpack.c.bf16 %v2285, %v2284
  %v2340 = vpack.c.bf16 %v2287, %v2286
  %v2341 = vpack.c.bf16 %v2289, %v2288
  %v2342 = vpack.c.bf16 %v2291, %v2290
  %v2343 = vpack.c.bf16 %v2293, %v2292
  %v2344 = vpack.c.bf16 %v2295, %v2294
  %v2345 = vpack.c.bf16 %v2297, %v2296
  %v2346 = vpack.c.bf16 %v2299, %v2298
  %v2347 = vpack.c.bf16 %v2301, %v2300
  %v2348 = vpack.c.bf16 %v2303, %v2302
  %v2349 = vpack.c.bf16 %v2305, %v2304
  %v2350 = vpack.c.bf16 %v2307, %v2306
  %v2351 = vpack.c.bf16 %v2309, %v2308
  %v2352 = vpack.c.bf16 %v2311, %v2310
  %v2353 = vpack.c.bf16 %v2313, %v2312
  %v2354 = vpack.c.bf16 %v2315, %v2314
  %v2355 = vpack.c.bf16 %v2317, %v2316
  %v2356 = vpack.c.bf16 %v2319, %v2318
  %v2357 = vpack.c.bf16 %v2321, %v2320
  %v2358 = vpack.c.bf16 %v2323, %v2322
  %v2359 = vpack.c.bf16 %v2325, %v2324
  %v2360 = vpack.c.bf16 %v2327, %v2326
  %v2361 = vpack.c.bf16 %v2329, %v2328
  %v2362 = vld [vmem:[%s5] sm:$0x1]
  %v2363 = vld [vmem:[%s9 + $0x4] ss:$0 sm:$0xff]
  %vm2364 = vcmask 15360
  %v2366 = vsel %vm2364, %v2330, 0
  %v2369 = vsel %vm2364, %v2331, 0
  %v2372 = vsel %vm2364, %v2332, 0
  %v2375 = vsel %vm2364, %v2333, 0
  %v2378 = vsel %vm2364, %v2334, 0
  %v2381 = vsel %vm2364, %v2335, 0
  %v2384 = vsel %vm2364, %v2336, 0
  %v2387 = vsel %vm2364, %v2337, 0
  %v2390 = vsel %vm2364, %v2338, 0
  %v2393 = vsel %vm2364, %v2339, 0
  %v2396 = vsel %vm2364, %v2340, 0
  %v2399 = vsel %vm2364, %v2341, 0
  %v2402 = vsel %vm2364, %v2342, 0
  %v2405 = vsel %vm2364, %v2343, 0
  %v2408 = vsel %vm2364, %v2344, 0
  %v2411 = vsel %vm2364, %v2345, 0
  %v2414 = vsel %vm2364, %v2346, 0
  %v2417 = vsel %vm2364, %v2347, 0
  %v2420 = vsel %vm2364, %v2348, 0
  %v2423 = vsel %vm2364, %v2349, 0
  %v2426 = vsel %vm2364, %v2350, 0
  %v2429 = vsel %vm2364, %v2351, 0
  %v2432 = vsel %vm2364, %v2352, 0
  %v2435 = vsel %vm2364, %v2353, 0
  %v2438 = vsel %vm2364, %v2354, 0
  %v2441 = vsel %vm2364, %v2355, 0
  %v2444 = vsel %vm2364, %v2356, 0
  %v2447 = vsel %vm2364, %v2357, 0
  %v2450 = vsel %vm2364, %v2358, 0
  %v2453 = vsel %vm2364, %v2359, 0
  %v2456 = vsel %vm2364, %v2360, 0
  %v2459 = vsel %vm2364, %v2361, 0
  %vm2461 = vcmask 1040384
  %v2463 = vsel %vm2461, %v2362, 0
  %2465 = vmatprep.subr.bf16.mxu0 0
  %2466 = vmatpush1.bf16.msra.mxu0 %v2463
  %2467 = vmatprep.subr.bf16.mxu0 0
  %2468 = vmatpush1.bf16.msra.mxu0 0
  %2469 = vmatprep.subr.bf16.mxu0 0
  %2470 = vmatpush1.bf16.msra.mxu0 0
  %2471 = vmatprep.subr.bf16.mxu0 0
  %2472 = vmatpush1.bf16.msra.mxu0 0
  %2473 = vmatprep.subr.bf16.mxu0 0
  %2474 = vmatpush1.bf16.msra.mxu0 0
  %2475 = vmatprep.subr.bf16.mxu0 0
  %2476 = vmatpush1.bf16.msra.mxu0 0
  %2477 = vmatprep.subr.bf16.mxu0 0
  %2478 = vmatpush1.bf16.msra.mxu0 0
  %2479 = vmatprep.subr.bf16.mxu0 0
  %2480 = vmatpush1.bf16.msra.mxu0 0
  %2481 = vmatprep.subr.bf16.mxu0 0
  %2482 = vmatpush1.bf16.msra.mxu0 0
  %2483 = vmatprep.subr.bf16.mxu0 0
  %2484 = vmatpush1.bf16.msra.mxu0 0
  %2485 = vmatprep.subr.bf16.mxu0 0
  %2486 = vmatpush1.bf16.msra.mxu0 0
  %2487 = vmatprep.subr.bf16.mxu0 0
  %2488 = vmatpush1.bf16.msra.mxu0 0
  %2489 = vmatprep.subr.bf16.mxu0 0
  %2490 = vmatpush1.bf16.msra.mxu0 0
  %2491 = vmatprep.subr.bf16.mxu0 0
  %2492 = vmatpush1.bf16.msra.mxu0 0
  %2493 = vmatprep.subr.bf16.mxu0 0
  %2494 = vmatpush1.bf16.msra.mxu0 0
  %2495 = vmatprep.subr.bf16.mxu0 0
  %2496 = vmatpush1.bf16.msra.mxu0 0
  %2497 = vmatprep.mubr.bf16.mxu0 0
  %2498 = vmatmul.mubr.bf16.gmra.mrb[0].mxu0 %v2366
  %v2499 = vpop.f32.mrb[0].mxu0
  %v2500 = vadd.f32 %v2363, %v2499
  %v2501 = vpop.f32.mrb[0].mxu0
  %v2502 = vpop.f32.mrb[0].mxu0
  %v2503 = vadd.f32 %v2363, %v2502
  %v2504 = vpop.f32.mrb[0].mxu0
  %2505 = vmatprep.mubr.bf16.mxu0 0
  %2506 = vmatmul.mubr.bf16.gmra.mrb[0].mxu0 %v2369
  %v2507 = vpop.f32.mrb[0].mxu0
  %v2508 = vadd.f32 %v2363, %v2507
  %v2509 = vpop.f32.mrb[0].mxu0
  %v2510 = vpop.f32.mrb[0].mxu0
  %v2511 = vadd.f32 %v2363, %v2510
  %v2512 = vpop.f32.mrb[0].mxu0
  %2513 = vmatprep.mubr.bf16.mxu0 0
  %2514 = vmatmul.mubr.bf16.gmra.mrb[0].mxu0 %v2372
  %v2515 = vpop.f32.mrb[0].mxu0
  %v2516 = vadd.f32 %v2363, %v2515
  %v2517 = vpop.f32.mrb[0].mxu0
  %v2518 = vpop.f32.mrb[0].mxu0
  %v2519 = vadd.f32 %v2363, %v2518
  %v2520 = vpop.f32.mrb[0].mxu0
  %2521 = vmatprep.mubr.bf16.mxu0 0
  %2522 = vmatmul.mubr.bf16.gmra.mrb[0].mxu0 %v2375
  %v2523 = vpop.f32.mrb[0].mxu0
  %v2524 = vadd.f32 %v2363, %v2523
  %v2525 = vpop.f32.mrb[0].mxu0
  %v2526 = vpop.f32.mrb[0].mxu0
  %v2527 = vadd.f32 %v2363, %v2526
  %v2528 = vpop.f32.mrb[0].mxu0
  %2529 = vmatprep.mubr.bf16.mxu0 0
  %2530 = vmatmul.mubr.bf16.gmra.mrb[0].mxu0 %v2378
  %v2531 = vpop.f32.mrb[0].mxu0
  %v2532 = vadd.f32 %v2363, %v2531
  %v2533 = vpop.f32.mrb[0].mxu0
  %v2534 = vpop.f32.mrb[0].mxu0
  %v2535 = vadd.f32 %v2363, %v2534
  %v2536 = vpop.f32.mrb[0].mxu0
  %2537 = vmatprep.mubr.bf16.mxu0 0
  %2538 = vmatmul.mubr.bf16.gmra.mrb[0].mxu0 %v2381
  %v2539 = vpop.f32.mrb[0].mxu0
  %v2540 = vadd.f32 %v2363, %v2539
  %v2541 = vpop.f32.mrb[0].mxu0
  %v2542 = vpop.f32.mrb[0].mxu0
  %v2543 = vadd.f32 %v2363, %v2542
  %v2544 = vpop.f32.mrb[0].mxu0
  %2545 = vmatprep.mubr.bf16.mxu0 0
  %2546 = vmatmul.mubr.bf16.gmra.mrb[0].mxu0 %v2384
  %v2547 = vpop.f32.mrb[0].mxu0
  %v2548 = vadd.f32 %v2363, %v2547
  %v2549 = vpop.f32.mrb[0].mxu0
  %v2550 = vpop.f32.mrb[0].mxu0
  %v2551 = vadd.f32 %v2363, %v2550
  %v2552 = vpop.f32.mrb[0].mxu0
  %2553 = vmatprep.mubr.bf16.mxu0 0
  %2554 = vmatmul.mubr.bf16.gmra.mrb[0].mxu0 %v2387
  %v2555 = vpop.f32.mrb[0].mxu0
  %v2556 = vadd.f32 %v2363, %v2555
  %v2557 = vpop.f32.mrb[0].mxu0
  %v2558 = vpop.f32.mrb[0].mxu0
  %v2559 = vadd.f32 %v2363, %v2558
  %v2560 = vpop.f32.mrb[0].mxu0
  %2561 = vmatprep.mubr.bf16.mxu0 0
  %2562 = vmatmul.mubr.bf16.gmra.mrb[0].mxu0 %v2390
  %v2563 = vpop.f32.mrb[0].mxu0
  %v2564 = vadd.f32 %v2363, %v2563
  %v2565 = vpop.f32.mrb[0].mxu0
  %v2566 = vpop.f32.mrb[0].mxu0
  %v2567 = vadd.f32 %v2363, %v2566
  %v2568 = vpop.f32.mrb[0].mxu0
  %2569 = vmatprep.mubr.bf16.mxu0 0
  %2570 = vmatmul.mubr.bf16.gmra.mrb[0].mxu0 %v2393
  %v2571 = vpop.f32.mrb[0].mxu0
  %v2572 = vadd.f32 %v2363, %v2571
  %v2573 = vpop.f32.mrb[0].mxu0
  %v2574 = vpop.f32.mrb[0].mxu0
  %v2575 = vadd.f32 %v2363, %v2574
  %v2576 = vpop.f32.mrb[0].mxu0
  %2577 = vmatprep.mubr.bf16.mxu0 0
  %2578 = vmatmul.mubr.bf16.gmra.mrb[0].mxu0 %v2396
  %v2579 = vpop.f32.mrb[0].mxu0
  %v2580 = vadd.f32 %v2363, %v2579
  %v2581 = vpop.f32.mrb[0].mxu0
  %v2582 = vpop.f32.mrb[0].mxu0
  %v2583 = vadd.f32 %v2363, %v2582
  %v2584 = vpop.f32.mrb[0].mxu0
  %2585 = vmatprep.mubr.bf16.mxu0 0
  %2586 = vmatmul.mubr.bf16.gmra.mrb[0].mxu0 %v2399
  %v2587 = vpop.f32.mrb[0].mxu0
  %v2588 = vadd.f32 %v2363, %v2587
  %v2589 = vpop.f32.mrb[0].mxu0
  %v2590 = vpop.f32.mrb[0].mxu0
  %v2591 = vadd.f32 %v2363, %v2590
  %v2592 = vpop.f32.mrb[0].mxu0
  %2593 = vmatprep.mubr.bf16.mxu0 0
  %2594 = vmatmul.mubr.bf16.gmra.mrb[0].mxu0 %v2402
  %v2595 = vpop.f32.mrb[0].mxu0
  %v2596 = vadd.f32 %v2363, %v2595
  %v2597 = vpop.f32.mrb[0].mxu0
  %v2598 = vpop.f32.mrb[0].mxu0
  %v2599 = vadd.f32 %v2363, %v2598
  %v2600 = vpop.f32.mrb[0].mxu0
  %2601 = vmatprep.mubr.bf16.mxu0 0
  %2602 = vmatmul.mubr.bf16.gmra.mrb[0].mxu0 %v2405
  %v2603 = vpop.f32.mrb[0].mxu0
  %v2604 = vadd.f32 %v2363, %v2603
  %v2605 = vpop.f32.mrb[0].mxu0
  %v2606 = vpop.f32.mrb[0].mxu0
  %v2607 = vadd.f32 %v2363, %v2606
  %v2608 = vpop.f32.mrb[0].mxu0
  %2609 = vmatprep.mubr.bf16.mxu0 0
  %2610 = vmatmul.mubr.bf16.gmra.mrb[0].mxu0 %v2408
  %v2611 = vpop.f32.mrb[0].mxu0
  %v2612 = vadd.f32 %v2363, %v2611
  %v2613 = vpop.f32.mrb[0].mxu0
  %v2614 = vpop.f32.mrb[0].mxu0
  %v2615 = vadd.f32 %v2363, %v2614
  %v2616 = vpop.f32.mrb[0].mxu0
  %2617 = vmatprep.mubr.bf16.mxu0 0
  %2618 = vmatmul.mubr.bf16.gmra.mrb[0].mxu0 %v2411
  %v2619 = vpop.f32.mrb[0].mxu0
  %v2620 = vadd.f32 %v2363, %v2619
  %v2621 = vpop.f32.mrb[0].mxu0
  %v2622 = vpop.f32.mrb[0].mxu0
  %v2623 = vadd.f32 %v2363, %v2622
  %v2624 = vpop.f32.mrb[0].mxu0
  %2625 = vmatprep.mubr.bf16.mxu0 0
  %2626 = vmatmul.mubr.bf16.gmra.mrb[0].mxu0 %v2414
  %v2627 = vpop.f32.mrb[0].mxu0
  %v2628 = vadd.f32 %v2363, %v2627
  %v2629 = vpop.f32.mrb[0].mxu0
  %v2630 = vpop.f32.mrb[0].mxu0
  %v2631 = vadd.f32 %v2363, %v2630
  %v2632 = vpop.f32.mrb[0].mxu0
  %2633 = vmatprep.mubr.bf16.mxu0 0
  %2634 = vmatmul.mubr.bf16.gmra.mrb[0].mxu0 %v2417
  %v2635 = vpop.f32.mrb[0].mxu0
  %v2636 = vadd.f32 %v2363, %v2635
  %v2637 = vpop.f32.mrb[0].mxu0
  %v2638 = vpop.f32.mrb[0].mxu0
  %v2639 = vadd.f32 %v2363, %v2638
  %v2640 = vpop.f32.mrb[0].mxu0
  %2641 = vmatprep.mubr.bf16.mxu0 0
  %2642 = vmatmul.mubr.bf16.gmra.mrb[0].mxu0 %v2420
  %v2643 = vpop.f32.mrb[0].mxu0
  %v2644 = vadd.f32 %v2363, %v2643
  %v2645 = vpop.f32.mrb[0].mxu0
  %v2646 = vpop.f32.mrb[0].mxu0
  %v2647 = vadd.f32 %v2363, %v2646
  %v2648 = vpop.f32.mrb[0].mxu0
  %2649 = vmatprep.mubr.bf16.mxu0 0
  %2650 = vmatmul.mubr.bf16.gmra.mrb[0].mxu0 %v2423
  %v2651 = vpop.f32.mrb[0].mxu0
  %v2652 = vadd.f32 %v2363, %v2651
  %v2653 = vpop.f32.mrb[0].mxu0
  %v2654 = vpop.f32.mrb[0].mxu0
  %v2655 = vadd.f32 %v2363, %v2654
  %v2656 = vpop.f32.mrb[0].mxu0
  %2657 = vmatprep.mubr.bf16.mxu0 0
  %2658 = vmatmul.mubr.bf16.gmra.mrb[0].mxu0 %v2426
  %v2659 = vpop.f32.mrb[0].mxu0
  %v2660 = vadd.f32 %v2363, %v2659
  %v2661 = vpop.f32.mrb[0].mxu0
  %v2662 = vpop.f32.mrb[0].mxu0
  %v2663 = vadd.f32 %v2363, %v2662
  %v2664 = vpop.f32.mrb[0].mxu0
  %2665 = vmatprep.mubr.bf16.mxu0 0
  %2666 = vmatmul.mubr.bf16.gmra.mrb[0].mxu0 %v2429
  %v2667 = vpop.f32.mrb[0].mxu0
  %v2668 = vadd.f32 %v2363, %v2667
  %v2669 = vpop.f32.mrb[0].mxu0
  %v2670 = vpop.f32.mrb[0].mxu0
  %v2671 = vadd.f32 %v2363, %v2670
  %v2672 = vpop.f32.mrb[0].mxu0
  %2673 = vmatprep.mubr.bf16.mxu0 0
  %2674 = vmatmul.mubr.bf16.gmra.mrb[0].mxu0 %v2432
  %v2675 = vpop.f32.mrb[0].mxu0
  %v2676 = vadd.f32 %v2363, %v2675
  %v2677 = vpop.f32.mrb[0].mxu0
  %v2678 = vpop.f32.mrb[0].mxu0
  %v2679 = vadd.f32 %v2363, %v2678
  %v2680 = vpop.f32.mrb[0].mxu0
  %2681 = vmatprep.mubr.bf16.mxu0 0
  %2682 = vmatmul.mubr.bf16.gmra.mrb[0].mxu0 %v2435
  %v2683 = vpop.f32.mrb[0].mxu0
  %v2684 = vadd.f32 %v2363, %v2683
  %v2685 = vpop.f32.mrb[0].mxu0
  %v2686 = vpop.f32.mrb[0].mxu0
  %v2687 = vadd.f32 %v2363, %v2686
  %v2688 = vpop.f32.mrb[0].mxu0
  %2689 = vmatprep.mubr.bf16.mxu0 0
  %2690 = vmatmul.mubr.bf16.gmra.mrb[0].mxu0 %v2438
  %v2691 = vpop.f32.mrb[0].mxu0
  %v2692 = vadd.f32 %v2363, %v2691
  %v2693 = vpop.f32.mrb[0].mxu0
  %v2694 = vpop.f32.mrb[0].mxu0
  %v2695 = vadd.f32 %v2363, %v2694
  %v2696 = vpop.f32.mrb[0].mxu0
  %2697 = vmatprep.mubr.bf16.mxu0 0
  %2698 = vmatmul.mubr.bf16.gmra.mrb[0].mxu0 %v2441
  %v2699 = vpop.f32.mrb[0].mxu0
  %v2700 = vadd.f32 %v2363, %v2699
  %v2701 = vpop.f32.mrb[0].mxu0
  %v2702 = vpop.f32.mrb[0].mxu0
  %v2703 = vadd.f32 %v2363, %v2702
  %v2704 = vpop.f32.mrb[0].mxu0
  %2705 = vmatprep.mubr.bf16.mxu0 0
  %2706 = vmatmul.mubr.bf16.gmra.mrb[0].mxu0 %v2444
  %v2707 = vpop.f32.mrb[0].mxu0
  %v2708 = vadd.f32 %v2363, %v2707
  %v2709 = vpop.f32.mrb[0].mxu0
  %v2710 = vpop.f32.mrb[0].mxu0
  %v2711 = vadd.f32 %v2363, %v2710
  %v2712 = vpop.f32.mrb[0].mxu0
  %2713 = vmatprep.mubr.bf16.mxu0 0
  %2714 = vmatmul.mubr.bf16.gmra.mrb[0].mxu0 %v2447
  %v2715 = vpop.f32.mrb[0].mxu0
  %v2716 = vadd.f32 %v2363, %v2715
  %v2717 = vpop.f32.mrb[0].mxu0
  %v2718 = vpop.f32.mrb[0].mxu0
  %v2719 = vadd.f32 %v2363, %v2718
  %v2720 = vpop.f32.mrb[0].mxu0
  %2721 = vmatprep.mubr.bf16.mxu0 0
  %2722 = vmatmul.mubr.bf16.gmra.mrb[0].mxu0 %v2450
  %v2723 = vpop.f32.mrb[0].mxu0
  %v2724 = vadd.f32 %v2363, %v2723
  %v2725 = vpop.f32.mrb[0].mxu0
  %v2726 = vpop.f32.mrb[0].mxu0
  %v2727 = vadd.f32 %v2363, %v2726
  %v2728 = vpop.f32.mrb[0].mxu0
  %2729 = vmatprep.mubr.bf16.mxu0 0
  %2730 = vmatmul.mubr.bf16.gmra.mrb[0].mxu0 %v2453
  %v2731 = vpop.f32.mrb[0].mxu0
  %v2732 = vadd.f32 %v2363, %v2731
  %v2733 = vpop.f32.mrb[0].mxu0
  %v2734 = vpop.f32.mrb[0].mxu0
  %v2735 = vadd.f32 %v2363, %v2734
  %v2736 = vpop.f32.mrb[0].mxu0
  %2737 = vmatprep.mubr.bf16.mxu0 0
  %2738 = vmatmul.mubr.bf16.gmra.mrb[0].mxu0 %v2456
  %v2739 = vpop.f32.mrb[0].mxu0
  %v2740 = vadd.f32 %v2363, %v2739
  %v2741 = vpop.f32.mrb[0].mxu0
  %v2742 = vpop.f32.mrb[0].mxu0
  %v2743 = vadd.f32 %v2363, %v2742
  %v2744 = vpop.f32.mrb[0].mxu0
  %2745 = vmatprep.mubr.bf16.mxu0 0
  %2746 = vmatmul.mubr.bf16.gmra.mrb[0].mxu0 %v2459
  %v2747 = vpop.f32.mrb[0].mxu0
  %v2748 = vadd.f32 %v2363, %v2747
  %v2749 = vpop.f32.mrb[0].mxu0
  %v2750 = vpop.f32.mrb[0].mxu0
  %v2751 = vadd.f32 %v2363, %v2750
  %v2752 = vpop.f32.mrb[0].mxu0
  %2753 = vdwg.mxu0
  %v2754 = vtanh.pop %v2500
  %v2755 = vtanh.pop %v2503
  %v2756 = vtanh.pop %v2508
  %v2757 = vtanh.pop %v2511
  %v2758 = vtanh.pop %v2516
  %v2759 = vtanh.pop %v2519
  %v2760 = vtanh.pop %v2524
  %v2761 = vtanh.pop %v2527
  %v2762 = vtanh.pop %v2532
  %v2763 = vtanh.pop %v2535
  %v2764 = vtanh.pop %v2540
  %v2765 = vtanh.pop %v2543
  %v2766 = vtanh.pop %v2548
  %v2767 = vtanh.pop %v2551
  %v2768 = vtanh.pop %v2556
  %v2769 = vtanh.pop %v2559
  %v2770 = vtanh.pop %v2564
  %v2771 = vtanh.pop %v2567
  %v2772 = vtanh.pop %v2572
  %v2773 = vtanh.pop %v2575
  %v2774 = vtanh.pop %v2580
  %v2775 = vtanh.pop %v2583
  %v2776 = vtanh.pop %v2588
  %v2777 = vtanh.pop %v2591
  %v2778 = vtanh.pop %v2596
  %v2779 = vtanh.pop %v2599
  %v2780 = vtanh.pop %v2604
  %v2781 = vtanh.pop %v2607
  %v2782 = vtanh.pop %v2612
  %v2783 = vtanh.pop %v2615
  %v2784 = vtanh.pop %v2620
  %v2785 = vtanh.pop %v2623
  %v2786 = vtanh.pop %v2628
  %v2787 = vtanh.pop %v2631
  %v2788 = vtanh.pop %v2636
  %v2789 = vtanh.pop %v2639
  %v2790 = vtanh.pop %v2644
  %v2791 = vtanh.pop %v2647
  %v2792 = vtanh.pop %v2652
  %v2793 = vtanh.pop %v2655
  %v2794 = vtanh.pop %v2660
  %v2795 = vtanh.pop %v2663
  %v2796 = vtanh.pop %v2668
  %v2797 = vtanh.pop %v2671
  %v2798 = vtanh.pop %v2676
  %v2799 = vtanh.pop %v2679
  %v2800 = vtanh.pop %v2684
  %v2801 = vtanh.pop %v2687
  %v2802 = vtanh.pop %v2692
  %v2803 = vtanh.pop %v2695
  %v2804 = vtanh.pop %v2700
  %v2805 = vtanh.pop %v2703
  %v2806 = vtanh.pop %v2708
  %v2807 = vtanh.pop %v2711
  %v2808 = vtanh.pop %v2716
  %v2809 = vtanh.pop %v2719
  %v2810 = vtanh.pop %v2724
  %v2811 = vtanh.pop %v2727
  %v2812 = vtanh.pop %v2732
  %v2813 = vtanh.pop %v2735
  %v2814 = vtanh.pop %v2740
  %v2815 = vtanh.pop %v2743
  %v2816 = vtanh.pop %v2748
  %v2817 = vtanh.pop %v2751
  %v2818 = vpack.c.bf16 %v2755, %v2754
  %v2819 = vpack.c.bf16 %v2757, %v2756
  %v2820 = vpack.c.bf16 %v2759, %v2758
  %v2821 = vpack.c.bf16 %v2761, %v2760
  %v2822 = vpack.c.bf16 %v2763, %v2762
  %v2823 = vpack.c.bf16 %v2765, %v2764
  %v2824 = vpack.c.bf16 %v2767, %v2766
  %v2825 = vpack.c.bf16 %v2769, %v2768
  %v2826 = vpack.c.bf16 %v2771, %v2770
  %v2827 = vpack.c.bf16 %v2773, %v2772
  %v2828 = vpack.c.bf16 %v2775, %v2774
  %v2829 = vpack.c.bf16 %v2777, %v2776
  %v2830 = vpack.c.bf16 %v2779, %v2778
  %v2831 = vpack.c.bf16 %v2781, %v2780
  %v2832 = vpack.c.bf16 %v2783, %v2782
  %v2833 = vpack.c.bf16 %v2785, %v2784
  %v2834 = vpack.c.bf16 %v2787, %v2786
  %v2835 = vpack.c.bf16 %v2789, %v2788
  %v2836 = vpack.c.bf16 %v2791, %v2790
  %v2837 = vpack.c.bf16 %v2793, %v2792
  %v2838 = vpack.c.bf16 %v2795, %v2794
  %v2839 = vpack.c.bf16 %v2797, %v2796
  %v2840 = vpack.c.bf16 %v2799, %v2798
  %v2841 = vpack.c.bf16 %v2801, %v2800
  %v2842 = vpack.c.bf16 %v2803, %v2802
  %v2843 = vpack.c.bf16 %v2805, %v2804
  %v2844 = vpack.c.bf16 %v2807, %v2806
  %v2845 = vpack.c.bf16 %v2809, %v2808
  %v2846 = vpack.c.bf16 %v2811, %v2810
  %v2847 = vpack.c.bf16 %v2813, %v2812
  %v2848 = vpack.c.bf16 %v2815, %v2814
  %v2849 = vpack.c.bf16 %v2817, %v2816
  %v2850 = vld [vmem:[%s6] sm:$0xff]
  %v2851 = vld [vmem:[%s6 + $0x8] sm:$0xff]
  %v2852 = vld [vmem:[%s6 + $0x10] sm:$0xff]
  %v2853 = vld [vmem:[%s6 + $0x18] sm:$0xff]
  %v2854 = vld [vmem:[%s6 + $0x20] sm:$0xff]
  %v2855 = vld [vmem:[%s6 + $0x28] sm:$0xff]
  %v2856 = vld [vmem:[%s6 + $0x30] sm:$0xff]
  %v2857 = vld [vmem:[%s6 + $0x38] sm:$0xff]
  %s2858 = scalar_lea.vmem %s9, 5
  %v2859 = vld [vmem:[%s2858] ss:$8 sm:$0x3]
  %v2861 = vlaneseq
  %v2862 = vshrl.u32 %v2861, 7
  %v2863 = vsub.s32 0, %v2862
  %v2864 = vrot.slane %v2859, %v2863
  %v2865 = vlaneseq
  %v2866 = vshrl.u32 %v2865, 7
  %v2867 = vsub.s32 1, %v2866
  %v2868 = vrot.slane %v2859, %v2867
  %v2879 = vunpack.c.l.b16 %v2850
  %v2880 = vunpack.c.h.b16 %v2850
  %v2881 = vunpack.c.l.b16 %v2851
  %v2882 = vunpack.c.h.b16 %v2851
  %v2883 = vunpack.c.l.b16 %v2852
  %v2884 = vunpack.c.h.b16 %v2852
  %v2885 = vunpack.c.l.b16 %v2853
  %v2886 = vunpack.c.h.b16 %v2853
  %v2887 = vunpack.c.l.b16 %v2854
  %v2888 = vunpack.c.h.b16 %v2854
  %v2889 = vunpack.c.l.b16 %v2855
  %v2890 = vunpack.c.h.b16 %v2855
  %v2891 = vunpack.c.l.b16 %v2856
  %v2892 = vunpack.c.h.b16 %v2856
  %v2893 = vunpack.c.l.b16 %v2857
  %v2894 = vunpack.c.h.b16 %v2857
  %v2895 = vpack.c.b16 %v2881, %v2879
  %v2896 = vpack.c.b16 %v2882, %v2880
  %v2897 = vpack.c.b16 %v2885, %v2883
  %v2898 = vpack.c.b16 %v2886, %v2884
  %v2899 = vpack.c.b16 %v2889, %v2887
  %v2900 = vpack.c.b16 %v2890, %v2888
  %v2901 = vpack.c.b16 %v2893, %v2891
  %v2902 = vpack.c.b16 %v2894, %v2892
  %v2912 = vsel %vm692, %v2818, 0
  %v2915 = vsel %vm692, %v2819, 0
  %v2918 = vsel %vm692, %v2820, 0
  %v2921 = vsel %vm692, %v2821, 0
  %v2924 = vsel %vm692, %v2822, 0
  %v2927 = vsel %vm692, %v2823, 0
  %v2930 = vsel %vm692, %v2824, 0
  %v2933 = vsel %vm692, %v2825, 0
  %v2936 = vsel %vm692, %v2826, 0
  %v2939 = vsel %vm692, %v2827, 0
  %v2942 = vsel %vm692, %v2828, 0
  %v2945 = vsel %vm692, %v2829, 0
  %v2948 = vsel %vm692, %v2830, 0
  %v2951 = vsel %vm692, %v2831, 0
  %v2954 = vsel %vm692, %v2832, 0
  %v2957 = vsel %vm692, %v2833, 0
  %v2960 = vsel %vm692, %v2834, 0
  %v2963 = vsel %vm692, %v2835, 0
  %v2966 = vsel %vm692, %v2836, 0
  %v2969 = vsel %vm692, %v2837, 0
  %v2972 = vsel %vm692, %v2838, 0
  %v2975 = vsel %vm692, %v2839, 0
  %v2978 = vsel %vm692, %v2840, 0
  %v2981 = vsel %vm692, %v2841, 0
  %v2984 = vsel %vm692, %v2842, 0
  %v2987 = vsel %vm692, %v2843, 0
  %v2990 = vsel %vm692, %v2844, 0
  %v2993 = vsel %vm692, %v2845, 0
  %v2996 = vsel %vm692, %v2846, 0
  %v2999 = vsel %vm692, %v2847, 0
  %v3002 = vsel %vm692, %v2848, 0
  %v3005 = vsel %vm692, %v2849, 0
  %3007 = vmatprep.subr.bf16.mxu0 %v2896
  %3008 = vmatpush1.bf16.msra.mxu0 %v2895
  %3009 = vmatprep.subr.bf16.mxu0 %v2898
  %3010 = vmatpush1.bf16.msra.mxu0 %v2897
  %3011 = vmatprep.subr.bf16.mxu0 %v2900
  %3012 = vmatpush1.bf16.msra.mxu0 %v2899
  %3013 = vmatprep.subr.bf16.mxu0 %v2902
  %3014 = vmatpush1.bf16.msra.mxu0 %v2901
  %3015 = vmatprep.subr.bf16.mxu0 0
  %3016 = vmatpush1.bf16.msra.mxu0 0
  %3017 = vmatprep.subr.bf16.mxu0 0
  %3018 = vmatpush1.bf16.msra.mxu0 0
  %3019 = vmatprep.subr.bf16.mxu0 0
  %3020 = vmatpush1.bf16.msra.mxu0 0
  %3021 = vmatprep.subr.bf16.mxu0 0
  %3022 = vmatpush1.bf16.msra.mxu0 0
  %3023 = vmatprep.subr.bf16.mxu0 0
  %3024 = vmatpush1.bf16.msra.mxu0 0
  %3025 = vmatprep.subr.bf16.mxu0 0
  %3026 = vmatpush1.bf16.msra.mxu0 0
  %3027 = vmatprep.subr.bf16.mxu0 0
  %3028 = vmatpush1.bf16.msra.mxu0 0
  %3029 = vmatprep.subr.bf16.mxu0 0
  %3030 = vmatpush1.bf16.msra.mxu0 0
  %3031 = vmatprep.subr.bf16.mxu0 0
  %3032 = vmatpush1.bf16.msra.mxu0 0
  %3033 = vmatprep.subr.bf16.mxu0 0
  %3034 = vmatpush1.bf16.msra.mxu0 0
  %3035 = vmatprep.subr.bf16.mxu0 0
  %3036 = vmatpush1.bf16.msra.mxu0 0
  %3037 = vmatprep.subr.bf16.mxu0 0
  %3038 = vmatpush1.bf16.msra.mxu0 0
  %3039 = vmatprep.mubr.bf16.mxu0 0
  %3040 = vmatmul.mubr.bf16.gmra.mrb[0].mxu0 %v2912
  %v3041 = vpop.f32.mrb[0].mxu0
  %v3042 = vadd.f32 %v2864, %v3041
  %v3043 = vpop.f32.mrb[0].mxu0
  %v3044 = vadd.f32 %v2868, %v3043
  %v3045 = vpop.f32.mrb[0].mxu0
  %v3046 = vadd.f32 %v2864, %v3045
  %v3047 = vpop.f32.mrb[0].mxu0
  %v3048 = vadd.f32 %v2868, %v3047
  %3049 = vmatprep.mubr.bf16.mxu0 0
  %3050 = vmatmul.mubr.bf16.gmra.mrb[0].mxu0 %v2915
  %v3051 = vpop.f32.mrb[0].mxu0
  %v3052 = vadd.f32 %v2864, %v3051
  %v3053 = vpop.f32.mrb[0].mxu0
  %v3054 = vadd.f32 %v2868, %v3053
  %v3055 = vpop.f32.mrb[0].mxu0
  %v3056 = vadd.f32 %v2864, %v3055
  %v3057 = vpop.f32.mrb[0].mxu0
  %v3058 = vadd.f32 %v2868, %v3057
  %3059 = vmatprep.mubr.bf16.mxu0 0
  %3060 = vmatmul.mubr.bf16.gmra.mrb[0].mxu0 %v2918
  %v3061 = vpop.f32.mrb[0].mxu0
  %v3062 = vadd.f32 %v2864, %v3061
  %v3063 = vpop.f32.mrb[0].mxu0
  %v3064 = vadd.f32 %v2868, %v3063
  %v3065 = vpop.f32.mrb[0].mxu0
  %v3066 = vadd.f32 %v2864, %v3065
  %v3067 = vpop.f32.mrb[0].mxu0
  %v3068 = vadd.f32 %v2868, %v3067
  %3069 = vmatprep.mubr.bf16.mxu0 0
  %3070 = vmatmul.mubr.bf16.gmra.mrb[0].mxu0 %v2921
  %v3071 = vpop.f32.mrb[0].mxu0
  %v3072 = vadd.f32 %v2864, %v3071
  %v3073 = vpop.f32.mrb[0].mxu0
  %v3074 = vadd.f32 %v2868, %v3073
  %v3075 = vpop.f32.mrb[0].mxu0
  %v3076 = vadd.f32 %v2864, %v3075
  %v3077 = vpop.f32.mrb[0].mxu0
  %v3078 = vadd.f32 %v2868, %v3077
  %3079 = vmatprep.mubr.bf16.mxu0 0
  %3080 = vmatmul.mubr.bf16.gmra.mrb[0].mxu0 %v2924
  %v3081 = vpop.f32.mrb[0].mxu0
  %v3082 = vadd.f32 %v2864, %v3081
  %v3083 = vpop.f32.mrb[0].mxu0
  %v3084 = vadd.f32 %v2868, %v3083
  %v3085 = vpop.f32.mrb[0].mxu0
  %v3086 = vadd.f32 %v2864, %v3085
  %v3087 = vpop.f32.mrb[0].mxu0
  %v3088 = vadd.f32 %v2868, %v3087
  %3089 = vmatprep.mubr.bf16.mxu0 0
  %3090 = vmatmul.mubr.bf16.gmra.mrb[0].mxu0 %v2927
  %v3091 = vpop.f32.mrb[0].mxu0
  %v3092 = vadd.f32 %v2864, %v3091
  %v3093 = vpop.f32.mrb[0].mxu0
  %v3094 = vadd.f32 %v2868, %v3093
  %v3095 = vpop.f32.mrb[0].mxu0
  %v3096 = vadd.f32 %v2864, %v3095
  %v3097 = vpop.f32.mrb[0].mxu0
  %v3098 = vadd.f32 %v2868, %v3097
  %3099 = vmatprep.mubr.bf16.mxu0 0
  %3100 = vmatmul.mubr.bf16.gmra.mrb[0].mxu0 %v2930
  %v3101 = vpop.f32.mrb[0].mxu0
  %v3102 = vadd.f32 %v2864, %v3101
  %v3103 = vpop.f32.mrb[0].mxu0
  %v3104 = vadd.f32 %v2868, %v3103
  %v3105 = vpop.f32.mrb[0].mxu0
  %v3106 = vadd.f32 %v2864, %v3105
  %v3107 = vpop.f32.mrb[0].mxu0
  %v3108 = vadd.f32 %v2868, %v3107
  %3109 = vmatprep.mubr.bf16.mxu0 0
  %3110 = vmatmul.mubr.bf16.gmra.mrb[0].mxu0 %v2933
  %v3111 = vpop.f32.mrb[0].mxu0
  %v3112 = vadd.f32 %v2864, %v3111
  %v3113 = vpop.f32.mrb[0].mxu0
  %v3114 = vadd.f32 %v2868, %v3113
  %v3115 = vpop.f32.mrb[0].mxu0
  %v3116 = vadd.f32 %v2864, %v3115
  %v3117 = vpop.f32.mrb[0].mxu0
  %v3118 = vadd.f32 %v2868, %v3117
  %3119 = vmatprep.mubr.bf16.mxu0 0
  %3120 = vmatmul.mubr.bf16.gmra.mrb[0].mxu0 %v2936
  %v3121 = vpop.f32.mrb[0].mxu0
  %v3122 = vadd.f32 %v2864, %v3121
  %v3123 = vpop.f32.mrb[0].mxu0
  %v3124 = vadd.f32 %v2868, %v3123
  %v3125 = vpop.f32.mrb[0].mxu0
  %v3126 = vadd.f32 %v2864, %v3125
  %v3127 = vpop.f32.mrb[0].mxu0
  %v3128 = vadd.f32 %v2868, %v3127
  %3129 = vmatprep.mubr.bf16.mxu0 0
  %3130 = vmatmul.mubr.bf16.gmra.mrb[0].mxu0 %v2939
  %v3131 = vpop.f32.mrb[0].mxu0
  %v3132 = vadd.f32 %v2864, %v3131
  %v3133 = vpop.f32.mrb[0].mxu0
  %v3134 = vadd.f32 %v2868, %v3133
  %v3135 = vpop.f32.mrb[0].mxu0
  %v3136 = vadd.f32 %v2864, %v3135
  %v3137 = vpop.f32.mrb[0].mxu0
  %v3138 = vadd.f32 %v2868, %v3137
  %3139 = vmatprep.mubr.bf16.mxu0 0
  %3140 = vmatmul.mubr.bf16.gmra.mrb[0].mxu0 %v2942
  %v3141 = vpop.f32.mrb[0].mxu0
  %v3142 = vadd.f32 %v2864, %v3141
  %v3143 = vpop.f32.mrb[0].mxu0
  %v3144 = vadd.f32 %v2868, %v3143
  %v3145 = vpop.f32.mrb[0].mxu0
  %v3146 = vadd.f32 %v2864, %v3145
  %v3147 = vpop.f32.mrb[0].mxu0
  %v3148 = vadd.f32 %v2868, %v3147
  %3149 = vmatprep.mubr.bf16.mxu0 0
  %3150 = vmatmul.mubr.bf16.gmra.mrb[0].mxu0 %v2945
  %v3151 = vpop.f32.mrb[0].mxu0
  %v3152 = vadd.f32 %v2864, %v3151
  %v3153 = vpop.f32.mrb[0].mxu0
  %v3154 = vadd.f32 %v2868, %v3153
  %v3155 = vpop.f32.mrb[0].mxu0
  %v3156 = vadd.f32 %v2864, %v3155
  %v3157 = vpop.f32.mrb[0].mxu0
  %v3158 = vadd.f32 %v2868, %v3157
  %3159 = vmatprep.mubr.bf16.mxu0 0
  %3160 = vmatmul.mubr.bf16.gmra.mrb[0].mxu0 %v2948
  %v3161 = vpop.f32.mrb[0].mxu0
  %v3162 = vadd.f32 %v2864, %v3161
  %v3163 = vpop.f32.mrb[0].mxu0
  %v3164 = vadd.f32 %v2868, %v3163
  %v3165 = vpop.f32.mrb[0].mxu0
  %v3166 = vadd.f32 %v2864, %v3165
  %v3167 = vpop.f32.mrb[0].mxu0
  %v3168 = vadd.f32 %v2868, %v3167
  %3169 = vmatprep.mubr.bf16.mxu0 0
  %3170 = vmatmul.mubr.bf16.gmra.mrb[0].mxu0 %v2951
  %v3171 = vpop.f32.mrb[0].mxu0
  %v3172 = vadd.f32 %v2864, %v3171
  %v3173 = vpop.f32.mrb[0].mxu0
  %v3174 = vadd.f32 %v2868, %v3173
  %v3175 = vpop.f32.mrb[0].mxu0
  %v3176 = vadd.f32 %v2864, %v3175
  %v3177 = vpop.f32.mrb[0].mxu0
  %v3178 = vadd.f32 %v2868, %v3177
  %3179 = vmatprep.mubr.bf16.mxu0 0
  %3180 = vmatmul.mubr.bf16.gmra.mrb[0].mxu0 %v2954
  %v3181 = vpop.f32.mrb[0].mxu0
  %v3182 = vadd.f32 %v2864, %v3181
  %v3183 = vpop.f32.mrb[0].mxu0
  %v3184 = vadd.f32 %v2868, %v3183
  %v3185 = vpop.f32.mrb[0].mxu0
  %v3186 = vadd.f32 %v2864, %v3185
  %v3187 = vpop.f32.mrb[0].mxu0
  %v3188 = vadd.f32 %v2868, %v3187
  %3189 = vmatprep.mubr.bf16.mxu0 0
  %3190 = vmatmul.mubr.bf16.gmra.mrb[0].mxu0 %v2957
  %v3191 = vpop.f32.mrb[0].mxu0
  %v3192 = vadd.f32 %v2864, %v3191
  %v3193 = vpop.f32.mrb[0].mxu0
  %v3194 = vadd.f32 %v2868, %v3193
  %v3195 = vpop.f32.mrb[0].mxu0
  %v3196 = vadd.f32 %v2864, %v3195
  %v3197 = vpop.f32.mrb[0].mxu0
  %v3198 = vadd.f32 %v2868, %v3197
  %3199 = vmatprep.mubr.bf16.mxu0 0
  %3200 = vmatmul.mubr.bf16.gmra.mrb[0].mxu0 %v2960
  %v3201 = vpop.f32.mrb[0].mxu0
  %v3202 = vadd.f32 %v2864, %v3201
  %v3203 = vpop.f32.mrb[0].mxu0
  %v3204 = vadd.f32 %v2868, %v3203
  %v3205 = vpop.f32.mrb[0].mxu0
  %v3206 = vadd.f32 %v2864, %v3205
  %v3207 = vpop.f32.mrb[0].mxu0
  %v3208 = vadd.f32 %v2868, %v3207
  %3209 = vmatprep.mubr.bf16.mxu0 0
  %3210 = vmatmul.mubr.bf16.gmra.mrb[0].mxu0 %v2963
  %v3211 = vpop.f32.mrb[0].mxu0
  %v3212 = vadd.f32 %v2864, %v3211
  %v3213 = vpop.f32.mrb[0].mxu0
  %v3214 = vadd.f32 %v2868, %v3213
  %v3215 = vpop.f32.mrb[0].mxu0
  %v3216 = vadd.f32 %v2864, %v3215
  %v3217 = vpop.f32.mrb[0].mxu0
  %v3218 = vadd.f32 %v2868, %v3217
  %3219 = vmatprep.mubr.bf16.mxu0 0
  %3220 = vmatmul.mubr.bf16.gmra.mrb[0].mxu0 %v2966
  %v3221 = vpop.f32.mrb[0].mxu0
  %v3222 = vadd.f32 %v2864, %v3221
  %v3223 = vpop.f32.mrb[0].mxu0
  %v3224 = vadd.f32 %v2868, %v3223
  %v3225 = vpop.f32.mrb[0].mxu0
  %v3226 = vadd.f32 %v2864, %v3225
  %v3227 = vpop.f32.mrb[0].mxu0
  %v3228 = vadd.f32 %v2868, %v3227
  %3229 = vmatprep.mubr.bf16.mxu0 0
  %3230 = vmatmul.mubr.bf16.gmra.mrb[0].mxu0 %v2969
  %v3231 = vpop.f32.mrb[0].mxu0
  %v3232 = vadd.f32 %v2864, %v3231
  %v3233 = vpop.f32.mrb[0].mxu0
  %v3234 = vadd.f32 %v2868, %v3233
  %v3235 = vpop.f32.mrb[0].mxu0
  %v3236 = vadd.f32 %v2864, %v3235
  %v3237 = vpop.f32.mrb[0].mxu0
  %v3238 = vadd.f32 %v2868, %v3237
  %3239 = vmatprep.mubr.bf16.mxu0 0
  %3240 = vmatmul.mubr.bf16.gmra.mrb[0].mxu0 %v2972
  %v3241 = vpop.f32.mrb[0].mxu0
  %v3242 = vadd.f32 %v2864, %v3241
  %v3243 = vpop.f32.mrb[0].mxu0
  %v3244 = vadd.f32 %v2868, %v3243
  %v3245 = vpop.f32.mrb[0].mxu0
  %v3246 = vadd.f32 %v2864, %v3245
  %v3247 = vpop.f32.mrb[0].mxu0
  %v3248 = vadd.f32 %v2868, %v3247
  %3249 = vmatprep.mubr.bf16.mxu0 0
  %3250 = vmatmul.mubr.bf16.gmra.mrb[0].mxu0 %v2975
  %v3251 = vpop.f32.mrb[0].mxu0
  %v3252 = vadd.f32 %v2864, %v3251
  %v3253 = vpop.f32.mrb[0].mxu0
  %v3254 = vadd.f32 %v2868, %v3253
  %v3255 = vpop.f32.mrb[0].mxu0
  %v3256 = vadd.f32 %v2864, %v3255
  %v3257 = vpop.f32.mrb[0].mxu0
  %v3258 = vadd.f32 %v2868, %v3257
  %3259 = vmatprep.mubr.bf16.mxu0 0
  %3260 = vmatmul.mubr.bf16.gmra.mrb[0].mxu0 %v2978
  %v3261 = vpop.f32.mrb[0].mxu0
  %v3262 = vadd.f32 %v2864, %v3261
  %v3263 = vpop.f32.mrb[0].mxu0
  %v3264 = vadd.f32 %v2868, %v3263
  %v3265 = vpop.f32.mrb[0].mxu0
  %v3266 = vadd.f32 %v2864, %v3265
  %v3267 = vpop.f32.mrb[0].mxu0
  %v3268 = vadd.f32 %v2868, %v3267
  %3269 = vmatprep.mubr.bf16.mxu0 0
  %3270 = vmatmul.mubr.bf16.gmra.mrb[0].mxu0 %v2981
  %v3271 = vpop.f32.mrb[0].mxu0
  %v3272 = vadd.f32 %v2864, %v3271
  %v3273 = vpop.f32.mrb[0].mxu0
  %v3274 = vadd.f32 %v2868, %v3273
  %v3275 = vpop.f32.mrb[0].mxu0
  %v3276 = vadd.f32 %v2864, %v3275
  %v3277 = vpop.f32.mrb[0].mxu0
  %v3278 = vadd.f32 %v2868, %v3277
  %3279 = vmatprep.mubr.bf16.mxu0 0
  %3280 = vmatmul.mubr.bf16.gmra.mrb[0].mxu0 %v2984
  %v3281 = vpop.f32.mrb[0].mxu0
  %v3282 = vadd.f32 %v2864, %v3281
  %v3283 = vpop.f32.mrb[0].mxu0
  %v3284 = vadd.f32 %v2868, %v3283
  %v3285 = vpop.f32.mrb[0].mxu0
  %v3286 = vadd.f32 %v2864, %v3285
  %v3287 = vpop.f32.mrb[0].mxu0
  %v3288 = vadd.f32 %v2868, %v3287
  %3289 = vmatprep.mubr.bf16.mxu0 0
  %3290 = vmatmul.mubr.bf16.gmra.mrb[0].mxu0 %v2987
  %v3291 = vpop.f32.mrb[0].mxu0
  %v3292 = vadd.f32 %v2864, %v3291
  %v3293 = vpop.f32.mrb[0].mxu0
  %v3294 = vadd.f32 %v2868, %v3293
  %v3295 = vpop.f32.mrb[0].mxu0
  %v3296 = vadd.f32 %v2864, %v3295
  %v3297 = vpop.f32.mrb[0].mxu0
  %v3298 = vadd.f32 %v2868, %v3297
  %3299 = vmatprep.mubr.bf16.mxu0 0
  %3300 = vmatmul.mubr.bf16.gmra.mrb[0].mxu0 %v2990
  %v3301 = vpop.f32.mrb[0].mxu0
  %v3302 = vadd.f32 %v2864, %v3301
  %v3303 = vpop.f32.mrb[0].mxu0
  %v3304 = vadd.f32 %v2868, %v3303
  %v3305 = vpop.f32.mrb[0].mxu0
  %v3306 = vadd.f32 %v2864, %v3305
  %v3307 = vpop.f32.mrb[0].mxu0
  %v3308 = vadd.f32 %v2868, %v3307
  %3309 = vmatprep.mubr.bf16.mxu0 0
  %3310 = vmatmul.mubr.bf16.gmra.mrb[0].mxu0 %v2993
  %v3311 = vpop.f32.mrb[0].mxu0
  %v3312 = vadd.f32 %v2864, %v3311
  %v3313 = vpop.f32.mrb[0].mxu0
  %v3314 = vadd.f32 %v2868, %v3313
  %v3315 = vpop.f32.mrb[0].mxu0
  %v3316 = vadd.f32 %v2864, %v3315
  %v3317 = vpop.f32.mrb[0].mxu0
  %v3318 = vadd.f32 %v2868, %v3317
  %3319 = vmatprep.mubr.bf16.mxu0 0
  %3320 = vmatmul.mubr.bf16.gmra.mrb[0].mxu0 %v2996
  %v3321 = vpop.f32.mrb[0].mxu0
  %v3322 = vadd.f32 %v2864, %v3321
  %v3323 = vpop.f32.mrb[0].mxu0
  %v3324 = vadd.f32 %v2868, %v3323
  %v3325 = vpop.f32.mrb[0].mxu0
  %v3326 = vadd.f32 %v2864, %v3325
  %v3327 = vpop.f32.mrb[0].mxu0
  %v3328 = vadd.f32 %v2868, %v3327
  %3329 = vmatprep.mubr.bf16.mxu0 0
  %3330 = vmatmul.mubr.bf16.gmra.mrb[0].mxu0 %v2999
  %v3331 = vpop.f32.mrb[0].mxu0
  %v3332 = vadd.f32 %v2864, %v3331
  %v3333 = vpop.f32.mrb[0].mxu0
  %v3334 = vadd.f32 %v2868, %v3333
  %v3335 = vpop.f32.mrb[0].mxu0
  %v3336 = vadd.f32 %v2864, %v3335
  %v3337 = vpop.f32.mrb[0].mxu0
  %v3338 = vadd.f32 %v2868, %v3337
  %3339 = vmatprep.mubr.bf16.mxu0 0
  %3340 = vmatmul.mubr.bf16.gmra.mrb[0].mxu0 %v3002
  %v3341 = vpop.f32.mrb[0].mxu0
  %v3342 = vadd.f32 %v2864, %v3341
  %v3343 = vpop.f32.mrb[0].mxu0
  %v3344 = vadd.f32 %v2868, %v3343
  %v3345 = vpop.f32.mrb[0].mxu0
  %v3346 = vadd.f32 %v2864, %v3345
  %v3347 = vpop.f32.mrb[0].mxu0
  %v3348 = vadd.f32 %v2868, %v3347
  %3349 = vmatprep.mubr.bf16.mxu0 0
  %3350 = vmatmul.mubr.bf16.gmra.mrb[0].mxu0 %v3005
  %v3351 = vpop.f32.mrb[0].mxu0
  %v3352 = vadd.f32 %v2864, %v3351
  %v3353 = vpop.f32.mrb[0].mxu0
  %v3354 = vadd.f32 %v2868, %v3353
  %v3355 = vpop.f32.mrb[0].mxu0
  %v3356 = vadd.f32 %v2864, %v3355
  %v3357 = vpop.f32.mrb[0].mxu0
  %v3358 = vadd.f32 %v2868, %v3357
  %3359 = vdwg.mxu0
  %v3360 = vtanh.pop %v3042
  %v3361 = vtanh.pop %v3044
  %v3362 = vtanh.pop %v3046
  %v3363 = vtanh.pop %v3048
  %v3364 = vtanh.pop %v3052
  %v3365 = vtanh.pop %v3054
  %v3366 = vtanh.pop %v3056
  %v3367 = vtanh.pop %v3058
  %v3368 = vtanh.pop %v3062
  %v3369 = vtanh.pop %v3064
  %v3370 = vtanh.pop %v3066
  %v3371 = vtanh.pop %v3068
  %v3372 = vtanh.pop %v3072
  %v3373 = vtanh.pop %v3074
  %v3374 = vtanh.pop %v3076
  %v3375 = vtanh.pop %v3078
  %v3376 = vtanh.pop %v3082
  %v3377 = vtanh.pop %v3084
  %v3378 = vtanh.pop %v3086
  %v3379 = vtanh.pop %v3088
  %v3380 = vtanh.pop %v3092
  %v3381 = vtanh.pop %v3094
  %v3382 = vtanh.pop %v3096
  %v3383 = vtanh.pop %v3098
  %v3384 = vtanh.pop %v3102
  %v3385 = vtanh.pop %v3104
  %v3386 = vtanh.pop %v3106
  %v3387 = vtanh.pop %v3108
  %v3388 = vtanh.pop %v3112
  %v3389 = vtanh.pop %v3114
  %v3390 = vtanh.pop %v3116
  %v3391 = vtanh.pop %v3118
  %v3392 = vtanh.pop %v3122
  %v3393 = vtanh.pop %v3124
  %v3394 = vtanh.pop %v3126
  %v3395 = vtanh.pop %v3128
  %v3396 = vtanh.pop %v3132
  %v3397 = vtanh.pop %v3134
  %v3398 = vtanh.pop %v3136
  %v3399 = vtanh.pop %v3138
  %v3400 = vtanh.pop %v3142
  %v3401 = vtanh.pop %v3144
  %v3402 = vtanh.pop %v3146
  %v3403 = vtanh.pop %v3148
  %v3404 = vtanh.pop %v3152
  %v3405 = vtanh.pop %v3154
  %v3406 = vtanh.pop %v3156
  %v3407 = vtanh.pop %v3158
  %v3408 = vtanh.pop %v3162
  %v3409 = vtanh.pop %v3164
  %v3410 = vtanh.pop %v3166
  %v3411 = vtanh.pop %v3168
  %v3412 = vtanh.pop %v3172
  %v3413 = vtanh.pop %v3174
  %v3414 = vtanh.pop %v3176
  %v3415 = vtanh.pop %v3178
  %v3416 = vtanh.pop %v3182
  %v3417 = vtanh.pop %v3184
  %v3418 = vtanh.pop %v3186
  %v3419 = vtanh.pop %v3188
  %v3420 = vtanh.pop %v3192
  %v3421 = vtanh.pop %v3194
  %v3422 = vtanh.pop %v3196
  %v3423 = vtanh.pop %v3198
  %v3424 = vtanh.pop %v3202
  %v3425 = vtanh.pop %v3204
  %v3426 = vtanh.pop %v3206
  %v3427 = vtanh.pop %v3208
  %v3428 = vtanh.pop %v3212
  %v3429 = vtanh.pop %v3214
  %v3430 = vtanh.pop %v3216
  %v3431 = vtanh.pop %v3218
  %v3432 = vtanh.pop %v3222
  %v3433 = vtanh.pop %v3224
  %v3434 = vtanh.pop %v3226
  %v3435 = vtanh.pop %v3228
  %v3436 = vtanh.pop %v3232
  %v3437 = vtanh.pop %v3234
  %v3438 = vtanh.pop %v3236
  %v3439 = vtanh.pop %v3238
  %v3440 = vtanh.pop %v3242
  %v3441 = vtanh.pop %v3244
  %v3442 = vtanh.pop %v3246
  %v3443 = vtanh.pop %v3248
  %v3444 = vtanh.pop %v3252
  %v3445 = vtanh.pop %v3254
  %v3446 = vtanh.pop %v3256
  %v3447 = vtanh.pop %v3258
  %v3448 = vtanh.pop %v3262
  %v3449 = vtanh.pop %v3264
  %v3450 = vtanh.pop %v3266
  %v3451 = vtanh.pop %v3268
  %v3452 = vtanh.pop %v3272
  %v3453 = vtanh.pop %v3274
  %v3454 = vtanh.pop %v3276
  %v3455 = vtanh.pop %v3278
  %v3456 = vtanh.pop %v3282
  %v3457 = vtanh.pop %v3284
  %v3458 = vtanh.pop %v3286
  %v3459 = vtanh.pop %v3288
  %v3460 = vtanh.pop %v3292
  %v3461 = vtanh.pop %v3294
  %v3462 = vtanh.pop %v3296
  %v3463 = vtanh.pop %v3298
  %v3464 = vtanh.pop %v3302
  %v3465 = vtanh.pop %v3304
  %v3466 = vtanh.pop %v3306
  %v3467 = vtanh.pop %v3308
  %v3468 = vtanh.pop %v3312
  %v3469 = vtanh.pop %v3314
  %v3470 = vtanh.pop %v3316
  %v3471 = vtanh.pop %v3318
  %v3472 = vtanh.pop %v3322
  %v3473 = vtanh.pop %v3324
  %v3474 = vtanh.pop %v3326
  %v3475 = vtanh.pop %v3328
  %v3476 = vtanh.pop %v3332
  %v3477 = vtanh.pop %v3334
  %v3478 = vtanh.pop %v3336
  %v3479 = vtanh.pop %v3338
  %v3480 = vtanh.pop %v3342
  %v3481 = vtanh.pop %v3344
  %v3482 = vtanh.pop %v3346
  %v3483 = vtanh.pop %v3348
  %v3484 = vtanh.pop %v3352
  %v3485 = vtanh.pop %v3354
  %v3486 = vtanh.pop %v3356
  %v3487 = vtanh.pop %v3358
  %v3488 = vpack.c.bf16 %v3362, %v3360
  %v3489 = vpack.c.bf16 %v3363, %v3361
  %v3490 = vpack.c.bf16 %v3366, %v3364
  %v3491 = vpack.c.bf16 %v3367, %v3365
  %v3492 = vpack.c.bf16 %v3370, %v3368
  %v3493 = vpack.c.bf16 %v3371, %v3369
  %v3494 = vpack.c.bf16 %v3374, %v3372
  %v3495 = vpack.c.bf16 %v3375, %v3373
  %v3496 = vpack.c.bf16 %v3378, %v3376
  %v3497 = vpack.c.bf16 %v3379, %v3377
  %v3498 = vpack.c.bf16 %v3382, %v3380
  %v3499 = vpack.c.bf16 %v3383, %v3381
  %v3500 = vpack.c.bf16 %v3386, %v3384
  %v3501 = vpack.c.bf16 %v3387, %v3385
  %v3502 = vpack.c.bf16 %v3390, %v3388
  %v3503 = vpack.c.bf16 %v3391, %v3389
  %v3504 = vpack.c.bf16 %v3394, %v3392
  %v3505 = vpack.c.bf16 %v3395, %v3393
  %v3506 = vpack.c.bf16 %v3398, %v3396
  %v3507 = vpack.c.bf16 %v3399, %v3397
  %v3508 = vpack.c.bf16 %v3402, %v3400
  %v3509 = vpack.c.bf16 %v3403, %v3401
  %v3510 = vpack.c.bf16 %v3406, %v3404
  %v3511 = vpack.c.bf16 %v3407, %v3405
  %v3512 = vpack.c.bf16 %v3410, %v3408
  %v3513 = vpack.c.bf16 %v3411, %v3409
  %v3514 = vpack.c.bf16 %v3414, %v3412
  %v3515 = vpack.c.bf16 %v3415, %v3413
  %v3516 = vpack.c.bf16 %v3418, %v3416
  %v3517 = vpack.c.bf16 %v3419, %v3417
  %v3518 = vpack.c.bf16 %v3422, %v3420
  %v3519 = vpack.c.bf16 %v3423, %v3421
  %v3520 = vpack.c.bf16 %v3426, %v3424
  %v3521 = vpack.c.bf16 %v3427, %v3425
  %v3522 = vpack.c.bf16 %v3430, %v3428
  %v3523 = vpack.c.bf16 %v3431, %v3429
  %v3524 = vpack.c.bf16 %v3434, %v3432
  %v3525 = vpack.c.bf16 %v3435, %v3433
  %v3526 = vpack.c.bf16 %v3438, %v3436
  %v3527 = vpack.c.bf16 %v3439, %v3437
  %v3528 = vpack.c.bf16 %v3442, %v3440
  %v3529 = vpack.c.bf16 %v3443, %v3441
  %v3530 = vpack.c.bf16 %v3446, %v3444
  %v3531 = vpack.c.bf16 %v3447, %v3445
  %v3532 = vpack.c.bf16 %v3450, %v3448
  %v3533 = vpack.c.bf16 %v3451, %v3449
  %v3534 = vpack.c.bf16 %v3454, %v3452
  %v3535 = vpack.c.bf16 %v3455, %v3453
  %v3536 = vpack.c.bf16 %v3458, %v3456
  %v3537 = vpack.c.bf16 %v3459, %v3457
  %v3538 = vpack.c.bf16 %v3462, %v3460
  %v3539 = vpack.c.bf16 %v3463, %v3461
  %v3540 = vpack.c.bf16 %v3466, %v3464
  %v3541 = vpack.c.bf16 %v3467, %v3465
  %v3542 = vpack.c.bf16 %v3470, %v3468
  %v3543 = vpack.c.bf16 %v3471, %v3469
  %v3544 = vpack.c.bf16 %v3474, %v3472
  %v3545 = vpack.c.bf16 %v3475, %v3473
  %v3546 = vpack.c.bf16 %v3478, %v3476
  %v3547 = vpack.c.bf16 %v3479, %v3477
  %v3548 = vpack.c.bf16 %v3482, %v3480
  %v3549 = vpack.c.bf16 %v3483, %v3481
  %v3550 = vpack.c.bf16 %v3486, %v3484
  %v3551 = vpack.c.bf16 %v3487, %v3485
  %v3552 = vld [vmem:[%s7] sm:$0xf]
  %v3553 = vld [vmem:[%s7 + $0x4] sm:$0xf]
  %v3554 = vld [vmem:[%s7 + $0x8] sm:$0xf]
  %v3555 = vld [vmem:[%s7 + $0xc] sm:$0xf]
  %v3556 = vld [vmem:[%s7 + $0x10] sm:$0xf]
  %v3557 = vld [vmem:[%s7 + $0x14] sm:$0xf]
  %v3558 = vld [vmem:[%s7 + $0x18] sm:$0xf]
  %v3559 = vld [vmem:[%s7 + $0x1c] sm:$0xf]
  %v3560 = vld [vmem:[%s7 + $0x20] sm:$0xf]
  %v3561 = vld [vmem:[%s7 + $0x24] sm:$0xf]
  %v3562 = vld [vmem:[%s7 + $0x28] sm:$0xf]
  %v3563 = vld [vmem:[%s7 + $0x2c] sm:$0xf]
  %v3564 = vld [vmem:[%s7 + $0x30] sm:$0xf]
  %v3565 = vld [vmem:[%s7 + $0x34] sm:$0xf]
  %v3566 = vld [vmem:[%s7 + $0x38] sm:$0xf]
  %v3567 = vld [vmem:[%s7 + $0x3c] sm:$0xf]
  %v3568 = vld [vmem:[%s7 + $0x40] sm:$0xf]
  %v3569 = vld [vmem:[%s7 + $0x44] sm:$0xf]
  %v3570 = vld [vmem:[%s7 + $0x48] sm:$0xf]
  %v3571 = vld [vmem:[%s7 + $0x4c] sm:$0xf]
  %v3572 = vld [vmem:[%s7 + $0x50] sm:$0xf]
  %v3573 = vld [vmem:[%s7 + $0x54] sm:$0xf]
  %v3574 = vld [vmem:[%s7 + $0x58] sm:$0xf]
  %v3575 = vld [vmem:[%s7 + $0x5c] sm:$0xf]
  %v3576 = vld [vmem:[%s7 + $0x60] sm:$0xf]
  %v3577 = vld [vmem:[%s7 + $0x64] sm:$0xf]
  %v3578 = vld [vmem:[%s7 + $0x68] sm:$0xf]
  %v3579 = vld [vmem:[%s7 + $0x6c] sm:$0xf]
  %v3580 = vld [vmem:[%s7 + $0x70] sm:$0xf]
  %v3581 = vld [vmem:[%s7 + $0x74] sm:$0xf]
  %v3582 = vld [vmem:[%s7 + $0x78] sm:$0xf]
  %v3583 = vld [vmem:[%s7 + $0x7c] sm:$0xf]
  %v3584 = vld [vmem:[%s9 + $0x6] ss:$0 sm:$0xff]
  %v3617 = vunpack.c.l.b16 %v3552
  %v3618 = vunpack.c.l.b16 %v3553
  %v3619 = vunpack.c.l.b16 %v3554
  %v3620 = vunpack.c.l.b16 %v3555
  %v3621 = vunpack.c.l.b16 %v3556
  %v3622 = vunpack.c.l.b16 %v3557
  %v3623 = vunpack.c.l.b16 %v3558
  %v3624 = vunpack.c.l.b16 %v3559
  %v3625 = vunpack.c.l.b16 %v3560
  %v3626 = vunpack.c.l.b16 %v3561
  %v3627 = vunpack.c.l.b16 %v3562
  %v3628 = vunpack.c.l.b16 %v3563
  %v3629 = vunpack.c.l.b16 %v3564
  %v3630 = vunpack.c.l.b16 %v3565
  %v3631 = vunpack.c.l.b16 %v3566
  %v3632 = vunpack.c.l.b16 %v3567
  %v3633 = vunpack.c.l.b16 %v3568
  %v3634 = vunpack.c.l.b16 %v3569
  %v3635 = vunpack.c.l.b16 %v3570
  %v3636 = vunpack.c.l.b16 %v3571
  %v3637 = vunpack.c.l.b16 %v3572
  %v3638 = vunpack.c.l.b16 %v3573
  %v3639 = vunpack.c.l.b16 %v3574
  %v3640 = vunpack.c.l.b16 %v3575
  %v3641 = vunpack.c.l.b16 %v3576
  %v3642 = vunpack.c.l.b16 %v3577
  %v3643 = vunpack.c.l.b16 %v3578
  %v3644 = vunpack.c.l.b16 %v3579
  %v3645 = vunpack.c.l.b16 %v3580
  %v3646 = vunpack.c.l.b16 %v3581
  %v3647 = vunpack.c.l.b16 %v3582
  %v3648 = vunpack.c.l.b16 %v3583
  %v3649 = vpack.c.b16 %v3618, %v3617
  %v3650 = vpack.c.b16 %v3620, %v3619
  %v3651 = vpack.c.b16 %v3622, %v3621
  %v3652 = vpack.c.b16 %v3624, %v3623
  %v3653 = vpack.c.b16 %v3626, %v3625
  %v3654 = vpack.c.b16 %v3628, %v3627
  %v3655 = vpack.c.b16 %v3630, %v3629
  %v3656 = vpack.c.b16 %v3632, %v3631
  %v3657 = vpack.c.b16 %v3634, %v3633
  %v3658 = vpack.c.b16 %v3636, %v3635
  %v3659 = vpack.c.b16 %v3638, %v3637
  %v3660 = vpack.c.b16 %v3640, %v3639
  %v3661 = vpack.c.b16 %v3642, %v3641
  %v3662 = vpack.c.b16 %v3644, %v3643
  %v3663 = vpack.c.b16 %v3646, %v3645
  %v3664 = vpack.c.b16 %v3648, %v3647
  %3681 = vmatprep.subr.bf16.mxu0 0
  %3682 = vmatpush1.bf16.msra.mxu0 %v3649
  %3683 = vmatprep.subr.bf16.mxu0 0
  %3684 = vmatpush1.bf16.msra.mxu0 %v3650
  %3685 = vmatprep.subr.bf16.mxu0 0
  %3686 = vmatpush1.bf16.msra.mxu0 %v3651
  %3687 = vmatprep.subr.bf16.mxu0 0
  %3688 = vmatpush1.bf16.msra.mxu0 %v3652
  %3689 = vmatprep.subr.bf16.mxu0 0
  %3690 = vmatpush1.bf16.msra.mxu0 %v3653
  %3691 = vmatprep.subr.bf16.mxu0 0
  %3692 = vmatpush1.bf16.msra.mxu0 %v3654
  %3693 = vmatprep.subr.bf16.mxu0 0
  %3694 = vmatpush1.bf16.msra.mxu0 %v3655
  %3695 = vmatprep.subr.bf16.mxu0 0
  %3696 = vmatpush1.bf16.msra.mxu0 %v3656
  %3697 = vmatprep.subr.bf16.mxu0 0
  %3698 = vmatpush1.bf16.msra.mxu0 %v3657
  %3699 = vmatprep.subr.bf16.mxu0 0
  %3700 = vmatpush1.bf16.msra.mxu0 %v3658
  %3701 = vmatprep.subr.bf16.mxu0 0
  %3702 = vmatpush1.bf16.msra.mxu0 %v3659
  %3703 = vmatprep.subr.bf16.mxu0 0
  %3704 = vmatpush1.bf16.msra.mxu0 %v3660
  %3705 = vmatprep.subr.bf16.mxu0 0
  %3706 = vmatpush1.bf16.msra.mxu0 %v3661
  %3707 = vmatprep.subr.bf16.mxu0 0
  %3708 = vmatpush1.bf16.msra.mxu0 %v3662
  %3709 = vmatprep.subr.bf16.mxu0 0
  %3710 = vmatpush1.bf16.msra.mxu0 %v3663
  %3711 = vmatprep.subr.bf16.mxu0 0
  %3712 = vmatpush1.bf16.msra.mxu0 %v3664
  %3713 = vmatprep.mubr.bf16.mxu0 %v3489
  %3714 = vmatmul.mubr.bf16.gmra.mrb[0].mxu0 %v3488
  %v3715 = vpop.f32.mrb[0].mxu0
  %v3716 = vadd.f32 %v3584, %v3715
  %v3717 = vpop.f32.mrb[0].mxu0
  %v3718 = vpop.f32.mrb[0].mxu0
  %v3719 = vadd.f32 %v3584, %v3718
  %v3720 = vpop.f32.mrb[0].mxu0
  %3721 = vmatprep.mubr.bf16.mxu0 %v3491
  %3722 = vmatmul.mubr.bf16.gmra.mrb[0].mxu0 %v3490
  %v3723 = vpop.f32.mrb[0].mxu0
  %v3724 = vadd.f32 %v3584, %v3723
  %v3725 = vpop.f32.mrb[0].mxu0
  %v3726 = vpop.f32.mrb[0].mxu0
  %v3727 = vadd.f32 %v3584, %v3726
  %v3728 = vpop.f32.mrb[0].mxu0
  %3729 = vmatprep.mubr.bf16.mxu0 %v3493
  %3730 = vmatmul.mubr.bf16.gmra.mrb[0].mxu0 %v3492
  %v3731 = vpop.f32.mrb[0].mxu0
  %v3732 = vadd.f32 %v3584, %v3731
  %v3733 = vpop.f32.mrb[0].mxu0
  %v3734 = vpop.f32.mrb[0].mxu0
  %v3735 = vadd.f32 %v3584, %v3734
  %v3736 = vpop.f32.mrb[0].mxu0
  %3737 = vmatprep.mubr.bf16.mxu0 %v3495
  %3738 = vmatmul.mubr.bf16.gmra.mrb[0].mxu0 %v3494
  %v3739 = vpop.f32.mrb[0].mxu0
  %v3740 = vadd.f32 %v3584, %v3739
  %v3741 = vpop.f32.mrb[0].mxu0
  %v3742 = vpop.f32.mrb[0].mxu0
  %v3743 = vadd.f32 %v3584, %v3742
  %v3744 = vpop.f32.mrb[0].mxu0
  %3745 = vmatprep.mubr.bf16.mxu0 %v3497
  %3746 = vmatmul.mubr.bf16.gmra.mrb[0].mxu0 %v3496
  %v3747 = vpop.f32.mrb[0].mxu0
  %v3748 = vadd.f32 %v3584, %v3747
  %v3749 = vpop.f32.mrb[0].mxu0
  %v3750 = vpop.f32.mrb[0].mxu0
  %v3751 = vadd.f32 %v3584, %v3750
  %v3752 = vpop.f32.mrb[0].mxu0
  %3753 = vmatprep.mubr.bf16.mxu0 %v3499
  %3754 = vmatmul.mubr.bf16.gmra.mrb[0].mxu0 %v3498
  %v3755 = vpop.f32.mrb[0].mxu0
  %v3756 = vadd.f32 %v3584, %v3755
  %v3757 = vpop.f32.mrb[0].mxu0
  %v3758 = vpop.f32.mrb[0].mxu0
  %v3759 = vadd.f32 %v3584, %v3758
  %v3760 = vpop.f32.mrb[0].mxu0
  %3761 = vmatprep.mubr.bf16.mxu0 %v3501
  %3762 = vmatmul.mubr.bf16.gmra.mrb[0].mxu0 %v3500
  %v3763 = vpop.f32.mrb[0].mxu0
  %v3764 = vadd.f32 %v3584, %v3763
  %v3765 = vpop.f32.mrb[0].mxu0
  %v3766 = vpop.f32.mrb[0].mxu0
  %v3767 = vadd.f32 %v3584, %v3766
  %v3768 = vpop.f32.mrb[0].mxu0
  %3769 = vmatprep.mubr.bf16.mxu0 %v3503
  %3770 = vmatmul.mubr.bf16.gmra.mrb[0].mxu0 %v3502
  %v3771 = vpop.f32.mrb[0].mxu0
  %v3772 = vadd.f32 %v3584, %v3771
  %v3773 = vpop.f32.mrb[0].mxu0
  %v3774 = vpop.f32.mrb[0].mxu0
  %v3775 = vadd.f32 %v3584, %v3774
  %v3776 = vpop.f32.mrb[0].mxu0
  %3777 = vmatprep.mubr.bf16.mxu0 %v3505
  %3778 = vmatmul.mubr.bf16.gmra.mrb[0].mxu0 %v3504
  %v3779 = vpop.f32.mrb[0].mxu0
  %v3780 = vadd.f32 %v3584, %v3779
  %v3781 = vpop.f32.mrb[0].mxu0
  %v3782 = vpop.f32.mrb[0].mxu0
  %v3783 = vadd.f32 %v3584, %v3782
  %v3784 = vpop.f32.mrb[0].mxu0
  %3785 = vmatprep.mubr.bf16.mxu0 %v3507
  %3786 = vmatmul.mubr.bf16.gmra.mrb[0].mxu0 %v3506
  %v3787 = vpop.f32.mrb[0].mxu0
  %v3788 = vadd.f32 %v3584, %v3787
  %v3789 = vpop.f32.mrb[0].mxu0
  %v3790 = vpop.f32.mrb[0].mxu0
  %v3791 = vadd.f32 %v3584, %v3790
  %v3792 = vpop.f32.mrb[0].mxu0
  %3793 = vmatprep.mubr.bf16.mxu0 %v3509
  %3794 = vmatmul.mubr.bf16.gmra.mrb[0].mxu0 %v3508
  %v3795 = vpop.f32.mrb[0].mxu0
  %v3796 = vadd.f32 %v3584, %v3795
  %v3797 = vpop.f32.mrb[0].mxu0
  %v3798 = vpop.f32.mrb[0].mxu0
  %v3799 = vadd.f32 %v3584, %v3798
  %v3800 = vpop.f32.mrb[0].mxu0
  %3801 = vmatprep.mubr.bf16.mxu0 %v3511
  %3802 = vmatmul.mubr.bf16.gmra.mrb[0].mxu0 %v3510
  %v3803 = vpop.f32.mrb[0].mxu0
  %v3804 = vadd.f32 %v3584, %v3803
  %v3805 = vpop.f32.mrb[0].mxu0
  %v3806 = vpop.f32.mrb[0].mxu0
  %v3807 = vadd.f32 %v3584, %v3806
  %v3808 = vpop.f32.mrb[0].mxu0
  %3809 = vmatprep.mubr.bf16.mxu0 %v3513
  %3810 = vmatmul.mubr.bf16.gmra.mrb[0].mxu0 %v3512
  %v3811 = vpop.f32.mrb[0].mxu0
  %v3812 = vadd.f32 %v3584, %v3811
  %v3813 = vpop.f32.mrb[0].mxu0
  %v3814 = vpop.f32.mrb[0].mxu0
  %v3815 = vadd.f32 %v3584, %v3814
  %v3816 = vpop.f32.mrb[0].mxu0
  %3817 = vmatprep.mubr.bf16.mxu0 %v3515
  %3818 = vmatmul.mubr.bf16.gmra.mrb[0].mxu0 %v3514
  %v3819 = vpop.f32.mrb[0].mxu0
  %v3820 = vadd.f32 %v3584, %v3819
  %v3821 = vpop.f32.mrb[0].mxu0
  %v3822 = vpop.f32.mrb[0].mxu0
  %v3823 = vadd.f32 %v3584, %v3822
  %v3824 = vpop.f32.mrb[0].mxu0
  %3825 = vmatprep.mubr.bf16.mxu0 %v3517
  %3826 = vmatmul.mubr.bf16.gmra.mrb[0].mxu0 %v3516
  %v3827 = vpop.f32.mrb[0].mxu0
  %v3828 = vadd.f32 %v3584, %v3827
  %v3829 = vpop.f32.mrb[0].mxu0
  %v3830 = vpop.f32.mrb[0].mxu0
  %v3831 = vadd.f32 %v3584, %v3830
  %v3832 = vpop.f32.mrb[0].mxu0
  %3833 = vmatprep.mubr.bf16.mxu0 %v3519
  %3834 = vmatmul.mubr.bf16.gmra.mrb[0].mxu0 %v3518
  %v3835 = vpop.f32.mrb[0].mxu0
  %v3836 = vadd.f32 %v3584, %v3835
  %v3837 = vpop.f32.mrb[0].mxu0
  %v3838 = vpop.f32.mrb[0].mxu0
  %v3839 = vadd.f32 %v3584, %v3838
  %v3840 = vpop.f32.mrb[0].mxu0
  %3841 = vmatprep.mubr.bf16.mxu0 %v3521
  %3842 = vmatmul.mubr.bf16.gmra.mrb[0].mxu0 %v3520
  %v3843 = vpop.f32.mrb[0].mxu0
  %v3844 = vadd.f32 %v3584, %v3843
  %v3845 = vpop.f32.mrb[0].mxu0
  %v3846 = vpop.f32.mrb[0].mxu0
  %v3847 = vadd.f32 %v3584, %v3846
  %v3848 = vpop.f32.mrb[0].mxu0
  %3849 = vmatprep.mubr.bf16.mxu0 %v3523
  %3850 = vmatmul.mubr.bf16.gmra.mrb[0].mxu0 %v3522
  %v3851 = vpop.f32.mrb[0].mxu0
  %v3852 = vadd.f32 %v3584, %v3851
  %v3853 = vpop.f32.mrb[0].mxu0
  %v3854 = vpop.f32.mrb[0].mxu0
  %v3855 = vadd.f32 %v3584, %v3854
  %v3856 = vpop.f32.mrb[0].mxu0
  %3857 = vmatprep.mubr.bf16.mxu0 %v3525
  %3858 = vmatmul.mubr.bf16.gmra.mrb[0].mxu0 %v3524
  %v3859 = vpop.f32.mrb[0].mxu0
  %v3860 = vadd.f32 %v3584, %v3859
  %v3861 = vpop.f32.mrb[0].mxu0
  %v3862 = vpop.f32.mrb[0].mxu0
  %v3863 = vadd.f32 %v3584, %v3862
  %v3864 = vpop.f32.mrb[0].mxu0
  %3865 = vmatprep.mubr.bf16.mxu0 %v3527
  %3866 = vmatmul.mubr.bf16.gmra.mrb[0].mxu0 %v3526
  %v3867 = vpop.f32.mrb[0].mxu0
  %v3868 = vadd.f32 %v3584, %v3867
  %v3869 = vpop.f32.mrb[0].mxu0
  %v3870 = vpop.f32.mrb[0].mxu0
  %v3871 = vadd.f32 %v3584, %v3870
  %v3872 = vpop.f32.mrb[0].mxu0
  %3873 = vmatprep.mubr.bf16.mxu0 %v3529
  %3874 = vmatmul.mubr.bf16.gmra.mrb[0].mxu0 %v3528
  %v3875 = vpop.f32.mrb[0].mxu0
  %v3876 = vadd.f32 %v3584, %v3875
  %v3877 = vpop.f32.mrb[0].mxu0
  %v3878 = vpop.f32.mrb[0].mxu0
  %v3879 = vadd.f32 %v3584, %v3878
  %v3880 = vpop.f32.mrb[0].mxu0
  %3881 = vmatprep.mubr.bf16.mxu0 %v3531
  %3882 = vmatmul.mubr.bf16.gmra.mrb[0].mxu0 %v3530
  %v3883 = vpop.f32.mrb[0].mxu0
  %v3884 = vadd.f32 %v3584, %v3883
  %v3885 = vpop.f32.mrb[0].mxu0
  %v3886 = vpop.f32.mrb[0].mxu0
  %v3887 = vadd.f32 %v3584, %v3886
  %v3888 = vpop.f32.mrb[0].mxu0
  %3889 = vmatprep.mubr.bf16.mxu0 %v3533
  %3890 = vmatmul.mubr.bf16.gmra.mrb[0].mxu0 %v3532
  %v3891 = vpop.f32.mrb[0].mxu0
  %v3892 = vadd.f32 %v3584, %v3891
  %v3893 = vpop.f32.mrb[0].mxu0
  %v3894 = vpop.f32.mrb[0].mxu0
  %v3895 = vadd.f32 %v3584, %v3894
  %v3896 = vpop.f32.mrb[0].mxu0
  %3897 = vmatprep.mubr.bf16.mxu0 %v3535
  %3898 = vmatmul.mubr.bf16.gmra.mrb[0].mxu0 %v3534
  %v3899 = vpop.f32.mrb[0].mxu0
  %v3900 = vadd.f32 %v3584, %v3899
  %v3901 = vpop.f32.mrb[0].mxu0
  %v3902 = vpop.f32.mrb[0].mxu0
  %v3903 = vadd.f32 %v3584, %v3902
  %v3904 = vpop.f32.mrb[0].mxu0
  %3905 = vmatprep.mubr.bf16.mxu0 %v3537
  %3906 = vmatmul.mubr.bf16.gmra.mrb[0].mxu0 %v3536
  %v3907 = vpop.f32.mrb[0].mxu0
  %v3908 = vadd.f32 %v3584, %v3907
  %v3909 = vpop.f32.mrb[0].mxu0
  %v3910 = vpop.f32.mrb[0].mxu0
  %v3911 = vadd.f32 %v3584, %v3910
  %v3912 = vpop.f32.mrb[0].mxu0
  %3913 = vmatprep.mubr.bf16.mxu0 %v3539
  %3914 = vmatmul.mubr.bf16.gmra.mrb[0].mxu0 %v3538
  %v3915 = vpop.f32.mrb[0].mxu0
  %v3916 = vadd.f32 %v3584, %v3915
  %v3917 = vpop.f32.mrb[0].mxu0
  %v3918 = vpop.f32.mrb[0].mxu0
  %v3919 = vadd.f32 %v3584, %v3918
  %v3920 = vpop.f32.mrb[0].mxu0
  %3921 = vmatprep.mubr.bf16.mxu0 %v3541
  %3922 = vmatmul.mubr.bf16.gmra.mrb[0].mxu0 %v3540
  %v3923 = vpop.f32.mrb[0].mxu0
  %v3924 = vadd.f32 %v3584, %v3923
  %v3925 = vpop.f32.mrb[0].mxu0
  %v3926 = vpop.f32.mrb[0].mxu0
  %v3927 = vadd.f32 %v3584, %v3926
  %v3928 = vpop.f32.mrb[0].mxu0
  %3929 = vmatprep.mubr.bf16.mxu0 %v3543
  %3930 = vmatmul.mubr.bf16.gmra.mrb[0].mxu0 %v3542
  %v3931 = vpop.f32.mrb[0].mxu0
  %v3932 = vadd.f32 %v3584, %v3931
  %v3933 = vpop.f32.mrb[0].mxu0
  %v3934 = vpop.f32.mrb[0].mxu0
  %v3935 = vadd.f32 %v3584, %v3934
  %v3936 = vpop.f32.mrb[0].mxu0
  %3937 = vmatprep.mubr.bf16.mxu0 %v3545
  %3938 = vmatmul.mubr.bf16.gmra.mrb[0].mxu0 %v3544
  %v3939 = vpop.f32.mrb[0].mxu0
  %v3940 = vadd.f32 %v3584, %v3939
  %v3941 = vpop.f32.mrb[0].mxu0
  %v3942 = vpop.f32.mrb[0].mxu0
  %v3943 = vadd.f32 %v3584, %v3942
  %v3944 = vpop.f32.mrb[0].mxu0
  %3945 = vmatprep.mubr.bf16.mxu0 %v3547
  %3946 = vmatmul.mubr.bf16.gmra.mrb[0].mxu0 %v3546
  %v3947 = vpop.f32.mrb[0].mxu0
  %v3948 = vadd.f32 %v3584, %v3947
  %v3949 = vpop.f32.mrb[0].mxu0
  %v3950 = vpop.f32.mrb[0].mxu0
  %v3951 = vadd.f32 %v3584, %v3950
  %v3952 = vpop.f32.mrb[0].mxu0
  %3953 = vmatprep.mubr.bf16.mxu0 %v3549
  %3954 = vmatmul.mubr.bf16.gmra.mrb[0].mxu0 %v3548
  %v3955 = vpop.f32.mrb[0].mxu0
  %v3956 = vadd.f32 %v3584, %v3955
  %v3957 = vpop.f32.mrb[0].mxu0
  %v3958 = vpop.f32.mrb[0].mxu0
  %v3959 = vadd.f32 %v3584, %v3958
  %v3960 = vpop.f32.mrb[0].mxu0
  %3961 = vmatprep.mubr.bf16.mxu0 %v3551
  %3962 = vmatmul.mubr.bf16.gmra.mrb[0].mxu0 %v3550
  %v3963 = vpop.f32.mrb[0].mxu0
  %v3964 = vadd.f32 %v3584, %v3963
  %v3965 = vpop.f32.mrb[0].mxu0
  %v3966 = vpop.f32.mrb[0].mxu0
  %v3967 = vadd.f32 %v3584, %v3966
  %v3968 = vpop.f32.mrb[0].mxu0
  %3969 = vdwg.mxu0
  %v3970 = vtanh.pop %v3716
  %v3971 = vtanh.pop %v3719
  %v3972 = vtanh.pop %v3724
  %v3973 = vtanh.pop %v3727
  %v3974 = vtanh.pop %v3732
  %v3975 = vtanh.pop %v3735
  %v3976 = vtanh.pop %v3740
  %v3977 = vtanh.pop %v3743
  %v3978 = vtanh.pop %v3748
  %v3979 = vtanh.pop %v3751
  %v3980 = vtanh.pop %v3756
  %v3981 = vtanh.pop %v3759
  %v3982 = vtanh.pop %v3764
  %v3983 = vtanh.pop %v3767
  %v3984 = vtanh.pop %v3772
  %v3985 = vtanh.pop %v3775
  %v3986 = vtanh.pop %v3780
  %v3987 = vtanh.pop %v3783
  %v3988 = vtanh.pop %v3788
  %v3989 = vtanh.pop %v3791
  %v3990 = vtanh.pop %v3796
  %v3991 = vtanh.pop %v3799
  %v3992 = vtanh.pop %v3804
  %v3993 = vtanh.pop %v3807
  %v3994 = vtanh.pop %v3812
  %v3995 = vtanh.pop %v3815
  %v3996 = vtanh.pop %v3820
  %v3997 = vtanh.pop %v3823
  %v3998 = vtanh.pop %v3828
  %v3999 = vtanh.pop %v3831
  %v4000 = vtanh.pop %v3836
  %v4001 = vtanh.pop %v3839
  %v4002 = vtanh.pop %v3844
  %v4003 = vtanh.pop %v3847
  %v4004 = vtanh.pop %v3852
  %v4005 = vtanh.pop %v3855
  %v4006 = vtanh.pop %v3860
  %v4007 = vtanh.pop %v3863
  %v4008 = vtanh.pop %v3868
  %v4009 = vtanh.pop %v3871
  %v4010 = vtanh.pop %v3876
  %v4011 = vtanh.pop %v3879
  %v4012 = vtanh.pop %v3884
  %v4013 = vtanh.pop %v3887
  %v4014 = vtanh.pop %v3892
  %v4015 = vtanh.pop %v3895
  %v4016 = vtanh.pop %v3900
  %v4017 = vtanh.pop %v3903
  %v4018 = vtanh.pop %v3908
  %v4019 = vtanh.pop %v3911
  %v4020 = vtanh.pop %v3916
  %v4021 = vtanh.pop %v3919
  %v4022 = vtanh.pop %v3924
  %v4023 = vtanh.pop %v3927
  %v4024 = vtanh.pop %v3932
  %v4025 = vtanh.pop %v3935
  %v4026 = vtanh.pop %v3940
  %v4027 = vtanh.pop %v3943
  %v4028 = vtanh.pop %v3948
  %v4029 = vtanh.pop %v3951
  %v4030 = vtanh.pop %v3956
  %v4031 = vtanh.pop %v3959
  %v4032 = vtanh.pop %v3964
  %v4033 = vtanh.pop %v3967
  %v4034 = vpack.c.bf16 %v3971, %v3970
  %v4035 = vpack.c.bf16 %v3973, %v3972
  %v4036 = vpack.c.bf16 %v3975, %v3974
  %v4037 = vpack.c.bf16 %v3977, %v3976
  %v4038 = vpack.c.bf16 %v3979, %v3978
  %v4039 = vpack.c.bf16 %v3981, %v3980
  %v4040 = vpack.c.bf16 %v3983, %v3982
  %v4041 = vpack.c.bf16 %v3985, %v3984
  %v4042 = vpack.c.bf16 %v3987, %v3986
  %v4043 = vpack.c.bf16 %v3989, %v3988
  %v4044 = vpack.c.bf16 %v3991, %v3990
  %v4045 = vpack.c.bf16 %v3993, %v3992
  %v4046 = vpack.c.bf16 %v3995, %v3994
  %v4047 = vpack.c.bf16 %v3997, %v3996
  %v4048 = vpack.c.bf16 %v3999, %v3998
  %v4049 = vpack.c.bf16 %v4001, %v4000
  %v4050 = vpack.c.bf16 %v4003, %v4002
  %v4051 = vpack.c.bf16 %v4005, %v4004
  %v4052 = vpack.c.bf16 %v4007, %v4006
  %v4053 = vpack.c.bf16 %v4009, %v4008
  %v4054 = vpack.c.bf16 %v4011, %v4010
  %v4055 = vpack.c.bf16 %v4013, %v4012
  %v4056 = vpack.c.bf16 %v4015, %v4014
  %v4057 = vpack.c.bf16 %v4017, %v4016
  %v4058 = vpack.c.bf16 %v4019, %v4018
  %v4059 = vpack.c.bf16 %v4021, %v4020
  %v4060 = vpack.c.bf16 %v4023, %v4022
  %v4061 = vpack.c.bf16 %v4025, %v4024
  %v4062 = vpack.c.bf16 %v4027, %v4026
  %v4063 = vpack.c.bf16 %v4029, %v4028
  %v4064 = vpack.c.bf16 %v4031, %v4030
  %v4065 = vpack.c.bf16 %v4033, %v4032
  %v4066 = vld [vmem:[%s8] sm:$0xf]
  %v4067 = vld [vmem:[%s8 + $0x4] sm:$0xf]
  %v4068 = vld [vmem:[%s8 + $0x8] sm:$0xf]
  %v4069 = vld [vmem:[%s8 + $0xc] sm:$0xf]
  %v4070 = vld [vmem:[%s8 + $0x10] sm:$0xf]
  %v4071 = vld [vmem:[%s8 + $0x14] sm:$0xf]
  %v4072 = vld [vmem:[%s8 + $0x18] sm:$0xf]
  %v4073 = vld [vmem:[%s8 + $0x1c] sm:$0xf]
  %v4074 = vld [vmem:[%s9 + $0x7] ss:$0 sm:$0xff]
  %v4083 = vunpack.c.l.b16 %v4066
  %v4084 = vunpack.c.l.b16 %v4067
  %v4085 = vunpack.c.l.b16 %v4068
  %v4086 = vunpack.c.l.b16 %v4069
  %v4087 = vunpack.c.l.b16 %v4070
  %v4088 = vunpack.c.l.b16 %v4071
  %v4089 = vunpack.c.l.b16 %v4072
  %v4090 = vunpack.c.l.b16 %v4073
  %v4091 = vpack.c.b16 %v4084, %v4083
  %v4092 = vpack.c.b16 %v4086, %v4085
  %v4093 = vpack.c.b16 %v4088, %v4087
  %v4094 = vpack.c.b16 %v4090, %v4089
  %v4100 = vsel %vm692, %v4034, 0
  %v4103 = vsel %vm692, %v4035, 0
  %v4106 = vsel %vm692, %v4036, 0
  %v4109 = vsel %vm692, %v4037, 0
  %v4112 = vsel %vm692, %v4038, 0
  %v4115 = vsel %vm692, %v4039, 0
  %v4118 = vsel %vm692, %v4040, 0
  %v4121 = vsel %vm692, %v4041, 0
  %v4124 = vsel %vm692, %v4042, 0
  %v4127 = vsel %vm692, %v4043, 0
  %v4130 = vsel %vm692, %v4044, 0
  %v4133 = vsel %vm692, %v4045, 0
  %v4136 = vsel %vm692, %v4046, 0
  %v4139 = vsel %vm692, %v4047, 0
  %v4142 = vsel %vm692, %v4048, 0
  %v4145 = vsel %vm692, %v4049, 0
  %v4148 = vsel %vm692, %v4050, 0
  %v4151 = vsel %vm692, %v4051, 0
  %v4154 = vsel %vm692, %v4052, 0
  %v4157 = vsel %vm692, %v4053, 0
  %v4160 = vsel %vm692, %v4054, 0
  %v4163 = vsel %vm692, %v4055, 0
  %v4166 = vsel %vm692, %v4056, 0
  %v4169 = vsel %vm692, %v4057, 0
  %v4172 = vsel %vm692, %v4058, 0
  %v4175 = vsel %vm692, %v4059, 0
  %v4178 = vsel %vm692, %v4060, 0
  %v4181 = vsel %vm692, %v4061, 0
  %v4184 = vsel %vm692, %v4062, 0
  %v4187 = vsel %vm692, %v4063, 0
  %v4190 = vsel %vm692, %v4064, 0
  %v4193 = vsel %vm692, %v4065, 0
  %4195 = vmatprep.subr.bf16.mxu0 0
  %4196 = vmatpush1.bf16.msra.mxu0 %v4091
  %4197 = vmatprep.subr.bf16.mxu0 0
  %4198 = vmatpush1.bf16.msra.mxu0 %v4092
  %4199 = vmatprep.subr.bf16.mxu0 0
  %4200 = vmatpush1.bf16.msra.mxu0 %v4093
  %4201 = vmatprep.subr.bf16.mxu0 0
  %4202 = vmatpush1.bf16.msra.mxu0 %v4094
  %4203 = vmatprep.subr.bf16.mxu0 0
  %4204 = vmatpush1.bf16.msra.mxu0 0
  %4205 = vmatprep.subr.bf16.mxu0 0
  %4206 = vmatpush1.bf16.msra.mxu0 0
  %4207 = vmatprep.subr.bf16.mxu0 0
  %4208 = vmatpush1.bf16.msra.mxu0 0
  %4209 = vmatprep.subr.bf16.mxu0 0
  %4210 = vmatpush1.bf16.msra.mxu0 0
  %4211 = vmatprep.subr.bf16.mxu0 0
  %4212 = vmatpush1.bf16.msra.mxu0 0
  %4213 = vmatprep.subr.bf16.mxu0 0
  %4214 = vmatpush1.bf16.msra.mxu0 0
  %4215 = vmatprep.subr.bf16.mxu0 0
  %4216 = vmatpush1.bf16.msra.mxu0 0
  %4217 = vmatprep.subr.bf16.mxu0 0
  %4218 = vmatpush1.bf16.msra.mxu0 0
  %4219 = vmatprep.subr.bf16.mxu0 0
  %4220 = vmatpush1.bf16.msra.mxu0 0
  %4221 = vmatprep.subr.bf16.mxu0 0
  %4222 = vmatpush1.bf16.msra.mxu0 0
  %4223 = vmatprep.subr.bf16.mxu0 0
  %4224 = vmatpush1.bf16.msra.mxu0 0
  %4225 = vmatprep.subr.bf16.mxu0 0
  %4226 = vmatpush1.bf16.msra.mxu0 0
  %4227 = vmatprep.mubr.bf16.mxu0 0
  %4228 = vmatmul.mubr.bf16.gmra.mrb[0].mxu0 %v4100
  %v4229 = vpop.f32.mrb[0].mxu0
  %v4230 = vadd.f32 %v4074, %v4229
  %v4231 = vpop.f32.mrb[0].mxu0
  %v4232 = vpop.f32.mrb[0].mxu0
  %v4233 = vadd.f32 %v4074, %v4232
  %v4234 = vpop.f32.mrb[0].mxu0
  %4235 = vmatprep.mubr.bf16.mxu0 0
  %4236 = vmatmul.mubr.bf16.gmra.mrb[0].mxu0 %v4103
  %v4237 = vpop.f32.mrb[0].mxu0
  %v4238 = vadd.f32 %v4074, %v4237
  %v4239 = vpop.f32.mrb[0].mxu0
  %v4240 = vpop.f32.mrb[0].mxu0
  %v4241 = vadd.f32 %v4074, %v4240
  %v4242 = vpop.f32.mrb[0].mxu0
  %4243 = vmatprep.mubr.bf16.mxu0 0
  %4244 = vmatmul.mubr.bf16.gmra.mrb[0].mxu0 %v4106
  %v4245 = vpop.f32.mrb[0].mxu0
  %v4246 = vadd.f32 %v4074, %v4245
  %v4247 = vpop.f32.mrb[0].mxu0
  %v4248 = vpop.f32.mrb[0].mxu0
  %v4249 = vadd.f32 %v4074, %v4248
  %v4250 = vpop.f32.mrb[0].mxu0
  %4251 = vmatprep.mubr.bf16.mxu0 0
  %4252 = vmatmul.mubr.bf16.gmra.mrb[0].mxu0 %v4109
  %v4253 = vpop.f32.mrb[0].mxu0
  %v4254 = vadd.f32 %v4074, %v4253
  %v4255 = vpop.f32.mrb[0].mxu0
  %v4256 = vpop.f32.mrb[0].mxu0
  %v4257 = vadd.f32 %v4074, %v4256
  %v4258 = vpop.f32.mrb[0].mxu0
  %4259 = vmatprep.mubr.bf16.mxu0 0
  %4260 = vmatmul.mubr.bf16.gmra.mrb[0].mxu0 %v4112
  %v4261 = vpop.f32.mrb[0].mxu0
  %v4262 = vadd.f32 %v4074, %v4261
  %v4263 = vpop.f32.mrb[0].mxu0
  %v4264 = vpop.f32.mrb[0].mxu0
  %v4265 = vadd.f32 %v4074, %v4264
  %v4266 = vpop.f32.mrb[0].mxu0
  %4267 = vmatprep.mubr.bf16.mxu0 0
  %4268 = vmatmul.mubr.bf16.gmra.mrb[0].mxu0 %v4115
  %v4269 = vpop.f32.mrb[0].mxu0
  %v4270 = vadd.f32 %v4074, %v4269
  %v4271 = vpop.f32.mrb[0].mxu0
  %v4272 = vpop.f32.mrb[0].mxu0
  %v4273 = vadd.f32 %v4074, %v4272
  %v4274 = vpop.f32.mrb[0].mxu0
  %4275 = vmatprep.mubr.bf16.mxu0 0
  %4276 = vmatmul.mubr.bf16.gmra.mrb[0].mxu0 %v4118
  %v4277 = vpop.f32.mrb[0].mxu0
  %v4278 = vadd.f32 %v4074, %v4277
  %v4279 = vpop.f32.mrb[0].mxu0
  %v4280 = vpop.f32.mrb[0].mxu0
  %v4281 = vadd.f32 %v4074, %v4280
  %v4282 = vpop.f32.mrb[0].mxu0
  %4283 = vmatprep.mubr.bf16.mxu0 0
  %4284 = vmatmul.mubr.bf16.gmra.mrb[0].mxu0 %v4121
  %v4285 = vpop.f32.mrb[0].mxu0
  %v4286 = vadd.f32 %v4074, %v4285
  %v4287 = vpop.f32.mrb[0].mxu0
  %v4288 = vpop.f32.mrb[0].mxu0
  %v4289 = vadd.f32 %v4074, %v4288
  %v4290 = vpop.f32.mrb[0].mxu0
  %4291 = vmatprep.mubr.bf16.mxu0 0
  %4292 = vmatmul.mubr.bf16.gmra.mrb[0].mxu0 %v4124
  %v4293 = vpop.f32.mrb[0].mxu0
  %v4294 = vadd.f32 %v4074, %v4293
  %v4295 = vpop.f32.mrb[0].mxu0
  %v4296 = vpop.f32.mrb[0].mxu0
  %v4297 = vadd.f32 %v4074, %v4296
  %v4298 = vpop.f32.mrb[0].mxu0
  %4299 = vmatprep.mubr.bf16.mxu0 0
  %4300 = vmatmul.mubr.bf16.gmra.mrb[0].mxu0 %v4127
  %v4301 = vpop.f32.mrb[0].mxu0
  %v4302 = vadd.f32 %v4074, %v4301
  %v4303 = vpop.f32.mrb[0].mxu0
  %v4304 = vpop.f32.mrb[0].mxu0
  %v4305 = vadd.f32 %v4074, %v4304
  %v4306 = vpop.f32.mrb[0].mxu0
  %4307 = vmatprep.mubr.bf16.mxu0 0
  %4308 = vmatmul.mubr.bf16.gmra.mrb[0].mxu0 %v4130
  %v4309 = vpop.f32.mrb[0].mxu0
  %v4310 = vadd.f32 %v4074, %v4309
  %v4311 = vpop.f32.mrb[0].mxu0
  %v4312 = vpop.f32.mrb[0].mxu0
  %v4313 = vadd.f32 %v4074, %v4312
  %v4314 = vpop.f32.mrb[0].mxu0
  %4315 = vmatprep.mubr.bf16.mxu0 0
  %4316 = vmatmul.mubr.bf16.gmra.mrb[0].mxu0 %v4133
  %v4317 = vpop.f32.mrb[0].mxu0
  %v4318 = vadd.f32 %v4074, %v4317
  %v4319 = vpop.f32.mrb[0].mxu0
  %v4320 = vpop.f32.mrb[0].mxu0
  %v4321 = vadd.f32 %v4074, %v4320
  %v4322 = vpop.f32.mrb[0].mxu0
  %4323 = vmatprep.mubr.bf16.mxu0 0
  %4324 = vmatmul.mubr.bf16.gmra.mrb[0].mxu0 %v4136
  %v4325 = vpop.f32.mrb[0].mxu0
  %v4326 = vadd.f32 %v4074, %v4325
  %v4327 = vpop.f32.mrb[0].mxu0
  %v4328 = vpop.f32.mrb[0].mxu0
  %v4329 = vadd.f32 %v4074, %v4328
  %v4330 = vpop.f32.mrb[0].mxu0
  %4331 = vmatprep.mubr.bf16.mxu0 0
  %4332 = vmatmul.mubr.bf16.gmra.mrb[0].mxu0 %v4139
  %v4333 = vpop.f32.mrb[0].mxu0
  %v4334 = vadd.f32 %v4074, %v4333
  %v4335 = vpop.f32.mrb[0].mxu0
  %v4336 = vpop.f32.mrb[0].mxu0
  %v4337 = vadd.f32 %v4074, %v4336
  %v4338 = vpop.f32.mrb[0].mxu0
  %4339 = vmatprep.mubr.bf16.mxu0 0
  %4340 = vmatmul.mubr.bf16.gmra.mrb[0].mxu0 %v4142
  %v4341 = vpop.f32.mrb[0].mxu0
  %v4342 = vadd.f32 %v4074, %v4341
  %v4343 = vpop.f32.mrb[0].mxu0
  %v4344 = vpop.f32.mrb[0].mxu0
  %v4345 = vadd.f32 %v4074, %v4344
  %v4346 = vpop.f32.mrb[0].mxu0
  %4347 = vmatprep.mubr.bf16.mxu0 0
  %4348 = vmatmul.mubr.bf16.gmra.mrb[0].mxu0 %v4145
  %v4349 = vpop.f32.mrb[0].mxu0
  %v4350 = vadd.f32 %v4074, %v4349
  %v4351 = vpop.f32.mrb[0].mxu0
  %v4352 = vpop.f32.mrb[0].mxu0
  %v4353 = vadd.f32 %v4074, %v4352
  %v4354 = vpop.f32.mrb[0].mxu0
  %4355 = vmatprep.mubr.bf16.mxu0 0
  %4356 = vmatmul.mubr.bf16.gmra.mrb[0].mxu0 %v4148
  %v4357 = vpop.f32.mrb[0].mxu0
  %v4358 = vadd.f32 %v4074, %v4357
  %v4359 = vpop.f32.mrb[0].mxu0
  %v4360 = vpop.f32.mrb[0].mxu0
  %v4361 = vadd.f32 %v4074, %v4360
  %v4362 = vpop.f32.mrb[0].mxu0
  %4363 = vmatprep.mubr.bf16.mxu0 0
  %4364 = vmatmul.mubr.bf16.gmra.mrb[0].mxu0 %v4151
  %v4365 = vpop.f32.mrb[0].mxu0
  %v4366 = vadd.f32 %v4074, %v4365
  %v4367 = vpop.f32.mrb[0].mxu0
  %v4368 = vpop.f32.mrb[0].mxu0
  %v4369 = vadd.f32 %v4074, %v4368
  %v4370 = vpop.f32.mrb[0].mxu0
  %4371 = vmatprep.mubr.bf16.mxu0 0
  %4372 = vmatmul.mubr.bf16.gmra.mrb[0].mxu0 %v4154
  %v4373 = vpop.f32.mrb[0].mxu0
  %v4374 = vadd.f32 %v4074, %v4373
  %v4375 = vpop.f32.mrb[0].mxu0
  %v4376 = vpop.f32.mrb[0].mxu0
  %v4377 = vadd.f32 %v4074, %v4376
  %v4378 = vpop.f32.mrb[0].mxu0
  %4379 = vmatprep.mubr.bf16.mxu0 0
  %4380 = vmatmul.mubr.bf16.gmra.mrb[0].mxu0 %v4157
  %v4381 = vpop.f32.mrb[0].mxu0
  %v4382 = vadd.f32 %v4074, %v4381
  %v4383 = vpop.f32.mrb[0].mxu0
  %v4384 = vpop.f32.mrb[0].mxu0
  %v4385 = vadd.f32 %v4074, %v4384
  %v4386 = vpop.f32.mrb[0].mxu0
  %4387 = vmatprep.mubr.bf16.mxu0 0
  %4388 = vmatmul.mubr.bf16.gmra.mrb[0].mxu0 %v4160
  %v4389 = vpop.f32.mrb[0].mxu0
  %v4390 = vadd.f32 %v4074, %v4389
  %v4391 = vpop.f32.mrb[0].mxu0
  %v4392 = vpop.f32.mrb[0].mxu0
  %v4393 = vadd.f32 %v4074, %v4392
  %v4394 = vpop.f32.mrb[0].mxu0
  %4395 = vmatprep.mubr.bf16.mxu0 0
  %4396 = vmatmul.mubr.bf16.gmra.mrb[0].mxu0 %v4163
  %v4397 = vpop.f32.mrb[0].mxu0
  %v4398 = vadd.f32 %v4074, %v4397
  %v4399 = vpop.f32.mrb[0].mxu0
  %v4400 = vpop.f32.mrb[0].mxu0
  %v4401 = vadd.f32 %v4074, %v4400
  %v4402 = vpop.f32.mrb[0].mxu0
  %4403 = vmatprep.mubr.bf16.mxu0 0
  %4404 = vmatmul.mubr.bf16.gmra.mrb[0].mxu0 %v4166
  %v4405 = vpop.f32.mrb[0].mxu0
  %v4406 = vadd.f32 %v4074, %v4405
  %v4407 = vpop.f32.mrb[0].mxu0
  %v4408 = vpop.f32.mrb[0].mxu0
  %v4409 = vadd.f32 %v4074, %v4408
  %v4410 = vpop.f32.mrb[0].mxu0
  %4411 = vmatprep.mubr.bf16.mxu0 0
  %4412 = vmatmul.mubr.bf16.gmra.mrb[0].mxu0 %v4169
  %v4413 = vpop.f32.mrb[0].mxu0
  %v4414 = vadd.f32 %v4074, %v4413
  %v4415 = vpop.f32.mrb[0].mxu0
  %v4416 = vpop.f32.mrb[0].mxu0
  %v4417 = vadd.f32 %v4074, %v4416
  %v4418 = vpop.f32.mrb[0].mxu0
  %4419 = vmatprep.mubr.bf16.mxu0 0
  %4420 = vmatmul.mubr.bf16.gmra.mrb[0].mxu0 %v4172
  %v4421 = vpop.f32.mrb[0].mxu0
  %v4422 = vadd.f32 %v4074, %v4421
  %v4423 = vpop.f32.mrb[0].mxu0
  %v4424 = vpop.f32.mrb[0].mxu0
  %v4425 = vadd.f32 %v4074, %v4424
  %v4426 = vpop.f32.mrb[0].mxu0
  %4427 = vmatprep.mubr.bf16.mxu0 0
  %4428 = vmatmul.mubr.bf16.gmra.mrb[0].mxu0 %v4175
  %v4429 = vpop.f32.mrb[0].mxu0
  %v4430 = vadd.f32 %v4074, %v4429
  %v4431 = vpop.f32.mrb[0].mxu0
  %v4432 = vpop.f32.mrb[0].mxu0
  %v4433 = vadd.f32 %v4074, %v4432
  %v4434 = vpop.f32.mrb[0].mxu0
  %4435 = vmatprep.mubr.bf16.mxu0 0
  %4436 = vmatmul.mubr.bf16.gmra.mrb[0].mxu0 %v4178
  %v4437 = vpop.f32.mrb[0].mxu0
  %v4438 = vadd.f32 %v4074, %v4437
  %v4439 = vpop.f32.mrb[0].mxu0
  %v4440 = vpop.f32.mrb[0].mxu0
  %v4441 = vadd.f32 %v4074, %v4440
  %v4442 = vpop.f32.mrb[0].mxu0
  %4443 = vmatprep.mubr.bf16.mxu0 0
  %4444 = vmatmul.mubr.bf16.gmra.mrb[0].mxu0 %v4181
  %v4445 = vpop.f32.mrb[0].mxu0
  %v4446 = vadd.f32 %v4074, %v4445
  %v4447 = vpop.f32.mrb[0].mxu0
  %v4448 = vpop.f32.mrb[0].mxu0
  %v4449 = vadd.f32 %v4074, %v4448
  %v4450 = vpop.f32.mrb[0].mxu0
  %4451 = vmatprep.mubr.bf16.mxu0 0
  %4452 = vmatmul.mubr.bf16.gmra.mrb[0].mxu0 %v4184
  %v4453 = vpop.f32.mrb[0].mxu0
  %v4454 = vadd.f32 %v4074, %v4453
  %v4455 = vpop.f32.mrb[0].mxu0
  %v4456 = vpop.f32.mrb[0].mxu0
  %v4457 = vadd.f32 %v4074, %v4456
  %v4458 = vpop.f32.mrb[0].mxu0
  %4459 = vmatprep.mubr.bf16.mxu0 0
  %4460 = vmatmul.mubr.bf16.gmra.mrb[0].mxu0 %v4187
  %v4461 = vpop.f32.mrb[0].mxu0
  %v4462 = vadd.f32 %v4074, %v4461
  %v4463 = vpop.f32.mrb[0].mxu0
  %v4464 = vpop.f32.mrb[0].mxu0
  %v4465 = vadd.f32 %v4074, %v4464
  %v4466 = vpop.f32.mrb[0].mxu0
  %4467 = vmatprep.mubr.bf16.mxu0 0
  %4468 = vmatmul.mubr.bf16.gmra.mrb[0].mxu0 %v4190
  %v4469 = vpop.f32.mrb[0].mxu0
  %v4470 = vadd.f32 %v4074, %v4469
  %v4471 = vpop.f32.mrb[0].mxu0
  %v4472 = vpop.f32.mrb[0].mxu0
  %v4473 = vadd.f32 %v4074, %v4472
  %v4474 = vpop.f32.mrb[0].mxu0
  %4475 = vmatprep.mubr.bf16.mxu0 0
  %4476 = vmatmul.mubr.bf16.gmra.mrb[0].mxu0 %v4193
  %v4477 = vpop.f32.mrb[0].mxu0
  %v4478 = vadd.f32 %v4074, %v4477
  %v4479 = vpop.f32.mrb[0].mxu0
  %v4480 = vpop.f32.mrb[0].mxu0
  %v4481 = vadd.f32 %v4074, %v4480
  %v4482 = vpop.f32.mrb[0].mxu0
  %4483 = vdwg.mxu0
  %4484 = vst.msk [vmem:[%s10] sm:$0xff] %vm149, %v4230
  %4485 = vst.msk [vmem:[%s10 + $0x8] sm:$0xff] %vm149, %v4233
  %4486 = vst.msk [vmem:[%s10 + $0x10] sm:$0xff] %vm149, %v4238
  %4487 = vst.msk [vmem:[%s10 + $0x18] sm:$0xff] %vm149, %v4241
  %4488 = vst.msk [vmem:[%s10 + $0x20] sm:$0xff] %vm149, %v4246
  %4489 = vst.msk [vmem:[%s10 + $0x28] sm:$0xff] %vm149, %v4249
  %4490 = vst.msk [vmem:[%s10 + $0x30] sm:$0xff] %vm149, %v4254
  %4491 = vst.msk [vmem:[%s10 + $0x38] sm:$0xff] %vm149, %v4257
  %4492 = vst.msk [vmem:[%s10 + $0x40] sm:$0xff] %vm149, %v4262
  %4493 = vst.msk [vmem:[%s10 + $0x48] sm:$0xff] %vm149, %v4265
  %4494 = vst.msk [vmem:[%s10 + $0x50] sm:$0xff] %vm149, %v4270
  %4495 = vst.msk [vmem:[%s10 + $0x58] sm:$0xff] %vm149, %v4273
  %4496 = vst.msk [vmem:[%s10 + $0x60] sm:$0xff] %vm149, %v4278
  %4497 = vst.msk [vmem:[%s10 + $0x68] sm:$0xff] %vm149, %v4281
  %4498 = vst.msk [vmem:[%s10 + $0x70] sm:$0xff] %vm149, %v4286
  %4499 = vst.msk [vmem:[%s10 + $0x78] sm:$0xff] %vm149, %v4289
  %4500 = vst.msk [vmem:[%s10 + $0x80] sm:$0xff] %vm149, %v4294
  %4501 = vst.msk [vmem:[%s10 + $0x88] sm:$0xff] %vm149, %v4297
  %4502 = vst.msk [vmem:[%s10 + $0x90] sm:$0xff] %vm149, %v4302
  %4503 = vst.msk [vmem:[%s10 + $0x98] sm:$0xff] %vm149, %v4305
  %4504 = vst.msk [vmem:[%s10 + $0xa0] sm:$0xff] %vm149, %v4310
  %4505 = vst.msk [vmem:[%s10 + $0xa8] sm:$0xff] %vm149, %v4313
  %4506 = vst.msk [vmem:[%s10 + $0xb0] sm:$0xff] %vm149, %v4318
  %4507 = vst.msk [vmem:[%s10 + $0xb8] sm:$0xff] %vm149, %v4321
  %4508 = vst.msk [vmem:[%s10 + $0xc0] sm:$0xff] %vm149, %v4326
  %4509 = vst.msk [vmem:[%s10 + $0xc8] sm:$0xff] %vm149, %v4329
  %4510 = vst.msk [vmem:[%s10 + $0xd0] sm:$0xff] %vm149, %v4334
  %4511 = vst.msk [vmem:[%s10 + $0xd8] sm:$0xff] %vm149, %v4337
  %4512 = vst.msk [vmem:[%s10 + $0xe0] sm:$0xff] %vm149, %v4342
  %4513 = vst.msk [vmem:[%s10 + $0xe8] sm:$0xff] %vm149, %v4345
  %4514 = vst.msk [vmem:[%s10 + $0xf0] sm:$0xff] %vm149, %v4350
  %4515 = vst.msk [vmem:[%s10 + $0xf8] sm:$0xff] %vm149, %v4353
  %4516 = vst.msk [vmem:[%s10 + $0x100] sm:$0xff] %vm149, %v4358
  %4517 = vst.msk [vmem:[%s10 + $0x108] sm:$0xff] %vm149, %v4361
  %4518 = vst.msk [vmem:[%s10 + $0x110] sm:$0xff] %vm149, %v4366
  %4519 = vst.msk [vmem:[%s10 + $0x118] sm:$0xff] %vm149, %v4369
  %4520 = vst.msk [vmem:[%s10 + $0x120] sm:$0xff] %vm149, %v4374
  %4521 = vst.msk [vmem:[%s10 + $0x128] sm:$0xff] %vm149, %v4377
  %4522 = vst.msk [vmem:[%s10 + $0x130] sm:$0xff] %vm149, %v4382
  %4523 = vst.msk [vmem:[%s10 + $0x138] sm:$0xff] %vm149, %v4385
  %4524 = vst.msk [vmem:[%s10 + $0x140] sm:$0xff] %vm149, %v4390
  %4525 = vst.msk [vmem:[%s10 + $0x148] sm:$0xff] %vm149, %v4393
  %4526 = vst.msk [vmem:[%s10 + $0x150] sm:$0xff] %vm149, %v4398
  %4527 = vst.msk [vmem:[%s10 + $0x158] sm:$0xff] %vm149, %v4401
  %4528 = vst.msk [vmem:[%s10 + $0x160] sm:$0xff] %vm149, %v4406
  %4529 = vst.msk [vmem:[%s10 + $0x168] sm:$0xff] %vm149, %v4409
  %4530 = vst.msk [vmem:[%s10 + $0x170] sm:$0xff] %vm149, %v4414
  %4531 = vst.msk [vmem:[%s10 + $0x178] sm:$0xff] %vm149, %v4417
  %4532 = vst.msk [vmem:[%s10 + $0x180] sm:$0xff] %vm149, %v4422
  %4533 = vst.msk [vmem:[%s10 + $0x188] sm:$0xff] %vm149, %v4425
  %4534 = vst.msk [vmem:[%s10 + $0x190] sm:$0xff] %vm149, %v4430
  %4535 = vst.msk [vmem:[%s10 + $0x198] sm:$0xff] %vm149, %v4433
  %4536 = vst.msk [vmem:[%s10 + $0x1a0] sm:$0xff] %vm149, %v4438
  %4537 = vst.msk [vmem:[%s10 + $0x1a8] sm:$0xff] %vm149, %v4441
  %4538 = vst.msk [vmem:[%s10 + $0x1b0] sm:$0xff] %vm149, %v4446
  %4539 = vst.msk [vmem:[%s10 + $0x1b8] sm:$0xff] %vm149, %v4449
  %4540 = vst.msk [vmem:[%s10 + $0x1c0] sm:$0xff] %vm149, %v4454
  %4541 = vst.msk [vmem:[%s10 + $0x1c8] sm:$0xff] %vm149, %v4457
  %4542 = vst.msk [vmem:[%s10 + $0x1d0] sm:$0xff] %vm149, %v4462
  %4543 = vst.msk [vmem:[%s10 + $0x1d8] sm:$0xff] %vm149, %v4465
  %4544 = vst.msk [vmem:[%s10 + $0x1e0] sm:$0xff] %vm149, %v4470
  %4545 = vst.msk [vmem:[%s10 + $0x1e8] sm:$0xff] %vm149, %v4473
  %4546 = vst.msk [vmem:[%s10 + $0x1f0] sm:$0xff] %vm149, %v4478
  %4547 = vst.msk [vmem:[%s10 + $0x1f8] sm:$0xff] %vm149, %v4481
  // Predicated region
  $region42: #{torch_ae_forward.1} parent=0 // pred_check
    _
  $region43: #{torch_ae_forward.1} parent=0 // pred_check_branch
    %4549 = sbr.rel (0) target = $region45
  $region44: #{torch_ae_forward.1} parent=0 // pred_region
    _
  $region45: #{torch_ae_forward.1} parent=0 // pred_fallthru
    _
  // Predicated region
  $region46: #{torch_ae_forward.1} parent=0 // pred_check
    _
  $region47: #{torch_ae_forward.1} parent=0 // pred_check_branch
    %4551 = sbr.rel (0) target = $region49
  $region48: #{torch_ae_forward.1} parent=0 // pred_region
    _
  $region49: #{torch_ae_forward.1} parent=0 // pred_fallthru
    _

</llo_original>
